<compile_context>
chip_gen: v7x
topology: tpu7x:2x2x1
jax: 0.10.0
libtpu: 0.0.40
codegen_flags: <defaults>
</compile_context>

<pallas_src>
import functools

import jax
import jax.numpy as jnp
from jax.experimental import pallas as pl
from jax.experimental.pallas import tpu as pltpu

N_LAYERS = 6


def rnvp_kernel(d, x_ref,
                w1_ref, b1_ref, w2_ref, b2_ref,
                w3s_ref, b3s_ref, w3t_ref, b3t_ref,
                y_ref, logdet_ref):
    xT = x_ref[...]                                   # (D, TB) f32, D = 2d
    left = xT[:d, :]                                  # split ONCE (sublane slice)
    right = xT[d:, :]
    s_acc = jnp.zeros((d, xT.shape[1]), jnp.float32)  # (d, TB)

    for i in range(N_LAYERS):                         # statically unrolled
        up = (i % 2 == 0)
        xin = left if up else right                   # (d, TB) half feeding the MLP

        # Fused scale/translate hidden layers (block-diagonal, P = 2*hidden):
        #   h^T = relu(W^T @ x^T + b^T)  — hidden dim on sublanes, batch on lanes.
        h = jnp.dot(w1_ref[i], xin, preferred_element_type=jnp.float32) + b1_ref[i]
        h = jnp.maximum(h, 0.0)                       # (P, TB)
        h = jnp.dot(w2_ref[i], h, preferred_element_type=jnp.float32) + b2_ref[i]
        h = jnp.maximum(h, 0.0)                       # (P, TB)

        # Split heads: no lane/sublane slicing of the MLP output.
        s = jnp.tanh(jnp.dot(w3s_ref[i], h, preferred_element_type=jnp.float32)
                     + b3s_ref[i])                    # (d, TB)
        t = (jnp.dot(w3t_ref[i], h, preferred_element_type=jnp.float32)
             + b3t_ref[i])                            # (d, TB)

        yb = (right if up else left) * jnp.exp(s) + t
        if up:
            right = yb
        else:
            left = yb

        s_acc = s_acc + s                             # cheap VPU add; reduce once at end

    # Single full-tile, lane-dense store of the transformed features (sublane
    # concat of two (d, TB) halves is a single-vreg shuffle at d=4).
    y_ref[...] = jnp.concatenate([left, right], axis=0)

    # One sublane reduction (d-1 adds) -> (1, TB), already lane-dense.
    logdet_ref[...] = jnp.sum(s_acc, axis=0, keepdims=True)


def _pick_batch_tile(n):
    # Batch now lives on the LANE axis: prefer 128-aligned tiles.  Prefer >= 2
    # grid steps so v7x megacore can shard the "parallel" batch axis; on
    # v5e/v6e an extra step is only ~0.35 us so this costs nothing material.
    for t in (2048, 1024, 512, 256, 128):
        if n % t == 0 and n // t >= 2:
            return t
    for t in (4096, 2048, 1024, 512, 256, 128):
        if n % t == 0:
            return t
    return n   # block equals full dim: legal, lanes partially wasted


def fuse_params(params, d, hidden):
    """Transpose + fuse the scale/translate nets.

    Hidden layers are block-diagonal with fused width P = 2*hidden (hidden sits
    on the contraction/sublane axis, so only 8-alignment matters, not 128).
    The output head is kept SPLIT into separate s and t matrices.
    All weights are stored already transposed for the h^T = W^T @ x^T form.
    """
    sw1, sb1, sw2, sb2, sw3, sb3, tw1, tb1, tw2, tb2, tw3, tb3 = params
    H = hidden
    L = sw1.shape[0]
    P = 2 * H
    assert P % 8 == 0, "fused hidden width must be 8-sublane aligned"
    f32 = jnp.float32
    T = lambda a: jnp.swapaxes(a, 1, 2)   # transpose the per-layer matrices

    w1 = (jnp.zeros((L, P, d), f32)
          .at[:, :H, :].set(T(sw1)).at[:, H:, :].set(T(tw1)))          # (L, P, d)
    b1 = (jnp.zeros((L, P, 1), f32)
          .at[:, :H, :].set(T(sb1)).at[:, H:, :].set(T(tb1)))          # (L, P, 1)
    w2 = (jnp.zeros((L, P, P), f32)
          .at[:, :H, :H].set(T(sw2)).at[:, H:, H:].set(T(tw2)))        # (L, P, P)
    b2 = (jnp.zeros((L, P, 1), f32)
          .at[:, :H, :].set(T(sb2)).at[:, H:, :].set(T(tb2)))          # (L, P, 1)
    w3s = jnp.zeros((L, d, P), f32).at[:, :, :H].set(T(sw3))           # (L, d, P)
    b3s = T(sb3)                                                       # (L, d, 1)
    w3t = jnp.zeros((L, d, P), f32).at[:, :, H:].set(T(tw3))           # (L, d, P)
    b3t = T(tb3)                                                       # (L, d, 1)
    return [w1, b1, w2, b2, w3s, b3s, w3t, b3t]


def rnvp_forward(x, fused_params, d, batch_tile=None):
    N, D = x.shape
    assert D == 2 * d, "fused-weight kernel assumes input_size == 2*d"
    if batch_tile is None:
        batch_tile = _pick_batch_tile(N)
    assert N % batch_tile == 0
    num_tiles = N // batch_tile

    # Layout plumbing only: present batch on the lane axis to the kernel.
    xT = x.T                                            # (D, N)

    # Weights stay VMEM-resident across the grid (constant index_map).  At
    # hidden=32 this is a few hundred KB even double-buffered; set
    # vmem_limit_bytes / single-buffer them only if hidden is scaled up (v7x
    # has 64 MiB physical VMEM).
    def resident(shape):
        nd = len(shape)
        return pl.BlockSpec(shape, lambda i, _nd=nd: (0,) * _nd)

    in_specs = [pl.BlockSpec((D, batch_tile), lambda i: (0, i))]
    in_specs += [resident(p.shape) for p in fused_params]

    out_specs = (pl.BlockSpec((D, batch_tile), lambda i: (0, i)),
                 pl.BlockSpec((1, batch_tile), lambda i: (0, i)))

    yT, logdet = pl.pallas_call(
        functools.partial(rnvp_kernel, d),
        grid=(num_tiles,),
        in_specs=in_specs,
        out_specs=out_specs,
        out_shape=(jax.ShapeDtypeStruct((D, N), jnp.float32),
                   jax.ShapeDtypeStruct((1, N), jnp.float32)),
        compiler_params=pltpu.CompilerParams(
            dimension_semantics=("parallel",)),
    )(xT, *fused_params)
    return yT.T, logdet.reshape(N)


def init_params(key, d, hidden):
    """Deterministic init (torch.nn.Linear-style uniform), stacked over 6 layers."""
    def linear(k, fan_in, shape):
        bound = 1.0 / jnp.sqrt(jnp.float32(fan_in))
        return jax.random.uniform(k, shape, jnp.float32, -bound, bound)

    keys = jax.random.split(key, 12)
    params = []
    for net in range(2):                       # 0 -> scale net, 1 -> translate net
        kw = keys[net * 6: (net + 1) * 6]
        w1 = linear(kw[0], d,      (N_LAYERS, d, hidden))
        b1 = linear(kw[1], d,      (N_LAYERS, 1, hidden))
        w2 = linear(kw[2], hidden, (N_LAYERS, hidden, hidden))
        b2 = linear(kw[3], hidden, (N_LAYERS, 1, hidden))
        w3 = linear(kw[4], hidden, (N_LAYERS, hidden, d))
        b3 = linear(kw[5], hidden, (N_LAYERS, 1, d))
        params += [w1, b1, w2, b2, w3, b3]
    return params


def rnvp_reference(x, params, d):
    """Pure-JAX reference mirroring the PyTorch forward (un-fused, batch-major)."""
    sw1, sb1, sw2, sb2, sw3, sb3, tw1, tb1, tw2, tb2, tw3, tb3 = params
    y = x
    logdet = jnp.zeros((x.shape[0],), jnp.float32)
    for i in range(N_LAYERS):
        up = (i % 2 == 0)
        xa = y[:, :d] if up else y[:, d:]
        xb = y[:, d:] if up else y[:, :d]
        h = jnp.maximum(xa @ sw1[i] + sb1[i], 0.0)
        h = jnp.maximum(h @ sw2[i] + sb2[i], 0.0)
        s = jnp.tanh(h @ sw3[i] + sb3[i])
        h = jnp.maximum(xa @ tw1[i] + tb1[i], 0.0)
        h = jnp.maximum(h @ tw2[i] + tb2[i], 0.0)
        t = h @ tw3[i] + tb3[i]
        yb = xb * jnp.exp(s) + t
        y = jnp.concatenate([xa, yb], axis=1) if up else jnp.concatenate([yb, xa], axis=1)
        logdet = logdet + jnp.sum(s, axis=1)
    return y, logdet


if __name__ == "__main__":
    input_size = 8      # D
    d = 4               # split point (input_size == 2*d)
    hidden = 32         # per-net hidden width -> fused P = 64
    batch = 256         # -> batch_tile 128, grid=(2,) (both TCs usable on v7x)

    key = jax.random.PRNGKey(0)
    kx, kp = jax.random.split(key)
    x = jax.random.normal(kx, (batch, input_size), jnp.float32)
    params = init_params(kp, d, hidden)
    fused = fuse_params(params, d, hidden)

    y, sum_det_J = rnvp_forward(x, fused, d)
    jax.block_until_ready((y, sum_det_J))

    y_ref, det_ref = rnvp_reference(x, params, d)
    assert y.shape == (batch, input_size) and sum_det_J.shape == (batch,)
    assert jnp.allclose(y, y_ref, atol=1e-4, rtol=1e-4)
    assert jnp.allclose(sum_det_J, det_ref, atol=1e-4, rtol=1e-4)

    # TODO(synk): RNVP.inverse() is not implemented (only forward was requested).
    print("KERNEL_OK")
</pallas_src>

<mosaic_0001>
module attributes {stable_mosaic.version = 11 : i64} {
  func.func @rnvp_kernel(%arg0: i32, %arg1: memref<8x128xf32, #tpu.memory_space<vmem>>, %arg2: memref<6x64x4xf32, #tpu.memory_space<vmem>>, %arg3: memref<6x64x1xf32, #tpu.memory_space<vmem>>, %arg4: memref<6x64x64xf32, #tpu.memory_space<vmem>>, %arg5: memref<6x64x1xf32, #tpu.memory_space<vmem>>, %arg6: memref<6x4x64xf32, #tpu.memory_space<vmem>>, %arg7: memref<6x4x1xf32, #tpu.memory_space<vmem>>, %arg8: memref<6x4x64xf32, #tpu.memory_space<vmem>>, %arg9: memref<6x4x1xf32, #tpu.memory_space<vmem>>, %arg10: memref<8x128xf32, #tpu.memory_space<vmem>>, %arg11: memref<1x128xf32, #tpu.memory_space<vmem>>) attributes {dimension_semantics = [#tpu.dimension_semantics<parallel>], iteration_bounds = array<i64: 2>, scalar_prefetch = 0 : i64, scratch_operands = 0 : i64, tpu.core_type = #tpu.core_type<tc>, window_params = [{transform_indices = @transform_0, window_bounds = array<i64: 8, 128>}, {pipeline_mode = #tpu.pipeline_mode<synchronous>, transform_indices = @transform_1, window_bounds = array<i64: 6, 64, 4>}, {pipeline_mode = #tpu.pipeline_mode<synchronous>, transform_indices = @transform_2, window_bounds = array<i64: 6, 64, 1>}, {pipeline_mode = #tpu.pipeline_mode<synchronous>, transform_indices = @transform_3, window_bounds = array<i64: 6, 64, 64>}, {pipeline_mode = #tpu.pipeline_mode<synchronous>, transform_indices = @transform_4, window_bounds = array<i64: 6, 64, 1>}, {pipeline_mode = #tpu.pipeline_mode<synchronous>, transform_indices = @transform_5, window_bounds = array<i64: 6, 4, 64>}, {pipeline_mode = #tpu.pipeline_mode<synchronous>, transform_indices = @transform_6, window_bounds = array<i64: 6, 4, 1>}, {pipeline_mode = #tpu.pipeline_mode<synchronous>, transform_indices = @transform_7, window_bounds = array<i64: 6, 4, 64>}, {pipeline_mode = #tpu.pipeline_mode<synchronous>, transform_indices = @transform_8, window_bounds = array<i64: 6, 4, 1>}, {transform_indices = @transform_9, window_bounds = array<i64: 8, 128>}, {transform_indices = @transform_10, window_bounds = array<i64: 1, 128>}]} {
    %c0 = arith.constant 0 : index
    %c0_0 = arith.constant 0 : index
    %0 = vector.load %arg1[%c0, %c0_0] : memref<8x128xf32, #tpu.memory_space<vmem>>, vector<8x128xf32>
    %1 = vector.extract_strided_slice %0 {offsets = [0, 0], sizes = [4, 128], strides = [1, 1]} : vector<8x128xf32> to vector<4x128xf32>
    %2 = vector.extract_strided_slice %0 {offsets = [4, 0], sizes = [4, 128], strides = [1, 1]} : vector<8x128xf32> to vector<4x128xf32>
    %cst = arith.constant 0.000000e+00 : f32
    %3 = vector.broadcast %cst : f32 to vector<4x128xf32>
    %c0_1 = arith.constant 0 : index
    %c0_2 = arith.constant 0 : index
    %c0_3 = arith.constant 0 : index
    %4 = vector.load %arg2[%c0_1, %c0_2, %c0_3] : memref<6x64x4xf32, #tpu.memory_space<vmem>>, vector<1x64x4xf32>
    %5 = vector.shape_cast %4 : vector<1x64x4xf32> to vector<64x4xf32>
    %cst_4 = arith.constant dense<0.000000e+00> : vector<64x128xf32>
    %6 = tpu.matmul %5, %1, %cst_4 {dimension_numbers = #tpu.dot_dimension_numbers<[1], [0], [0], [1], [0, 0, 1, 1], [], []>} : vector<64x4xf32>, vector<4x128xf32>, vector<64x128xf32> -> vector<64x128xf32>
    %c0_5 = arith.constant 0 : index
    %c0_6 = arith.constant 0 : index
    %c0_7 = arith.constant 0 : index
    %7 = vector.load %arg3[%c0_5, %c0_6, %c0_7] : memref<6x64x1xf32, #tpu.memory_space<vmem>>, vector<1x64x1xf32>
    %8 = vector.shape_cast %7 : vector<1x64x1xf32> to vector<64x1xf32>
    %9 = vector.broadcast %8 : vector<64x1xf32> to vector<64x128xf32>
    %10 = arith.addf %6, %9 : vector<64x128xf32>
    %cst_8 = arith.constant 0.000000e+00 : f32
    %11 = vector.broadcast %cst_8 : f32 to vector<64x128xf32>
    %12 = arith.maximumf %10, %11 : vector<64x128xf32>
    %c0_9 = arith.constant 0 : index
    %c0_10 = arith.constant 0 : index
    %c0_11 = arith.constant 0 : index
    %13 = vector.load %arg4[%c0_9, %c0_10, %c0_11] : memref<6x64x64xf32, #tpu.memory_space<vmem>>, vector<1x64x64xf32>
    %14 = vector.shape_cast %13 : vector<1x64x64xf32> to vector<64x64xf32>
    %cst_12 = arith.constant dense<0.000000e+00> : vector<64x128xf32>
    %15 = tpu.matmul %14, %12, %cst_12 {dimension_numbers = #tpu.dot_dimension_numbers<[1], [0], [0], [1], [0, 0, 1, 1], [], []>} : vector<64x64xf32>, vector<64x128xf32>, vector<64x128xf32> -> vector<64x128xf32>
    %c0_13 = arith.constant 0 : index
    %c0_14 = arith.constant 0 : index
    %c0_15 = arith.constant 0 : index
    %16 = vector.load %arg5[%c0_13, %c0_14, %c0_15] : memref<6x64x1xf32, #tpu.memory_space<vmem>>, vector<1x64x1xf32>
    %17 = vector.shape_cast %16 : vector<1x64x1xf32> to vector<64x1xf32>
    %18 = vector.broadcast %17 : vector<64x1xf32> to vector<64x128xf32>
    %19 = arith.addf %15, %18 : vector<64x128xf32>
    %cst_16 = arith.constant 0.000000e+00 : f32
    %20 = vector.broadcast %cst_16 : f32 to vector<64x128xf32>
    %21 = arith.maximumf %19, %20 : vector<64x128xf32>
    %c0_17 = arith.constant 0 : index
    %c0_18 = arith.constant 0 : index
    %c0_19 = arith.constant 0 : index
    %22 = vector.load %arg6[%c0_17, %c0_18, %c0_19] : memref<6x4x64xf32, #tpu.memory_space<vmem>>, vector<1x4x64xf32>
    %23 = vector.shape_cast %22 : vector<1x4x64xf32> to vector<4x64xf32>
    %cst_20 = arith.constant dense<0.000000e+00> : vector<4x128xf32>
    %24 = tpu.matmul %23, %21, %cst_20 {dimension_numbers = #tpu.dot_dimension_numbers<[1], [0], [0], [1], [0, 0, 1, 1], [], []>} : vector<4x64xf32>, vector<64x128xf32>, vector<4x128xf32> -> vector<4x128xf32>
    %c0_21 = arith.constant 0 : index
    %c0_22 = arith.constant 0 : index
    %c0_23 = arith.constant 0 : index
    %25 = vector.load %arg7[%c0_21, %c0_22, %c0_23] : memref<6x4x1xf32, #tpu.memory_space<vmem>>, vector<1x4x1xf32>
    %26 = vector.shape_cast %25 : vector<1x4x1xf32> to vector<4x1xf32>
    %27 = vector.broadcast %26 : vector<4x1xf32> to vector<4x128xf32>
    %28 = arith.addf %24, %27 : vector<4x128xf32>
    %29 = math.tanh %28 : vector<4x128xf32>
    %c0_24 = arith.constant 0 : index
    %c0_25 = arith.constant 0 : index
    %c0_26 = arith.constant 0 : index
    %30 = vector.load %arg8[%c0_24, %c0_25, %c0_26] : memref<6x4x64xf32, #tpu.memory_space<vmem>>, vector<1x4x64xf32>
    %31 = vector.shape_cast %30 : vector<1x4x64xf32> to vector<4x64xf32>
    %cst_27 = arith.constant dense<0.000000e+00> : vector<4x128xf32>
    %32 = tpu.matmul %31, %21, %cst_27 {dimension_numbers = #tpu.dot_dimension_numbers<[1], [0], [0], [1], [0, 0, 1, 1], [], []>} : vector<4x64xf32>, vector<64x128xf32>, vector<4x128xf32> -> vector<4x128xf32>
    %c0_28 = arith.constant 0 : index
    %c0_29 = arith.constant 0 : index
    %c0_30 = arith.constant 0 : index
    %33 = vector.load %arg9[%c0_28, %c0_29, %c0_30] : memref<6x4x1xf32, #tpu.memory_space<vmem>>, vector<1x4x1xf32>
    %34 = vector.shape_cast %33 : vector<1x4x1xf32> to vector<4x1xf32>
    %35 = vector.broadcast %34 : vector<4x1xf32> to vector<4x128xf32>
    %36 = arith.addf %32, %35 : vector<4x128xf32>
    %37 = math.exp %29 : vector<4x128xf32>
    %38 = arith.mulf %2, %37 : vector<4x128xf32>
    %39 = arith.addf %38, %36 : vector<4x128xf32>
    %40 = arith.addf %3, %29 : vector<4x128xf32>
    %c1 = arith.constant 1 : index
    %c0_31 = arith.constant 0 : index
    %c0_32 = arith.constant 0 : index
    %41 = vector.load %arg2[%c1, %c0_31, %c0_32] : memref<6x64x4xf32, #tpu.memory_space<vmem>>, vector<1x64x4xf32>
    %42 = vector.shape_cast %41 : vector<1x64x4xf32> to vector<64x4xf32>
    %cst_33 = arith.constant dense<0.000000e+00> : vector<64x128xf32>
    %43 = tpu.matmul %42, %39, %cst_33 {dimension_numbers = #tpu.dot_dimension_numbers<[1], [0], [0], [1], [0, 0, 1, 1], [], []>} : vector<64x4xf32>, vector<4x128xf32>, vector<64x128xf32> -> vector<64x128xf32>
    %c1_34 = arith.constant 1 : index
    %c0_35 = arith.constant 0 : index
    %c0_36 = arith.constant 0 : index
    %44 = vector.load %arg3[%c1_34, %c0_35, %c0_36] : memref<6x64x1xf32, #tpu.memory_space<vmem>>, vector<1x64x1xf32>
    %45 = vector.shape_cast %44 : vector<1x64x1xf32> to vector<64x1xf32>
    %46 = vector.broadcast %45 : vector<64x1xf32> to vector<64x128xf32>
    %47 = arith.addf %43, %46 : vector<64x128xf32>
    %cst_37 = arith.constant 0.000000e+00 : f32
    %48 = vector.broadcast %cst_37 : f32 to vector<64x128xf32>
    %49 = arith.maximumf %47, %48 : vector<64x128xf32>
    %c1_38 = arith.constant 1 : index
    %c0_39 = arith.constant 0 : index
    %c0_40 = arith.constant 0 : index
    %50 = vector.load %arg4[%c1_38, %c0_39, %c0_40] : memref<6x64x64xf32, #tpu.memory_space<vmem>>, vector<1x64x64xf32>
    %51 = vector.shape_cast %50 : vector<1x64x64xf32> to vector<64x64xf32>
    %cst_41 = arith.constant dense<0.000000e+00> : vector<64x128xf32>
    %52 = tpu.matmul %51, %49, %cst_41 {dimension_numbers = #tpu.dot_dimension_numbers<[1], [0], [0], [1], [0, 0, 1, 1], [], []>} : vector<64x64xf32>, vector<64x128xf32>, vector<64x128xf32> -> vector<64x128xf32>
    %c1_42 = arith.constant 1 : index
    %c0_43 = arith.constant 0 : index
    %c0_44 = arith.constant 0 : index
    %53 = vector.load %arg5[%c1_42, %c0_43, %c0_44] : memref<6x64x1xf32, #tpu.memory_space<vmem>>, vector<1x64x1xf32>
    %54 = vector.shape_cast %53 : vector<1x64x1xf32> to vector<64x1xf32>
    %55 = vector.broadcast %54 : vector<64x1xf32> to vector<64x128xf32>
    %56 = arith.addf %52, %55 : vector<64x128xf32>
    %cst_45 = arith.constant 0.000000e+00 : f32
    %57 = vector.broadcast %cst_45 : f32 to vector<64x128xf32>
    %58 = arith.maximumf %56, %57 : vector<64x128xf32>
    %c1_46 = arith.constant 1 : index
    %c0_47 = arith.constant 0 : index
    %c0_48 = arith.constant 0 : index
    %59 = vector.load %arg6[%c1_46, %c0_47, %c0_48] : memref<6x4x64xf32, #tpu.memory_space<vmem>>, vector<1x4x64xf32>
    %60 = vector.shape_cast %59 : vector<1x4x64xf32> to vector<4x64xf32>
    %cst_49 = arith.constant dense<0.000000e+00> : vector<4x128xf32>
    %61 = tpu.matmul %60, %58, %cst_49 {dimension_numbers = #tpu.dot_dimension_numbers<[1], [0], [0], [1], [0, 0, 1, 1], [], []>} : vector<4x64xf32>, vector<64x128xf32>, vector<4x128xf32> -> vector<4x128xf32>
    %c1_50 = arith.constant 1 : index
    %c0_51 = arith.constant 0 : index
    %c0_52 = arith.constant 0 : index
    %62 = vector.load %arg7[%c1_50, %c0_51, %c0_52] : memref<6x4x1xf32, #tpu.memory_space<vmem>>, vector<1x4x1xf32>
    %63 = vector.shape_cast %62 : vector<1x4x1xf32> to vector<4x1xf32>
    %64 = vector.broadcast %63 : vector<4x1xf32> to vector<4x128xf32>
    %65 = arith.addf %61, %64 : vector<4x128xf32>
    %66 = math.tanh %65 : vector<4x128xf32>
    %c1_53 = arith.constant 1 : index
    %c0_54 = arith.constant 0 : index
    %c0_55 = arith.constant 0 : index
    %67 = vector.load %arg8[%c1_53, %c0_54, %c0_55] : memref<6x4x64xf32, #tpu.memory_space<vmem>>, vector<1x4x64xf32>
    %68 = vector.shape_cast %67 : vector<1x4x64xf32> to vector<4x64xf32>
    %cst_56 = arith.constant dense<0.000000e+00> : vector<4x128xf32>
    %69 = tpu.matmul %68, %58, %cst_56 {dimension_numbers = #tpu.dot_dimension_numbers<[1], [0], [0], [1], [0, 0, 1, 1], [], []>} : vector<4x64xf32>, vector<64x128xf32>, vector<4x128xf32> -> vector<4x128xf32>
    %c1_57 = arith.constant 1 : index
    %c0_58 = arith.constant 0 : index
    %c0_59 = arith.constant 0 : index
    %70 = vector.load %arg9[%c1_57, %c0_58, %c0_59] : memref<6x4x1xf32, #tpu.memory_space<vmem>>, vector<1x4x1xf32>
    %71 = vector.shape_cast %70 : vector<1x4x1xf32> to vector<4x1xf32>
    %72 = vector.broadcast %71 : vector<4x1xf32> to vector<4x128xf32>
    %73 = arith.addf %69, %72 : vector<4x128xf32>
    %74 = math.exp %66 : vector<4x128xf32>
    %75 = arith.mulf %1, %74 : vector<4x128xf32>
    %76 = arith.addf %75, %73 : vector<4x128xf32>
    %77 = arith.addf %40, %66 : vector<4x128xf32>
    %c2 = arith.constant 2 : index
    %c0_60 = arith.constant 0 : index
    %c0_61 = arith.constant 0 : index
    %78 = vector.load %arg2[%c2, %c0_60, %c0_61] : memref<6x64x4xf32, #tpu.memory_space<vmem>>, vector<1x64x4xf32>
    %79 = vector.shape_cast %78 : vector<1x64x4xf32> to vector<64x4xf32>
    %cst_62 = arith.constant dense<0.000000e+00> : vector<64x128xf32>
    %80 = tpu.matmul %79, %76, %cst_62 {dimension_numbers = #tpu.dot_dimension_numbers<[1], [0], [0], [1], [0, 0, 1, 1], [], []>} : vector<64x4xf32>, vector<4x128xf32>, vector<64x128xf32> -> vector<64x128xf32>
    %c2_63 = arith.constant 2 : index
    %c0_64 = arith.constant 0 : index
    %c0_65 = arith.constant 0 : index
    %81 = vector.load %arg3[%c2_63, %c0_64, %c0_65] : memref<6x64x1xf32, #tpu.memory_space<vmem>>, vector<1x64x1xf32>
    %82 = vector.shape_cast %81 : vector<1x64x1xf32> to vector<64x1xf32>
    %83 = vector.broadcast %82 : vector<64x1xf32> to vector<64x128xf32>
    %84 = arith.addf %80, %83 : vector<64x128xf32>
    %cst_66 = arith.constant 0.000000e+00 : f32
    %85 = vector.broadcast %cst_66 : f32 to vector<64x128xf32>
    %86 = arith.maximumf %84, %85 : vector<64x128xf32>
    %c2_67 = arith.constant 2 : index
    %c0_68 = arith.constant 0 : index
    %c0_69 = arith.constant 0 : index
    %87 = vector.load %arg4[%c2_67, %c0_68, %c0_69] : memref<6x64x64xf32, #tpu.memory_space<vmem>>, vector<1x64x64xf32>
    %88 = vector.shape_cast %87 : vector<1x64x64xf32> to vector<64x64xf32>
    %cst_70 = arith.constant dense<0.000000e+00> : vector<64x128xf32>
    %89 = tpu.matmul %88, %86, %cst_70 {dimension_numbers = #tpu.dot_dimension_numbers<[1], [0], [0], [1], [0, 0, 1, 1], [], []>} : vector<64x64xf32>, vector<64x128xf32>, vector<64x128xf32> -> vector<64x128xf32>
    %c2_71 = arith.constant 2 : index
    %c0_72 = arith.constant 0 : index
    %c0_73 = arith.constant 0 : index
    %90 = vector.load %arg5[%c2_71, %c0_72, %c0_73] : memref<6x64x1xf32, #tpu.memory_space<vmem>>, vector<1x64x1xf32>
    %91 = vector.shape_cast %90 : vector<1x64x1xf32> to vector<64x1xf32>
    %92 = vector.broadcast %91 : vector<64x1xf32> to vector<64x128xf32>
    %93 = arith.addf %89, %92 : vector<64x128xf32>
    %cst_74 = arith.constant 0.000000e+00 : f32
    %94 = vector.broadcast %cst_74 : f32 to vector<64x128xf32>
    %95 = arith.maximumf %93, %94 : vector<64x128xf32>
    %c2_75 = arith.constant 2 : index
    %c0_76 = arith.constant 0 : index
    %c0_77 = arith.constant 0 : index
    %96 = vector.load %arg6[%c2_75, %c0_76, %c0_77] : memref<6x4x64xf32, #tpu.memory_space<vmem>>, vector<1x4x64xf32>
    %97 = vector.shape_cast %96 : vector<1x4x64xf32> to vector<4x64xf32>
    %cst_78 = arith.constant dense<0.000000e+00> : vector<4x128xf32>
    %98 = tpu.matmul %97, %95, %cst_78 {dimension_numbers = #tpu.dot_dimension_numbers<[1], [0], [0], [1], [0, 0, 1, 1], [], []>} : vector<4x64xf32>, vector<64x128xf32>, vector<4x128xf32> -> vector<4x128xf32>
    %c2_79 = arith.constant 2 : index
    %c0_80 = arith.constant 0 : index
    %c0_81 = arith.constant 0 : index
    %99 = vector.load %arg7[%c2_79, %c0_80, %c0_81] : memref<6x4x1xf32, #tpu.memory_space<vmem>>, vector<1x4x1xf32>
    %100 = vector.shape_cast %99 : vector<1x4x1xf32> to vector<4x1xf32>
    %101 = vector.broadcast %100 : vector<4x1xf32> to vector<4x128xf32>
    %102 = arith.addf %98, %101 : vector<4x128xf32>
    %103 = math.tanh %102 : vector<4x128xf32>
    %c2_82 = arith.constant 2 : index
    %c0_83 = arith.constant 0 : index
    %c0_84 = arith.constant 0 : index
    %104 = vector.load %arg8[%c2_82, %c0_83, %c0_84] : memref<6x4x64xf32, #tpu.memory_space<vmem>>, vector<1x4x64xf32>
    %105 = vector.shape_cast %104 : vector<1x4x64xf32> to vector<4x64xf32>
    %cst_85 = arith.constant dense<0.000000e+00> : vector<4x128xf32>
    %106 = tpu.matmul %105, %95, %cst_85 {dimension_numbers = #tpu.dot_dimension_numbers<[1], [0], [0], [1], [0, 0, 1, 1], [], []>} : vector<4x64xf32>, vector<64x128xf32>, vector<4x128xf32> -> vector<4x128xf32>
    %c2_86 = arith.constant 2 : index
    %c0_87 = arith.constant 0 : index
    %c0_88 = arith.constant 0 : index
    %107 = vector.load %arg9[%c2_86, %c0_87, %c0_88] : memref<6x4x1xf32, #tpu.memory_space<vmem>>, vector<1x4x1xf32>
    %108 = vector.shape_cast %107 : vector<1x4x1xf32> to vector<4x1xf32>
    %109 = vector.broadcast %108 : vector<4x1xf32> to vector<4x128xf32>
    %110 = arith.addf %106, %109 : vector<4x128xf32>
    %111 = math.exp %103 : vector<4x128xf32>
    %112 = arith.mulf %39, %111 : vector<4x128xf32>
    %113 = arith.addf %112, %110 : vector<4x128xf32>
    %114 = arith.addf %77, %103 : vector<4x128xf32>
    %c3 = arith.constant 3 : index
    %c0_89 = arith.constant 0 : index
    %c0_90 = arith.constant 0 : index
    %115 = vector.load %arg2[%c3, %c0_89, %c0_90] : memref<6x64x4xf32, #tpu.memory_space<vmem>>, vector<1x64x4xf32>
    %116 = vector.shape_cast %115 : vector<1x64x4xf32> to vector<64x4xf32>
    %cst_91 = arith.constant dense<0.000000e+00> : vector<64x128xf32>
    %117 = tpu.matmul %116, %113, %cst_91 {dimension_numbers = #tpu.dot_dimension_numbers<[1], [0], [0], [1], [0, 0, 1, 1], [], []>} : vector<64x4xf32>, vector<4x128xf32>, vector<64x128xf32> -> vector<64x128xf32>
    %c3_92 = arith.constant 3 : index
    %c0_93 = arith.constant 0 : index
    %c0_94 = arith.constant 0 : index
    %118 = vector.load %arg3[%c3_92, %c0_93, %c0_94] : memref<6x64x1xf32, #tpu.memory_space<vmem>>, vector<1x64x1xf32>
    %119 = vector.shape_cast %118 : vector<1x64x1xf32> to vector<64x1xf32>
    %120 = vector.broadcast %119 : vector<64x1xf32> to vector<64x128xf32>
    %121 = arith.addf %117, %120 : vector<64x128xf32>
    %cst_95 = arith.constant 0.000000e+00 : f32
    %122 = vector.broadcast %cst_95 : f32 to vector<64x128xf32>
    %123 = arith.maximumf %121, %122 : vector<64x128xf32>
    %c3_96 = arith.constant 3 : index
    %c0_97 = arith.constant 0 : index
    %c0_98 = arith.constant 0 : index
    %124 = vector.load %arg4[%c3_96, %c0_97, %c0_98] : memref<6x64x64xf32, #tpu.memory_space<vmem>>, vector<1x64x64xf32>
    %125 = vector.shape_cast %124 : vector<1x64x64xf32> to vector<64x64xf32>
    %cst_99 = arith.constant dense<0.000000e+00> : vector<64x128xf32>
    %126 = tpu.matmul %125, %123, %cst_99 {dimension_numbers = #tpu.dot_dimension_numbers<[1], [0], [0], [1], [0, 0, 1, 1], [], []>} : vector<64x64xf32>, vector<64x128xf32>, vector<64x128xf32> -> vector<64x128xf32>
    %c3_100 = arith.constant 3 : index
    %c0_101 = arith.constant 0 : index
    %c0_102 = arith.constant 0 : index
    %127 = vector.load %arg5[%c3_100, %c0_101, %c0_102] : memref<6x64x1xf32, #tpu.memory_space<vmem>>, vector<1x64x1xf32>
    %128 = vector.shape_cast %127 : vector<1x64x1xf32> to vector<64x1xf32>
    %129 = vector.broadcast %128 : vector<64x1xf32> to vector<64x128xf32>
    %130 = arith.addf %126, %129 : vector<64x128xf32>
    %cst_103 = arith.constant 0.000000e+00 : f32
    %131 = vector.broadcast %cst_103 : f32 to vector<64x128xf32>
    %132 = arith.maximumf %130, %131 : vector<64x128xf32>
    %c3_104 = arith.constant 3 : index
    %c0_105 = arith.constant 0 : index
    %c0_106 = arith.constant 0 : index
    %133 = vector.load %arg6[%c3_104, %c0_105, %c0_106] : memref<6x4x64xf32, #tpu.memory_space<vmem>>, vector<1x4x64xf32>
    %134 = vector.shape_cast %133 : vector<1x4x64xf32> to vector<4x64xf32>
    %cst_107 = arith.constant dense<0.000000e+00> : vector<4x128xf32>
    %135 = tpu.matmul %134, %132, %cst_107 {dimension_numbers = #tpu.dot_dimension_numbers<[1], [0], [0], [1], [0, 0, 1, 1], [], []>} : vector<4x64xf32>, vector<64x128xf32>, vector<4x128xf32> -> vector<4x128xf32>
    %c3_108 = arith.constant 3 : index
    %c0_109 = arith.constant 0 : index
    %c0_110 = arith.constant 0 : index
    %136 = vector.load %arg7[%c3_108, %c0_109, %c0_110] : memref<6x4x1xf32, #tpu.memory_space<vmem>>, vector<1x4x1xf32>
    %137 = vector.shape_cast %136 : vector<1x4x1xf32> to vector<4x1xf32>
    %138 = vector.broadcast %137 : vector<4x1xf32> to vector<4x128xf32>
    %139 = arith.addf %135, %138 : vector<4x128xf32>
    %140 = math.tanh %139 : vector<4x128xf32>
    %c3_111 = arith.constant 3 : index
    %c0_112 = arith.constant 0 : index
    %c0_113 = arith.constant 0 : index
    %141 = vector.load %arg8[%c3_111, %c0_112, %c0_113] : memref<6x4x64xf32, #tpu.memory_space<vmem>>, vector<1x4x64xf32>
    %142 = vector.shape_cast %141 : vector<1x4x64xf32> to vector<4x64xf32>
    %cst_114 = arith.constant dense<0.000000e+00> : vector<4x128xf32>
    %143 = tpu.matmul %142, %132, %cst_114 {dimension_numbers = #tpu.dot_dimension_numbers<[1], [0], [0], [1], [0, 0, 1, 1], [], []>} : vector<4x64xf32>, vector<64x128xf32>, vector<4x128xf32> -> vector<4x128xf32>
    %c3_115 = arith.constant 3 : index
    %c0_116 = arith.constant 0 : index
    %c0_117 = arith.constant 0 : index
    %144 = vector.load %arg9[%c3_115, %c0_116, %c0_117] : memref<6x4x1xf32, #tpu.memory_space<vmem>>, vector<1x4x1xf32>
    %145 = vector.shape_cast %144 : vector<1x4x1xf32> to vector<4x1xf32>
    %146 = vector.broadcast %145 : vector<4x1xf32> to vector<4x128xf32>
    %147 = arith.addf %143, %146 : vector<4x128xf32>
    %148 = math.exp %140 : vector<4x128xf32>
    %149 = arith.mulf %76, %148 : vector<4x128xf32>
    %150 = arith.addf %149, %147 : vector<4x128xf32>
    %151 = arith.addf %114, %140 : vector<4x128xf32>
    %c4 = arith.constant 4 : index
    %c0_118 = arith.constant 0 : index
    %c0_119 = arith.constant 0 : index
    %152 = vector.load %arg2[%c4, %c0_118, %c0_119] : memref<6x64x4xf32, #tpu.memory_space<vmem>>, vector<1x64x4xf32>
    %153 = vector.shape_cast %152 : vector<1x64x4xf32> to vector<64x4xf32>
    %cst_120 = arith.constant dense<0.000000e+00> : vector<64x128xf32>
    %154 = tpu.matmul %153, %150, %cst_120 {dimension_numbers = #tpu.dot_dimension_numbers<[1], [0], [0], [1], [0, 0, 1, 1], [], []>} : vector<64x4xf32>, vector<4x128xf32>, vector<64x128xf32> -> vector<64x128xf32>
    %c4_121 = arith.constant 4 : index
    %c0_122 = arith.constant 0 : index
    %c0_123 = arith.constant 0 : index
    %155 = vector.load %arg3[%c4_121, %c0_122, %c0_123] : memref<6x64x1xf32, #tpu.memory_space<vmem>>, vector<1x64x1xf32>
    %156 = vector.shape_cast %155 : vector<1x64x1xf32> to vector<64x1xf32>
    %157 = vector.broadcast %156 : vector<64x1xf32> to vector<64x128xf32>
    %158 = arith.addf %154, %157 : vector<64x128xf32>
    %cst_124 = arith.constant 0.000000e+00 : f32
    %159 = vector.broadcast %cst_124 : f32 to vector<64x128xf32>
    %160 = arith.maximumf %158, %159 : vector<64x128xf32>
    %c4_125 = arith.constant 4 : index
    %c0_126 = arith.constant 0 : index
    %c0_127 = arith.constant 0 : index
    %161 = vector.load %arg4[%c4_125, %c0_126, %c0_127] : memref<6x64x64xf32, #tpu.memory_space<vmem>>, vector<1x64x64xf32>
    %162 = vector.shape_cast %161 : vector<1x64x64xf32> to vector<64x64xf32>
    %cst_128 = arith.constant dense<0.000000e+00> : vector<64x128xf32>
    %163 = tpu.matmul %162, %160, %cst_128 {dimension_numbers = #tpu.dot_dimension_numbers<[1], [0], [0], [1], [0, 0, 1, 1], [], []>} : vector<64x64xf32>, vector<64x128xf32>, vector<64x128xf32> -> vector<64x128xf32>
    %c4_129 = arith.constant 4 : index
    %c0_130 = arith.constant 0 : index
    %c0_131 = arith.constant 0 : index
    %164 = vector.load %arg5[%c4_129, %c0_130, %c0_131] : memref<6x64x1xf32, #tpu.memory_space<vmem>>, vector<1x64x1xf32>
    %165 = vector.shape_cast %164 : vector<1x64x1xf32> to vector<64x1xf32>
    %166 = vector.broadcast %165 : vector<64x1xf32> to vector<64x128xf32>
    %167 = arith.addf %163, %166 : vector<64x128xf32>
    %cst_132 = arith.constant 0.000000e+00 : f32
    %168 = vector.broadcast %cst_132 : f32 to vector<64x128xf32>
    %169 = arith.maximumf %167, %168 : vector<64x128xf32>
    %c4_133 = arith.constant 4 : index
    %c0_134 = arith.constant 0 : index
    %c0_135 = arith.constant 0 : index
    %170 = vector.load %arg6[%c4_133, %c0_134, %c0_135] : memref<6x4x64xf32, #tpu.memory_space<vmem>>, vector<1x4x64xf32>
    %171 = vector.shape_cast %170 : vector<1x4x64xf32> to vector<4x64xf32>
    %cst_136 = arith.constant dense<0.000000e+00> : vector<4x128xf32>
    %172 = tpu.matmul %171, %169, %cst_136 {dimension_numbers = #tpu.dot_dimension_numbers<[1], [0], [0], [1], [0, 0, 1, 1], [], []>} : vector<4x64xf32>, vector<64x128xf32>, vector<4x128xf32> -> vector<4x128xf32>
    %c4_137 = arith.constant 4 : index
    %c0_138 = arith.constant 0 : index
    %c0_139 = arith.constant 0 : index
    %173 = vector.load %arg7[%c4_137, %c0_138, %c0_139] : memref<6x4x1xf32, #tpu.memory_space<vmem>>, vector<1x4x1xf32>
    %174 = vector.shape_cast %173 : vector<1x4x1xf32> to vector<4x1xf32>
    %175 = vector.broadcast %174 : vector<4x1xf32> to vector<4x128xf32>
    %176 = arith.addf %172, %175 : vector<4x128xf32>
    %177 = math.tanh %176 : vector<4x128xf32>
    %c4_140 = arith.constant 4 : index
    %c0_141 = arith.constant 0 : index
    %c0_142 = arith.constant 0 : index
    %178 = vector.load %arg8[%c4_140, %c0_141, %c0_142] : memref<6x4x64xf32, #tpu.memory_space<vmem>>, vector<1x4x64xf32>
    %179 = vector.shape_cast %178 : vector<1x4x64xf32> to vector<4x64xf32>
    %cst_143 = arith.constant dense<0.000000e+00> : vector<4x128xf32>
    %180 = tpu.matmul %179, %169, %cst_143 {dimension_numbers = #tpu.dot_dimension_numbers<[1], [0], [0], [1], [0, 0, 1, 1], [], []>} : vector<4x64xf32>, vector<64x128xf32>, vector<4x128xf32> -> vector<4x128xf32>
    %c4_144 = arith.constant 4 : index
    %c0_145 = arith.constant 0 : index
    %c0_146 = arith.constant 0 : index
    %181 = vector.load %arg9[%c4_144, %c0_145, %c0_146] : memref<6x4x1xf32, #tpu.memory_space<vmem>>, vector<1x4x1xf32>
    %182 = vector.shape_cast %181 : vector<1x4x1xf32> to vector<4x1xf32>
    %183 = vector.broadcast %182 : vector<4x1xf32> to vector<4x128xf32>
    %184 = arith.addf %180, %183 : vector<4x128xf32>
    %185 = math.exp %177 : vector<4x128xf32>
    %186 = arith.mulf %113, %185 : vector<4x128xf32>
    %187 = arith.addf %186, %184 : vector<4x128xf32>
    %188 = arith.addf %151, %177 : vector<4x128xf32>
    %c5 = arith.constant 5 : index
    %c0_147 = arith.constant 0 : index
    %c0_148 = arith.constant 0 : index
    %189 = vector.load %arg2[%c5, %c0_147, %c0_148] : memref<6x64x4xf32, #tpu.memory_space<vmem>>, vector<1x64x4xf32>
    %190 = vector.shape_cast %189 : vector<1x64x4xf32> to vector<64x4xf32>
    %cst_149 = arith.constant dense<0.000000e+00> : vector<64x128xf32>
    %191 = tpu.matmul %190, %187, %cst_149 {dimension_numbers = #tpu.dot_dimension_numbers<[1], [0], [0], [1], [0, 0, 1, 1], [], []>} : vector<64x4xf32>, vector<4x128xf32>, vector<64x128xf32> -> vector<64x128xf32>
    %c5_150 = arith.constant 5 : index
    %c0_151 = arith.constant 0 : index
    %c0_152 = arith.constant 0 : index
    %192 = vector.load %arg3[%c5_150, %c0_151, %c0_152] : memref<6x64x1xf32, #tpu.memory_space<vmem>>, vector<1x64x1xf32>
    %193 = vector.shape_cast %192 : vector<1x64x1xf32> to vector<64x1xf32>
    %194 = vector.broadcast %193 : vector<64x1xf32> to vector<64x128xf32>
    %195 = arith.addf %191, %194 : vector<64x128xf32>
    %cst_153 = arith.constant 0.000000e+00 : f32
    %196 = vector.broadcast %cst_153 : f32 to vector<64x128xf32>
    %197 = arith.maximumf %195, %196 : vector<64x128xf32>
    %c5_154 = arith.constant 5 : index
    %c0_155 = arith.constant 0 : index
    %c0_156 = arith.constant 0 : index
    %198 = vector.load %arg4[%c5_154, %c0_155, %c0_156] : memref<6x64x64xf32, #tpu.memory_space<vmem>>, vector<1x64x64xf32>
    %199 = vector.shape_cast %198 : vector<1x64x64xf32> to vector<64x64xf32>
    %cst_157 = arith.constant dense<0.000000e+00> : vector<64x128xf32>
    %200 = tpu.matmul %199, %197, %cst_157 {dimension_numbers = #tpu.dot_dimension_numbers<[1], [0], [0], [1], [0, 0, 1, 1], [], []>} : vector<64x64xf32>, vector<64x128xf32>, vector<64x128xf32> -> vector<64x128xf32>
    %c5_158 = arith.constant 5 : index
    %c0_159 = arith.constant 0 : index
    %c0_160 = arith.constant 0 : index
    %201 = vector.load %arg5[%c5_158, %c0_159, %c0_160] : memref<6x64x1xf32, #tpu.memory_space<vmem>>, vector<1x64x1xf32>
    %202 = vector.shape_cast %201 : vector<1x64x1xf32> to vector<64x1xf32>
    %203 = vector.broadcast %202 : vector<64x1xf32> to vector<64x128xf32>
    %204 = arith.addf %200, %203 : vector<64x128xf32>
    %cst_161 = arith.constant 0.000000e+00 : f32
    %205 = vector.broadcast %cst_161 : f32 to vector<64x128xf32>
    %206 = arith.maximumf %204, %205 : vector<64x128xf32>
    %c5_162 = arith.constant 5 : index
    %c0_163 = arith.constant 0 : index
    %c0_164 = arith.constant 0 : index
    %207 = vector.load %arg6[%c5_162, %c0_163, %c0_164] : memref<6x4x64xf32, #tpu.memory_space<vmem>>, vector<1x4x64xf32>
    %208 = vector.shape_cast %207 : vector<1x4x64xf32> to vector<4x64xf32>
    %cst_165 = arith.constant dense<0.000000e+00> : vector<4x128xf32>
    %209 = tpu.matmul %208, %206, %cst_165 {dimension_numbers = #tpu.dot_dimension_numbers<[1], [0], [0], [1], [0, 0, 1, 1], [], []>} : vector<4x64xf32>, vector<64x128xf32>, vector<4x128xf32> -> vector<4x128xf32>
    %c5_166 = arith.constant 5 : index
    %c0_167 = arith.constant 0 : index
    %c0_168 = arith.constant 0 : index
    %210 = vector.load %arg7[%c5_166, %c0_167, %c0_168] : memref<6x4x1xf32, #tpu.memory_space<vmem>>, vector<1x4x1xf32>
    %211 = vector.shape_cast %210 : vector<1x4x1xf32> to vector<4x1xf32>
    %212 = vector.broadcast %211 : vector<4x1xf32> to vector<4x128xf32>
    %213 = arith.addf %209, %212 : vector<4x128xf32>
    %214 = math.tanh %213 : vector<4x128xf32>
    %c5_169 = arith.constant 5 : index
    %c0_170 = arith.constant 0 : index
    %c0_171 = arith.constant 0 : index
    %215 = vector.load %arg8[%c5_169, %c0_170, %c0_171] : memref<6x4x64xf32, #tpu.memory_space<vmem>>, vector<1x4x64xf32>
    %216 = vector.shape_cast %215 : vector<1x4x64xf32> to vector<4x64xf32>
    %cst_172 = arith.constant dense<0.000000e+00> : vector<4x128xf32>
    %217 = tpu.matmul %216, %206, %cst_172 {dimension_numbers = #tpu.dot_dimension_numbers<[1], [0], [0], [1], [0, 0, 1, 1], [], []>} : vector<4x64xf32>, vector<64x128xf32>, vector<4x128xf32> -> vector<4x128xf32>
    %c5_173 = arith.constant 5 : index
    %c0_174 = arith.constant 0 : index
    %c0_175 = arith.constant 0 : index
    %218 = vector.load %arg9[%c5_173, %c0_174, %c0_175] : memref<6x4x1xf32, #tpu.memory_space<vmem>>, vector<1x4x1xf32>
    %219 = vector.shape_cast %218 : vector<1x4x1xf32> to vector<4x1xf32>
    %220 = vector.broadcast %219 : vector<4x1xf32> to vector<4x128xf32>
    %221 = arith.addf %217, %220 : vector<4x128xf32>
    %222 = math.exp %214 : vector<4x128xf32>
    %223 = arith.mulf %150, %222 : vector<4x128xf32>
    %224 = arith.addf %223, %221 : vector<4x128xf32>
    %225 = arith.addf %188, %214 : vector<4x128xf32>
    %226 = tpu.concatenate %224, %187 in 0 : vector<4x128xf32>, vector<4x128xf32> -> vector<8x128xf32>
    %c0_176 = arith.constant 0 : index
    %c0_177 = arith.constant 0 : index
    %227 = vector.load %arg10[%c0_176, %c0_177] : memref<8x128xf32, #tpu.memory_space<vmem>>, vector<8x128xf32>
    tpu.vector_store %arg10[%c0_176, %c0_177], %226 {strides = array<i32>} : memref<8x128xf32, #tpu.memory_space<vmem>>, vector<8x128xf32>,
    %cst_178 = arith.constant dense<0.000000e+00> : vector<128xf32>
    %228 = vector.multi_reduction <add>, %225, %cst_178 [0] : vector<4x128xf32> to vector<128xf32>
    %229 = vector.shape_cast %228 : vector<128xf32> to vector<1x128xf32>
    %c0_179 = arith.constant 0 : index
    %c0_180 = arith.constant 0 : index
    %230 = vector.load %arg11[%c0_179, %c0_180] : memref<1x128xf32, #tpu.memory_space<vmem>>, vector<1x128xf32>
    tpu.vector_store %arg11[%c0_179, %c0_180], %229 {strides = array<i32>} : memref<1x128xf32, #tpu.memory_space<vmem>>, vector<1x128xf32>,
    return
  }
  func.func @transform_0(%arg0: i32) -> (i32, i32) {
    %c0_i32 = arith.constant 0 : i32
    %c0_i32_0 = arith.constant 0 : i32
    return %c0_i32, %arg0 : i32, i32
  }
  func.func @transform_1(%arg0: i32) -> (i32, i32, i32) {
    %c0_i32 = arith.constant 0 : i32
    %c0_i32_0 = arith.constant 0 : i32
    %c0_i32_1 = arith.constant 0 : i32
    %c0_i32_2 = arith.constant 0 : i32
    return %c0_i32, %c0_i32_0, %c0_i32_1 : i32, i32, i32
  }
  func.func @transform_2(%arg0: i32) -> (i32, i32, i32) {
    %c0_i32 = arith.constant 0 : i32
    %c0_i32_0 = arith.constant 0 : i32
    %c0_i32_1 = arith.constant 0 : i32
    %c0_i32_2 = arith.constant 0 : i32
    return %c0_i32, %c0_i32_0, %c0_i32_1 : i32, i32, i32
  }
  func.func @transform_3(%arg0: i32) -> (i32, i32, i32) {
    %c0_i32 = arith.constant 0 : i32
    %c0_i32_0 = arith.constant 0 : i32
    %c0_i32_1 = arith.constant 0 : i32
    %c0_i32_2 = arith.constant 0 : i32
    return %c0_i32, %c0_i32_0, %c0_i32_1 : i32, i32, i32
  }
  func.func @transform_4(%arg0: i32) -> (i32, i32, i32) {
    %c0_i32 = arith.constant 0 : i32
    %c0_i32_0 = arith.constant 0 : i32
    %c0_i32_1 = arith.constant 0 : i32
    %c0_i32_2 = arith.constant 0 : i32
    return %c0_i32, %c0_i32_0, %c0_i32_1 : i32, i32, i32
  }
  func.func @transform_5(%arg0: i32) -> (i32, i32, i32) {
    %c0_i32 = arith.constant 0 : i32
    %c0_i32_0 = arith.constant 0 : i32
    %c0_i32_1 = arith.constant 0 : i32
    %c0_i32_2 = arith.constant 0 : i32
    return %c0_i32, %c0_i32_0, %c0_i32_1 : i32, i32, i32
  }
  func.func @transform_6(%arg0: i32) -> (i32, i32, i32) {
    %c0_i32 = arith.constant 0 : i32
    %c0_i32_0 = arith.constant 0 : i32
    %c0_i32_1 = arith.constant 0 : i32
    %c0_i32_2 = arith.constant 0 : i32
    return %c0_i32, %c0_i32_0, %c0_i32_1 : i32, i32, i32
  }
  func.func @transform_7(%arg0: i32) -> (i32, i32, i32) {
    %c0_i32 = arith.constant 0 : i32
    %c0_i32_0 = arith.constant 0 : i32
    %c0_i32_1 = arith.constant 0 : i32
    %c0_i32_2 = arith.constant 0 : i32
    return %c0_i32, %c0_i32_0, %c0_i32_1 : i32, i32, i32
  }
  func.func @transform_8(%arg0: i32) -> (i32, i32, i32) {
    %c0_i32 = arith.constant 0 : i32
    %c0_i32_0 = arith.constant 0 : i32
    %c0_i32_1 = arith.constant 0 : i32
    %c0_i32_2 = arith.constant 0 : i32
    return %c0_i32, %c0_i32_0, %c0_i32_1 : i32, i32, i32
  }
  func.func @transform_9(%arg0: i32) -> (i32, i32) {
    %c0_i32 = arith.constant 0 : i32
    %c0_i32_0 = arith.constant 0 : i32
    return %c0_i32, %arg0 : i32, i32
  }
  func.func @transform_10(%arg0: i32) -> (i32, i32) {
    %c0_i32 = arith.constant 0 : i32
    %c0_i32_0 = arith.constant 0 : i32
    return %c0_i32, %arg0 : i32, i32
  }
}

</mosaic_0001>

<llo_original>
// kernel: tpu_custom_call.1
$region0: #{tpu_custom_call.1}
  #allocation0 [shape = 'u32[]', space=smem, size = 0x4, offset = 0x4, fixed_abs, tag = 'smem constant byte address 0x4 - core index']
  #allocation1 [shape = 'u32[144,128]{1,0:T(1,128)}', space=vmem, size = 0x12000, scoped, tag = 'internal scratch']
  %s0 = inlined_call_operand.vmem [shape: f32[8,256], index: 0, kind: input, shape index: {}]
  %s1 = inlined_call_operand.vmem [shape: f32[6,64,4], index: 1, kind: input, shape index: {}]
  %s2 = inlined_call_operand.vmem [shape: f32[6,64,1], index: 2, kind: input, shape index: {}]
  %s3 = inlined_call_operand.vmem [shape: f32[6,64,64], index: 3, kind: input, shape index: {}]
  %s4 = inlined_call_operand.vmem [shape: f32[6,64,1], index: 4, kind: input, shape index: {}]
  %s5 = inlined_call_operand.vmem [shape: f32[6,4,64], index: 5, kind: input, shape index: {}]
  %s6 = inlined_call_operand.vmem [shape: f32[6,4,1], index: 6, kind: input, shape index: {}]
  %s7 = inlined_call_operand.vmem [shape: f32[6,4,64], index: 7, kind: input, shape index: {}]
  %s8 = inlined_call_operand.vmem [shape: f32[6,4,1], index: 8, kind: input, shape index: {}]
  %s9 = inlined_call_operand.hbm [shape: f32[8,256], index: 9, kind: output, shape index: {0}]
  %s10 = inlined_call_operand.hbm [shape: f32[1,256], index: 10, kind: output, shape index: {1}]
  %11 = xla_tuple %s9, %s10
  %s12 = sld [smem:[#allocation0]]
  $region77: #{tpu_custom_call.1} parent=0
    _
  %s14 = ssub.s32 1, %s12
  %s15 = scalar_select 0, %s14, %s12
  $region1: #{tpu_custom_call.1} parent=0
    #allocation2 [shape = 'u8[8192]{0}', space=vmem, size = 0x2000, scoped, tag = 'output window, operand 0']
    #allocation3 [shape = 's32[2]{0}', space=sflag, size = 0x8, scoped, tag = 'scoped memory for tpu_custom_call.1']
    #allocation4 [shape = 'u8[1024]{0}', space=vmem, size = 0x400, scoped, tag = 'output window, operand 1']
    #allocation5 [shape = 's32[2]{0}', space=sflag, size = 0x8, scoped, tag = 'scoped memory for tpu_custom_call.1']
    %16 = vsyncpa [#allocation3], 0
    %s17 = scalar_lea.sflag [#allocation3], 1
    %18 = vsyncpa %s17, 0
    %19 = vsyncpa [#allocation5], 0
    %s20 = scalar_lea.sflag [#allocation5], 1
    %21 = vsyncpa %s20, 0
    loop: start=0, step=1, limit=4
    $region2: #{tpu_custom_call.1} parent=1 // loop_pre_header
      _
    $region3: #{tpu_custom_call.1} parent=1 // loop_header
      %s23 = sphi 0, %s27
      %p24 = scmp.ge.s32.totalorder %s23, 4
      %s33 = sphi 0, %s35
      %s36 = sphi 0, %s33
      %s37 = sphi 0, %s36
      %s53 = sphi 0, %s37
      %s57 = sphi 0, %s57
      %s59 = sphi 0, %s57
      %s60 = sphi 0, %s59
      %s74 = sphi 0, %s60
      %s78 = sphi 0, %s78
      %s80 = sphi 0, %s78
      %s81 = sphi 0, %s80
      %s95 = sphi 0, %s81
      %s99 = sphi 0, %s99
      %s101 = sphi 0, %s99
      %s102 = sphi 0, %s101
      %s116 = sphi 0, %s102
      %s120 = sphi 0, %s120
      %s122 = sphi 0, %s120
      %s123 = sphi 0, %s122
      %s137 = sphi 0, %s123
      %s141 = sphi 0, %s141
      %s143 = sphi 0, %s141
      %s144 = sphi 0, %s143
      %s158 = sphi 0, %s144
      %s162 = sphi 0, %s162
      %s164 = sphi 0, %s162
      %s165 = sphi 0, %s164
      %s179 = sphi 0, %s165
      %s183 = sphi 0, %s183
      %s185 = sphi 0, %s183
      %s186 = sphi 0, %s185
      %s200 = sphi 0, %s186
      %s204 = sphi 0, %s204
      %s206 = sphi 0, %s204
      %s207 = sphi 0, %s206
      %s221 = sphi 0, %s207
      %s227 = sphi 0, %s229
      %s230 = sphi 0, %s227
      %s231 = sphi 0, %s230
      %s247 = sphi 0, %s231
      %s253 = sphi 0, %s255
      %s256 = sphi 0, %s253
      %s257 = sphi 0, %s256
      %s273 = sphi 0, %s257
    $region4: #{tpu_custom_call.1} parent=1 // loop_header_branch
      %26 = sbr.rel (%p24) target = $region8
    $region5: #{tpu_custom_call.1} parent=1 // loop_body
      %s28 = ssub.s32 %s23, 1
      %s29 = ssub.s32 %s23, 2
      %s30 = sadd.s32 %s23, 1
      %s31 = ssub.s32 %s23, %s30
      %p32 = scmp.eq.s32.totalorder %s31, 0
      %s34 = sadd.s32 %s33, 1
      %s35 = scalar_select %p32, %s33, %s34
      %p38 = pneg %p32
      %p39 = scmp.eq.s32.totalorder %s23, 1
      %p40 = por %p38, %p39
      %p41 = scmp.ne.s32.totalorder %s33, %s36
      %p42 = scmp.eq.s32.totalorder %s23, 0
      %p43 = por %p41, %p42
      %p44 = scmp.ne.s32.totalorder %s33, %s36
      %p45 = scmp.eq.s32.totalorder %s28, 1
      %p46 = por %p44, %p45
      %p47 = scmp.ne.s32.totalorder %s36, %s37
      %p48 = scmp.eq.s32.totalorder %s28, 0
      %p49 = por %p47, %p48
      %p50 = scmp.ne.s32.totalorder %s36, %s37
      %p51 = scmp.eq.s32.totalorder %s29, 1
      %p52 = por %p50, %p51
      %p54 = scmp.ne.s32.totalorder %s37, %s53
      %p55 = scmp.eq.s32.totalorder %s29, 0
      %p56 = por %p54, %p55
      %s58 = sadd.s32 %s57, 1
      %p61 = scmp.eq.s32.totalorder %s23, 1
      %p62 = scmp.ne.s32.totalorder %s57, %s59
      %p63 = scmp.eq.s32.totalorder %s23, 0
      %p64 = por %p62, %p63
      %p65 = scmp.ne.s32.totalorder %s57, %s59
      %p66 = scmp.eq.s32.totalorder %s28, 1
      %p67 = por %p65, %p66
      %p68 = scmp.ne.s32.totalorder %s59, %s60
      %p69 = scmp.eq.s32.totalorder %s28, 0
      %p70 = por %p68, %p69
      %p71 = scmp.ne.s32.totalorder %s59, %s60
      %p72 = scmp.eq.s32.totalorder %s29, 1
      %p73 = por %p71, %p72
      %p75 = scmp.ne.s32.totalorder %s60, %s74
      %p76 = scmp.eq.s32.totalorder %s29, 0
      %p77 = por %p75, %p76
      %s79 = sadd.s32 %s78, 1
      %p82 = scmp.eq.s32.totalorder %s23, 1
      %p83 = scmp.ne.s32.totalorder %s78, %s80
      %p84 = scmp.eq.s32.totalorder %s23, 0
      %p85 = por %p83, %p84
      %p86 = scmp.ne.s32.totalorder %s78, %s80
      %p87 = scmp.eq.s32.totalorder %s28, 1
      %p88 = por %p86, %p87
      %p89 = scmp.ne.s32.totalorder %s80, %s81
      %p90 = scmp.eq.s32.totalorder %s28, 0
      %p91 = por %p89, %p90
      %p92 = scmp.ne.s32.totalorder %s80, %s81
      %p93 = scmp.eq.s32.totalorder %s29, 1
      %p94 = por %p92, %p93
      %p96 = scmp.ne.s32.totalorder %s81, %s95
      %p97 = scmp.eq.s32.totalorder %s29, 0
      %p98 = por %p96, %p97
      %s100 = sadd.s32 %s99, 1
      %p103 = scmp.eq.s32.totalorder %s23, 1
      %p104 = scmp.ne.s32.totalorder %s99, %s101
      %p105 = scmp.eq.s32.totalorder %s23, 0
      %p106 = por %p104, %p105
      %p107 = scmp.ne.s32.totalorder %s99, %s101
      %p108 = scmp.eq.s32.totalorder %s28, 1
      %p109 = por %p107, %p108
      %p110 = scmp.ne.s32.totalorder %s101, %s102
      %p111 = scmp.eq.s32.totalorder %s28, 0
      %p112 = por %p110, %p111
      %p113 = scmp.ne.s32.totalorder %s101, %s102
      %p114 = scmp.eq.s32.totalorder %s29, 1
      %p115 = por %p113, %p114
      %p117 = scmp.ne.s32.totalorder %s102, %s116
      %p118 = scmp.eq.s32.totalorder %s29, 0
      %p119 = por %p117, %p118
      %s121 = sadd.s32 %s120, 1
      %p124 = scmp.eq.s32.totalorder %s23, 1
      %p125 = scmp.ne.s32.totalorder %s120, %s122
      %p126 = scmp.eq.s32.totalorder %s23, 0
      %p127 = por %p125, %p126
      %p128 = scmp.ne.s32.totalorder %s120, %s122
      %p129 = scmp.eq.s32.totalorder %s28, 1
      %p130 = por %p128, %p129
      %p131 = scmp.ne.s32.totalorder %s122, %s123
      %p132 = scmp.eq.s32.totalorder %s28, 0
      %p133 = por %p131, %p132
      %p134 = scmp.ne.s32.totalorder %s122, %s123
      %p135 = scmp.eq.s32.totalorder %s29, 1
      %p136 = por %p134, %p135
      %p138 = scmp.ne.s32.totalorder %s123, %s137
      %p139 = scmp.eq.s32.totalorder %s29, 0
      %p140 = por %p138, %p139
      %s142 = sadd.s32 %s141, 1
      %p145 = scmp.eq.s32.totalorder %s23, 1
      %p146 = scmp.ne.s32.totalorder %s141, %s143
      %p147 = scmp.eq.s32.totalorder %s23, 0
      %p148 = por %p146, %p147
      %p149 = scmp.ne.s32.totalorder %s141, %s143
      %p150 = scmp.eq.s32.totalorder %s28, 1
      %p151 = por %p149, %p150
      %p152 = scmp.ne.s32.totalorder %s143, %s144
      %p153 = scmp.eq.s32.totalorder %s28, 0
      %p154 = por %p152, %p153
      %p155 = scmp.ne.s32.totalorder %s143, %s144
      %p156 = scmp.eq.s32.totalorder %s29, 1
      %p157 = por %p155, %p156
      %p159 = scmp.ne.s32.totalorder %s144, %s158
      %p160 = scmp.eq.s32.totalorder %s29, 0
      %p161 = por %p159, %p160
      %s163 = sadd.s32 %s162, 1
      %p166 = scmp.eq.s32.totalorder %s23, 1
      %p167 = scmp.ne.s32.totalorder %s162, %s164
      %p168 = scmp.eq.s32.totalorder %s23, 0
      %p169 = por %p167, %p168
      %p170 = scmp.ne.s32.totalorder %s162, %s164
      %p171 = scmp.eq.s32.totalorder %s28, 1
      %p172 = por %p170, %p171
      %p173 = scmp.ne.s32.totalorder %s164, %s165
      %p174 = scmp.eq.s32.totalorder %s28, 0
      %p175 = por %p173, %p174
      %p176 = scmp.ne.s32.totalorder %s164, %s165
      %p177 = scmp.eq.s32.totalorder %s29, 1
      %p178 = por %p176, %p177
      %p180 = scmp.ne.s32.totalorder %s165, %s179
      %p181 = scmp.eq.s32.totalorder %s29, 0
      %p182 = por %p180, %p181
      %s184 = sadd.s32 %s183, 1
      %p187 = scmp.eq.s32.totalorder %s23, 1
      %p188 = scmp.ne.s32.totalorder %s183, %s185
      %p189 = scmp.eq.s32.totalorder %s23, 0
      %p190 = por %p188, %p189
      %p191 = scmp.ne.s32.totalorder %s183, %s185
      %p192 = scmp.eq.s32.totalorder %s28, 1
      %p193 = por %p191, %p192
      %p194 = scmp.ne.s32.totalorder %s185, %s186
      %p195 = scmp.eq.s32.totalorder %s28, 0
      %p196 = por %p194, %p195
      %p197 = scmp.ne.s32.totalorder %s185, %s186
      %p198 = scmp.eq.s32.totalorder %s29, 1
      %p199 = por %p197, %p198
      %p201 = scmp.ne.s32.totalorder %s186, %s200
      %p202 = scmp.eq.s32.totalorder %s29, 0
      %p203 = por %p201, %p202
      %s205 = sadd.s32 %s204, 1
      %p208 = scmp.eq.s32.totalorder %s23, 1
      %p209 = scmp.ne.s32.totalorder %s204, %s206
      %p210 = scmp.eq.s32.totalorder %s23, 0
      %p211 = por %p209, %p210
      %p212 = scmp.ne.s32.totalorder %s204, %s206
      %p213 = scmp.eq.s32.totalorder %s28, 1
      %p214 = por %p212, %p213
      %p215 = scmp.ne.s32.totalorder %s206, %s207
      %p216 = scmp.eq.s32.totalorder %s28, 0
      %p217 = por %p215, %p216
      %p218 = scmp.ne.s32.totalorder %s206, %s207
      %p219 = scmp.eq.s32.totalorder %s29, 1
      %p220 = por %p218, %p219
      %p222 = scmp.ne.s32.totalorder %s207, %s221
      %p223 = scmp.eq.s32.totalorder %s29, 0
      %p224 = por %p222, %p223
      %s225 = ssub.s32 %s23, %s30
      %p226 = scmp.eq.s32.totalorder %s225, 0
      %s228 = sadd.s32 %s227, 1
      %s229 = scalar_select %p226, %s227, %s228
      %p232 = pneg %p226
      %p233 = scmp.eq.s32.totalorder %s23, 1
      %p234 = por %p232, %p233
      %p235 = scmp.ne.s32.totalorder %s227, %s230
      %p236 = scmp.eq.s32.totalorder %s23, 0
      %p237 = por %p235, %p236
      %p238 = scmp.ne.s32.totalorder %s227, %s230
      %p239 = scmp.eq.s32.totalorder %s28, 1
      %p240 = por %p238, %p239
      %p241 = scmp.ne.s32.totalorder %s230, %s231
      %p242 = scmp.eq.s32.totalorder %s28, 0
      %p243 = por %p241, %p242
      %p244 = scmp.ne.s32.totalorder %s230, %s231
      %p245 = scmp.eq.s32.totalorder %s29, 1
      %p246 = por %p244, %p245
      %p248 = scmp.ne.s32.totalorder %s231, %s247
      %p249 = scmp.eq.s32.totalorder %s29, 0
      %p250 = por %p248, %p249
      %s251 = ssub.s32 %s23, %s30
      %p252 = scmp.eq.s32.totalorder %s251, 0
      %s254 = sadd.s32 %s253, 1
      %s255 = scalar_select %p252, %s253, %s254
      %p258 = pneg %p252
      %p259 = scmp.eq.s32.totalorder %s23, 1
      %p260 = por %p258, %p259
      %p261 = scmp.ne.s32.totalorder %s253, %s256
      %p262 = scmp.eq.s32.totalorder %s23, 0
      %p263 = por %p261, %p262
      %p264 = scmp.ne.s32.totalorder %s253, %s256
      %p265 = scmp.eq.s32.totalorder %s28, 1
      %p266 = por %p264, %p265
      %p267 = scmp.ne.s32.totalorder %s256, %s257
      %p268 = scmp.eq.s32.totalorder %s28, 0
      %p269 = por %p267, %p268
      %p270 = scmp.ne.s32.totalorder %s256, %s257
      %p271 = scmp.eq.s32.totalorder %s29, 1
      %p272 = por %p270, %p271
      %p274 = scmp.ne.s32.totalorder %s257, %s273
      %p275 = scmp.eq.s32.totalorder %s29, 0
      %p276 = por %p274, %p275
      %p277 = scmp.le.s32.totalorder 1, %s23
      %p278 = scmp.lt.s32.totalorder %s23, 3
      %p279 = pnand %p277, %p278
      %p280 = pneg %p279
      // Predicated region
      $region9: #{tpu_custom_call.1} parent=5 // pred_check
        _
      $region10: #{tpu_custom_call.1} parent=5 // pred_check_branch
        %282 = sbr.rel (%p279) target = $region12
      $region11: #{tpu_custom_call.1} parent=5 // pred_region
        %s283 = ssub.s32 %s23, 1
        // Predicated region
        $region13: #{tpu_custom_call.1} parent=11 // pred_check
          %p284 = pneg %p70
        $region14: #{tpu_custom_call.1} parent=11 // pred_check_branch
          %286 = sbr.rel (%p284) target = $region16
        $region15: #{tpu_custom_call.1} parent=11 // pred_region
          _
        $region16: #{tpu_custom_call.1} parent=11 // pred_fallthru
          _
        // Predicated region
        $region17: #{tpu_custom_call.1} parent=11 // pred_check
          %p287 = pneg %p91
        $region18: #{tpu_custom_call.1} parent=11 // pred_check_branch
          %289 = sbr.rel (%p287) target = $region20
        $region19: #{tpu_custom_call.1} parent=11 // pred_region
          _
        $region20: #{tpu_custom_call.1} parent=11 // pred_fallthru
          _
        // Predicated region
        $region21: #{tpu_custom_call.1} parent=11 // pred_check
          %p290 = pneg %p112
        $region22: #{tpu_custom_call.1} parent=11 // pred_check_branch
          %292 = sbr.rel (%p290) target = $region24
        $region23: #{tpu_custom_call.1} parent=11 // pred_region
          _
        $region24: #{tpu_custom_call.1} parent=11 // pred_fallthru
          _
        // Predicated region
        $region25: #{tpu_custom_call.1} parent=11 // pred_check
          %p293 = pneg %p133
        $region26: #{tpu_custom_call.1} parent=11 // pred_check_branch
          %295 = sbr.rel (%p293) target = $region28
        $region27: #{tpu_custom_call.1} parent=11 // pred_region
          _
        $region28: #{tpu_custom_call.1} parent=11 // pred_fallthru
          _
        // Predicated region
        $region29: #{tpu_custom_call.1} parent=11 // pred_check
          %p296 = pneg %p154
        $region30: #{tpu_custom_call.1} parent=11 // pred_check_branch
          %298 = sbr.rel (%p296) target = $region32
        $region31: #{tpu_custom_call.1} parent=11 // pred_region
          _
        $region32: #{tpu_custom_call.1} parent=11 // pred_fallthru
          _
        // Predicated region
        $region33: #{tpu_custom_call.1} parent=11 // pred_check
          %p299 = pneg %p175
        $region34: #{tpu_custom_call.1} parent=11 // pred_check_branch
          %301 = sbr.rel (%p299) target = $region36
        $region35: #{tpu_custom_call.1} parent=11 // pred_region
          _
        $region36: #{tpu_custom_call.1} parent=11 // pred_fallthru
          _
        // Predicated region
        $region37: #{tpu_custom_call.1} parent=11 // pred_check
          %p302 = pneg %p196
        $region38: #{tpu_custom_call.1} parent=11 // pred_check_branch
          %304 = sbr.rel (%p302) target = $region40
        $region39: #{tpu_custom_call.1} parent=11 // pred_region
          _
        $region40: #{tpu_custom_call.1} parent=11 // pred_fallthru
          _
        // Predicated region
        $region41: #{tpu_custom_call.1} parent=11 // pred_check
          %p305 = pneg %p217
        $region42: #{tpu_custom_call.1} parent=11 // pred_check_branch
          %307 = sbr.rel (%p305) target = $region44
        $region43: #{tpu_custom_call.1} parent=11 // pred_region
          _
        $region44: #{tpu_custom_call.1} parent=11 // pred_fallthru
          _
      $region12: #{tpu_custom_call.1} parent=5 // pred_fallthru
        _
      %p308 = scmp.lt.s32.totalorder %s23, 2
      // Predicated region
      $region45: #{tpu_custom_call.1} parent=5 // pred_check
        %p309 = pneg %p308
      $region46: #{tpu_custom_call.1} parent=5 // pred_check_branch
        %311 = sbr.rel (%p309) target = $region48
      $region47: #{tpu_custom_call.1} parent=5 // pred_region
        // Predicated region
        $region49: #{tpu_custom_call.1} parent=47 // pred_check
          %p312 = pneg %p43
        $region50: #{tpu_custom_call.1} parent=47 // pred_check_branch
          %314 = sbr.rel (%p312) target = $region52
        $region51: #{tpu_custom_call.1} parent=47 // pred_region
          %p315 = scmp.lt.s32.totalorder %s23, 1
          %s316 = scalar_select %p315, %s23, 1
          %s317 = smul.addr %s316, 8
          %s318 = scalar_lea.vmem %s0, %s317
        $region52: #{tpu_custom_call.1} parent=47 // pred_fallthru
          _
      $region48: #{tpu_custom_call.1} parent=5 // pred_fallthru
        _
      %p319 = scmp.le.s32.totalorder 1, %s23
      %p320 = scmp.lt.s32.totalorder %s23, 3
      %p321 = pnand %p319, %p320
      %p322 = pneg %p321
      // Predicated region
      $region53: #{tpu_custom_call.1} parent=5 // pred_check
        _
      $region54: #{tpu_custom_call.1} parent=5 // pred_check_branch
        %324 = sbr.rel (%p321) target = $region56
      $region55: #{tpu_custom_call.1} parent=5 // pred_region
        %s325 = ssub.s32 %s23, 1
        %p326 = scmp.lt.s32.totalorder %s28, 1
        %s327 = scalar_select %p326, %s28, 1
        %s328 = smul.addr %s327, 8
        %s329 = scalar_lea.vmem %s0, %s328
        %p330 = pneg %p49
        %p331 = pneg %p46
        %p332 = pneg %p70
        %p333 = pneg %p67
        %p334 = pneg %p91
        %p335 = pneg %p88
        %p336 = pneg %p112
        %p337 = pneg %p109
        %p338 = pneg %p133
        %p339 = pneg %p130
        %p340 = pneg %p154
        %p341 = pneg %p151
        %p342 = pneg %p175
        %p343 = pneg %p172
        %p344 = pneg %p196
        %p345 = pneg %p193
        %p346 = pneg %p217
        %p347 = pneg %p214
        %p348 = pneg %p243
        %p349 = pneg %p240
        %s350 = sand.u32 %s230, 1
        %s351 = scalar_lea.sflag [#allocation3], %s350
        %s352 = sand.u32 %s230, 1
        %s353 = smul.addr %s352, 8
        %s354 = scalar_lea.vmem [#allocation2], %s353
        %p355 = pneg %p269
        %p356 = pneg %p266
        %s357 = sand.u32 %s256, 1
        %s358 = scalar_lea.sflag [#allocation5], %s357
        %s359 = sand.u32 %s256, 1
        %s360 = scalar_lea.vmem [#allocation4], %s359
        %p361 = scmp.lt.s32.totalorder %s28, 1
        %s362 = scalar_select %p361, %s28, 1
        %s363 = smul.addr %s362, 8
        %s364 = scalar_lea.vmem %s0, %s363
        %v365 = vld [vmem:[%s364] sm:$0xff]
        %v366 = vld [vmem:[%s1] sm:$0xff]
        %v367 = vld [vmem:[%s1 + $0x8] sm:$0xff]
        %v368 = vld [vmem:[%s1 + $0x10] sm:$0xff]
        %v369 = vld [vmem:[%s1 + $0x18] sm:$0xff]
        %v370 = vld [vmem:[%s1 + $0x20] sm:$0xff]
        %v371 = vld [vmem:[%s1 + $0x28] sm:$0xff]
        %v372 = vld [vmem:[%s1 + $0x30] sm:$0xff]
        %v373 = vld [vmem:[%s1 + $0x38] sm:$0xff]
        %v374 = vld [vmem:[%s2] sm:$0xff]
        %v375 = vld [vmem:[%s2 + $0x8] sm:$0xff]
        %v376 = vld [vmem:[%s2 + $0x10] sm:$0xff]
        %v377 = vld [vmem:[%s2 + $0x18] sm:$0xff]
        %v378 = vld [vmem:[%s2 + $0x20] sm:$0xff]
        %v379 = vld [vmem:[%s2 + $0x28] sm:$0xff]
        %v380 = vld [vmem:[%s2 + $0x30] sm:$0xff]
        %v381 = vld [vmem:[%s2 + $0x38] sm:$0xff]
        %383 = vset.pattern.permute.xlu0 0
        %384 = vperm.xlu0 %383, %v374
        %v385 = vpop.permute.xlu0 %384
        %388 = vset.pattern.permute.xlu0 0
        %389 = vperm.xlu0 %388, %v375
        %v390 = vpop.permute.xlu0 %389
        %393 = vset.pattern.permute.xlu0 0
        %394 = vperm.xlu0 %393, %v376
        %v395 = vpop.permute.xlu0 %394
        %398 = vset.pattern.permute.xlu0 0
        %399 = vperm.xlu0 %398, %v377
        %v400 = vpop.permute.xlu0 %399
        %403 = vset.pattern.permute.xlu0 0
        %404 = vperm.xlu0 %403, %v378
        %v405 = vpop.permute.xlu0 %404
        %408 = vset.pattern.permute.xlu0 0
        %409 = vperm.xlu0 %408, %v379
        %v410 = vpop.permute.xlu0 %409
        %413 = vset.pattern.permute.xlu0 0
        %414 = vperm.xlu0 %413, %v380
        %v415 = vpop.permute.xlu0 %414
        %418 = vset.pattern.permute.xlu0 0
        %419 = vperm.xlu0 %418, %v381
        %v420 = vpop.permute.xlu0 %419
        %vm422 = vcmask 31744
        %v424 = vsel %vm422, %v366, 0
        %v427 = vsel %vm422, %v367, 0
        %v430 = vsel %vm422, %v368, 0
        %v433 = vsel %vm422, %v369, 0
        %v436 = vsel %vm422, %v370, 0
        %v439 = vsel %vm422, %v371, 0
        %v442 = vsel %vm422, %v372, 0
        %v445 = vsel %vm422, %v373, 0
        %vm447 = vcmask 1043456
        %v449 = vsel %vm447, %v365, 0
        %451 = vmatprep.subr.mxu0 0.0
        %452 = vmatpush1.msra.mxu0 %v449
        %453 = vmatprep.subr.mxu0 0.0
        %454 = vmatpush1.msra.mxu0 0.0
        %455 = vmatprep.subr.mxu0 0.0
        %456 = vmatpush1.msra.mxu0 0.0
        %457 = vmatprep.subr.mxu0 0.0
        %458 = vmatpush1.msra.mxu0 0.0
        %459 = vmatprep.subr.mxu0 0.0
        %460 = vmatpush1.msra.mxu0 0.0
        %461 = vmatprep.subr.mxu0 0.0
        %462 = vmatpush1.msra.mxu0 0.0
        %463 = vmatprep.subr.mxu0 0.0
        %464 = vmatpush1.msra.mxu0 0.0
        %465 = vmatprep.subr.mxu0 0.0
        %466 = vmatpush1.msra.mxu0 0.0
        %467 = vmatprep.subr.mxu0 0.0
        %468 = vmatpush1.msra.mxu0 0.0
        %469 = vmatprep.subr.mxu0 0.0
        %470 = vmatpush1.msra.mxu0 0.0
        %471 = vmatprep.subr.mxu0 0.0
        %472 = vmatpush1.msra.mxu0 0.0
        %473 = vmatprep.subr.mxu0 0.0
        %474 = vmatpush1.msra.mxu0 0.0
        %475 = vmatprep.subr.mxu0 0.0
        %476 = vmatpush1.msra.mxu0 0.0
        %477 = vmatprep.subr.mxu0 0.0
        %478 = vmatpush1.msra.mxu0 0.0
        %479 = vmatprep.subr.mxu0 0.0
        %480 = vmatpush1.msra.mxu0 0.0
        %481 = vmatprep.subr.mxu0 0.0
        %482 = vmatpush1.msra.mxu0 0.0
        %483 = vmatprep.subr.mxu0 0.0
        %484 = vmatpush1.msra.mxu0 0.0
        %485 = vmatprep.subr.mxu0 0.0
        %486 = vmatpush1.msra.mxu0 0.0
        %487 = vmatprep.subr.mxu0 0.0
        %488 = vmatpush1.msra.mxu0 0.0
        %489 = vmatprep.subr.mxu0 0.0
        %490 = vmatpush1.msra.mxu0 0.0
        %491 = vmatprep.subr.mxu0 0.0
        %492 = vmatpush1.msra.mxu0 0.0
        %493 = vmatprep.subr.mxu0 0.0
        %494 = vmatpush1.msra.mxu0 0.0
        %495 = vmatprep.subr.mxu0 0.0
        %496 = vmatpush1.msra.mxu0 0.0
        %497 = vmatprep.subr.mxu0 0.0
        %498 = vmatpush1.msra.mxu0 0.0
        %499 = vmatprep.subr.mxu0 0.0
        %500 = vmatpush1.msra.mxu0 0.0
        %501 = vmatprep.subr.mxu0 0.0
        %502 = vmatpush1.msra.mxu0 0.0
        %503 = vmatprep.subr.mxu0 0.0
        %504 = vmatpush1.msra.mxu0 0.0
        %505 = vmatprep.subr.mxu0 0.0
        %506 = vmatpush1.msra.mxu0 0.0
        %507 = vmatprep.subr.mxu0 0.0
        %508 = vmatpush1.msra.mxu0 0.0
        %509 = vmatprep.subr.mxu0 0.0
        %510 = vmatpush1.msra.mxu0 0.0
        %511 = vmatprep.subr.mxu0 0.0
        %512 = vmatpush1.msra.mxu0 0.0
        %513 = vmatprep.subr.mxu0 0.0
        %514 = vmatpush1.msra.mxu0 0.0
        %515 = vmatprep.mubr.f32.mxu0 0.0
        %516 = vmatmul.mubr.f32.gmra.mrb[0].mxu0 %v424
        %v517 = vpop.f32.mrb[0].mxu0
        %v518 = vadd.f32 %v385, %v517
        %v519 = vpop.f32.mrb[0].mxu0
        %520 = vmatprep.mubr.f32.mxu0 0.0
        %521 = vmatmul.mubr.f32.gmra.mrb[0].mxu0 %v427
        %v522 = vpop.f32.mrb[0].mxu0
        %v523 = vadd.f32 %v390, %v522
        %v524 = vpop.f32.mrb[0].mxu0
        %525 = vmatprep.mubr.f32.mxu0 0.0
        %526 = vmatmul.mubr.f32.gmra.mrb[0].mxu0 %v430
        %v527 = vpop.f32.mrb[0].mxu0
        %v528 = vadd.f32 %v395, %v527
        %v529 = vpop.f32.mrb[0].mxu0
        %530 = vmatprep.mubr.f32.mxu0 0.0
        %531 = vmatmul.mubr.f32.gmra.mrb[0].mxu0 %v433
        %v532 = vpop.f32.mrb[0].mxu0
        %v533 = vadd.f32 %v400, %v532
        %v534 = vpop.f32.mrb[0].mxu0
        %535 = vmatprep.mubr.f32.mxu0 0.0
        %536 = vmatmul.mubr.f32.gmra.mrb[0].mxu0 %v436
        %v537 = vpop.f32.mrb[0].mxu0
        %v538 = vadd.f32 %v405, %v537
        %v539 = vpop.f32.mrb[0].mxu0
        %540 = vmatprep.mubr.f32.mxu0 0.0
        %541 = vmatmul.mubr.f32.gmra.mrb[0].mxu0 %v439
        %v542 = vpop.f32.mrb[0].mxu0
        %v543 = vadd.f32 %v410, %v542
        %v544 = vpop.f32.mrb[0].mxu0
        %545 = vmatprep.mubr.f32.mxu0 0.0
        %546 = vmatmul.mubr.f32.gmra.mrb[0].mxu0 %v442
        %v547 = vpop.f32.mrb[0].mxu0
        %v548 = vadd.f32 %v415, %v547
        %v549 = vpop.f32.mrb[0].mxu0
        %550 = vmatprep.mubr.f32.mxu0 0.0
        %551 = vmatmul.mubr.f32.gmra.mrb[0].mxu0 %v445
        %v552 = vpop.f32.mrb[0].mxu0
        %v553 = vadd.f32 %v420, %v552
        %v554 = vpop.f32.mrb[0].mxu0
        %555 = vdwg.mxu0
        %v556 = vmax.f32 %v518, 0.0
        %v557 = vmax.f32 %v523, 0.0
        %v558 = vmax.f32 %v528, 0.0
        %v559 = vmax.f32 %v533, 0.0
        %v560 = vmax.f32 %v538, 0.0
        %v561 = vmax.f32 %v543, 0.0
        %v562 = vmax.f32 %v548, 0.0
        %v563 = vmax.f32 %v553, 0.0
        %v564 = vld [vmem:[%s3] sm:$0xff]
        %v565 = vld [vmem:[%s3 + $0x8] sm:$0xff]
        %v566 = vld [vmem:[%s3 + $0x10] sm:$0xff]
        %v567 = vld [vmem:[%s3 + $0x18] sm:$0xff]
        %v568 = vld [vmem:[%s3 + $0x20] sm:$0xff]
        %v569 = vld [vmem:[%s3 + $0x28] sm:$0xff]
        %v570 = vld [vmem:[%s3 + $0x30] sm:$0xff]
        %v571 = vld [vmem:[%s3 + $0x38] sm:$0xff]
        %v572 = vld [vmem:[%s4] sm:$0xff]
        %v573 = vld [vmem:[%s4 + $0x8] sm:$0xff]
        %v574 = vld [vmem:[%s4 + $0x10] sm:$0xff]
        %v575 = vld [vmem:[%s4 + $0x18] sm:$0xff]
        %v576 = vld [vmem:[%s4 + $0x20] sm:$0xff]
        %v577 = vld [vmem:[%s4 + $0x28] sm:$0xff]
        %v578 = vld [vmem:[%s4 + $0x30] sm:$0xff]
        %v579 = vld [vmem:[%s4 + $0x38] sm:$0xff]
        %581 = vset.pattern.permute.xlu0 0
        %582 = vperm.xlu0 %581, %v572
        %v583 = vpop.permute.xlu0 %582
        %586 = vset.pattern.permute.xlu0 0
        %587 = vperm.xlu0 %586, %v573
        %v588 = vpop.permute.xlu0 %587
        %591 = vset.pattern.permute.xlu0 0
        %592 = vperm.xlu0 %591, %v574
        %v593 = vpop.permute.xlu0 %592
        %596 = vset.pattern.permute.xlu0 0
        %597 = vperm.xlu0 %596, %v575
        %v598 = vpop.permute.xlu0 %597
        %601 = vset.pattern.permute.xlu0 0
        %602 = vperm.xlu0 %601, %v576
        %v603 = vpop.permute.xlu0 %602
        %606 = vset.pattern.permute.xlu0 0
        %607 = vperm.xlu0 %606, %v577
        %v608 = vpop.permute.xlu0 %607
        %611 = vset.pattern.permute.xlu0 0
        %612 = vperm.xlu0 %611, %v578
        %v613 = vpop.permute.xlu0 %612
        %616 = vset.pattern.permute.xlu0 0
        %617 = vperm.xlu0 %616, %v579
        %v618 = vpop.permute.xlu0 %617
        %vm620 = vcmask 523264
        %v622 = vsel %vm620, %v564, 0
        %v625 = vsel %vm620, %v565, 0
        %v628 = vsel %vm620, %v566, 0
        %v631 = vsel %vm620, %v567, 0
        %v634 = vsel %vm620, %v568, 0
        %v637 = vsel %vm620, %v569, 0
        %v640 = vsel %vm620, %v570, 0
        %v643 = vsel %vm620, %v571, 0
        %645 = vmatprep.subr.mxu0 0.0
        %646 = vmatpush1.msra.mxu0 %v556
        %647 = vmatprep.subr.mxu0 0.0
        %648 = vmatpush1.msra.mxu0 %v557
        %649 = vmatprep.subr.mxu0 0.0
        %650 = vmatpush1.msra.mxu0 %v558
        %651 = vmatprep.subr.mxu0 0.0
        %652 = vmatpush1.msra.mxu0 %v559
        %653 = vmatprep.subr.mxu0 0.0
        %654 = vmatpush1.msra.mxu0 %v560
        %655 = vmatprep.subr.mxu0 0.0
        %656 = vmatpush1.msra.mxu0 %v561
        %657 = vmatprep.subr.mxu0 0.0
        %658 = vmatpush1.msra.mxu0 %v562
        %659 = vmatprep.subr.mxu0 0.0
        %660 = vmatpush1.msra.mxu0 %v563
        %661 = vmatprep.subr.mxu0 0.0
        %662 = vmatpush1.msra.mxu0 0.0
        %663 = vmatprep.subr.mxu0 0.0
        %664 = vmatpush1.msra.mxu0 0.0
        %665 = vmatprep.subr.mxu0 0.0
        %666 = vmatpush1.msra.mxu0 0.0
        %667 = vmatprep.subr.mxu0 0.0
        %668 = vmatpush1.msra.mxu0 0.0
        %669 = vmatprep.subr.mxu0 0.0
        %670 = vmatpush1.msra.mxu0 0.0
        %671 = vmatprep.subr.mxu0 0.0
        %672 = vmatpush1.msra.mxu0 0.0
        %673 = vmatprep.subr.mxu0 0.0
        %674 = vmatpush1.msra.mxu0 0.0
        %675 = vmatprep.subr.mxu0 0.0
        %676 = vmatpush1.msra.mxu0 0.0
        %677 = vmatprep.subr.mxu0 0.0
        %678 = vmatpush1.msra.mxu0 0.0
        %679 = vmatprep.subr.mxu0 0.0
        %680 = vmatpush1.msra.mxu0 0.0
        %681 = vmatprep.subr.mxu0 0.0
        %682 = vmatpush1.msra.mxu0 0.0
        %683 = vmatprep.subr.mxu0 0.0
        %684 = vmatpush1.msra.mxu0 0.0
        %685 = vmatprep.subr.mxu0 0.0
        %686 = vmatpush1.msra.mxu0 0.0
        %687 = vmatprep.subr.mxu0 0.0
        %688 = vmatpush1.msra.mxu0 0.0
        %689 = vmatprep.subr.mxu0 0.0
        %690 = vmatpush1.msra.mxu0 0.0
        %691 = vmatprep.subr.mxu0 0.0
        %692 = vmatpush1.msra.mxu0 0.0
        %693 = vmatprep.subr.mxu0 0.0
        %694 = vmatpush1.msra.mxu0 0.0
        %695 = vmatprep.subr.mxu0 0.0
        %696 = vmatpush1.msra.mxu0 0.0
        %697 = vmatprep.subr.mxu0 0.0
        %698 = vmatpush1.msra.mxu0 0.0
        %699 = vmatprep.subr.mxu0 0.0
        %700 = vmatpush1.msra.mxu0 0.0
        %701 = vmatprep.subr.mxu0 0.0
        %702 = vmatpush1.msra.mxu0 0.0
        %703 = vmatprep.subr.mxu0 0.0
        %704 = vmatpush1.msra.mxu0 0.0
        %705 = vmatprep.subr.mxu0 0.0
        %706 = vmatpush1.msra.mxu0 0.0
        %707 = vmatprep.subr.mxu0 0.0
        %708 = vmatpush1.msra.mxu0 0.0
        %709 = vmatprep.mubr.f32.mxu0 0.0
        %710 = vmatmul.mubr.f32.gmra.mrb[0].mxu0 %v622
        %v711 = vpop.f32.mrb[0].mxu0
        %v712 = vadd.f32 %v583, %v711
        %v713 = vpop.f32.mrb[0].mxu0
        %714 = vmatprep.mubr.f32.mxu0 0.0
        %715 = vmatmul.mubr.f32.gmra.mrb[0].mxu0 %v625
        %v716 = vpop.f32.mrb[0].mxu0
        %v717 = vadd.f32 %v588, %v716
        %v718 = vpop.f32.mrb[0].mxu0
        %719 = vmatprep.mubr.f32.mxu0 0.0
        %720 = vmatmul.mubr.f32.gmra.mrb[0].mxu0 %v628
        %v721 = vpop.f32.mrb[0].mxu0
        %v722 = vadd.f32 %v593, %v721
        %v723 = vpop.f32.mrb[0].mxu0
        %724 = vmatprep.mubr.f32.mxu0 0.0
        %725 = vmatmul.mubr.f32.gmra.mrb[0].mxu0 %v631
        %v726 = vpop.f32.mrb[0].mxu0
        %v727 = vadd.f32 %v598, %v726
        %v728 = vpop.f32.mrb[0].mxu0
        %729 = vmatprep.mubr.f32.mxu0 0.0
        %730 = vmatmul.mubr.f32.gmra.mrb[0].mxu0 %v634
        %v731 = vpop.f32.mrb[0].mxu0
        %v732 = vadd.f32 %v603, %v731
        %v733 = vpop.f32.mrb[0].mxu0
        %734 = vmatprep.mubr.f32.mxu0 0.0
        %735 = vmatmul.mubr.f32.gmra.mrb[0].mxu0 %v637
        %v736 = vpop.f32.mrb[0].mxu0
        %v737 = vadd.f32 %v608, %v736
        %v738 = vpop.f32.mrb[0].mxu0
        %739 = vmatprep.mubr.f32.mxu0 0.0
        %740 = vmatmul.mubr.f32.gmra.mrb[0].mxu0 %v640
        %v741 = vpop.f32.mrb[0].mxu0
        %v742 = vadd.f32 %v613, %v741
        %v743 = vpop.f32.mrb[0].mxu0
        %744 = vmatprep.mubr.f32.mxu0 0.0
        %745 = vmatmul.mubr.f32.gmra.mrb[0].mxu0 %v643
        %v746 = vpop.f32.mrb[0].mxu0
        %v747 = vadd.f32 %v618, %v746
        %v748 = vpop.f32.mrb[0].mxu0
        %749 = vdwg.mxu0
        %v750 = vmax.f32 %v712, 0.0
        %v751 = vmax.f32 %v717, 0.0
        %v752 = vmax.f32 %v722, 0.0
        %v753 = vmax.f32 %v727, 0.0
        %v754 = vmax.f32 %v732, 0.0
        %v755 = vmax.f32 %v737, 0.0
        %v756 = vmax.f32 %v742, 0.0
        %v757 = vmax.f32 %v747, 0.0
        %v758 = vld [vmem:[%s5] sm:$0xf]
        %v759 = vld [vmem:[%s6] sm:$0xf]
        %761 = vset.pattern.permute.xlu0 0
        %762 = vperm.xlu0 %761, %v759
        %v763 = vpop.permute.xlu0 %762
        %v766 = vsel %vm620, %v758, 0
        %768 = vmatprep.subr.mxu0 0.0
        %769 = vmatpush1.msra.mxu0 %v750
        %770 = vmatprep.subr.mxu0 0.0
        %771 = vmatpush1.msra.mxu0 %v751
        %772 = vmatprep.subr.mxu0 0.0
        %773 = vmatpush1.msra.mxu0 %v752
        %774 = vmatprep.subr.mxu0 0.0
        %775 = vmatpush1.msra.mxu0 %v753
        %776 = vmatprep.subr.mxu0 0.0
        %777 = vmatpush1.msra.mxu0 %v754
        %778 = vmatprep.subr.mxu0 0.0
        %779 = vmatpush1.msra.mxu0 %v755
        %780 = vmatprep.subr.mxu0 0.0
        %781 = vmatpush1.msra.mxu0 %v756
        %782 = vmatprep.subr.mxu0 0.0
        %783 = vmatpush1.msra.mxu0 %v757
        %784 = vmatprep.subr.mxu0 0.0
        %785 = vmatpush1.msra.mxu0 0.0
        %786 = vmatprep.subr.mxu0 0.0
        %787 = vmatpush1.msra.mxu0 0.0
        %788 = vmatprep.subr.mxu0 0.0
        %789 = vmatpush1.msra.mxu0 0.0
        %790 = vmatprep.subr.mxu0 0.0
        %791 = vmatpush1.msra.mxu0 0.0
        %792 = vmatprep.subr.mxu0 0.0
        %793 = vmatpush1.msra.mxu0 0.0
        %794 = vmatprep.subr.mxu0 0.0
        %795 = vmatpush1.msra.mxu0 0.0
        %796 = vmatprep.subr.mxu0 0.0
        %797 = vmatpush1.msra.mxu0 0.0
        %798 = vmatprep.subr.mxu0 0.0
        %799 = vmatpush1.msra.mxu0 0.0
        %800 = vmatprep.subr.mxu0 0.0
        %801 = vmatpush1.msra.mxu0 0.0
        %802 = vmatprep.subr.mxu0 0.0
        %803 = vmatpush1.msra.mxu0 0.0
        %804 = vmatprep.subr.mxu0 0.0
        %805 = vmatpush1.msra.mxu0 0.0
        %806 = vmatprep.subr.mxu0 0.0
        %807 = vmatpush1.msra.mxu0 0.0
        %808 = vmatprep.subr.mxu0 0.0
        %809 = vmatpush1.msra.mxu0 0.0
        %810 = vmatprep.subr.mxu0 0.0
        %811 = vmatpush1.msra.mxu0 0.0
        %812 = vmatprep.subr.mxu0 0.0
        %813 = vmatpush1.msra.mxu0 0.0
        %814 = vmatprep.subr.mxu0 0.0
        %815 = vmatpush1.msra.mxu0 0.0
        %816 = vmatprep.subr.mxu0 0.0
        %817 = vmatpush1.msra.mxu0 0.0
        %818 = vmatprep.subr.mxu0 0.0
        %819 = vmatpush1.msra.mxu0 0.0
        %820 = vmatprep.subr.mxu0 0.0
        %821 = vmatpush1.msra.mxu0 0.0
        %822 = vmatprep.subr.mxu0 0.0
        %823 = vmatpush1.msra.mxu0 0.0
        %824 = vmatprep.subr.mxu0 0.0
        %825 = vmatpush1.msra.mxu0 0.0
        %826 = vmatprep.subr.mxu0 0.0
        %827 = vmatpush1.msra.mxu0 0.0
        %828 = vmatprep.subr.mxu0 0.0
        %829 = vmatpush1.msra.mxu0 0.0
        %830 = vmatprep.subr.mxu0 0.0
        %831 = vmatpush1.msra.mxu0 0.0
        %832 = vmatprep.mubr.f32.mxu0 0.0
        %833 = vmatmul.mubr.f32.gmra.mrb[0].mxu0 %v766
        %v834 = vpop.f32.mrb[0].mxu0
        %v835 = vadd.f32 %v763, %v834
        %v836 = vpop.f32.mrb[0].mxu0
        %837 = vdwg.mxu0
        %v838 = vtanh.pop %v835
        %v839 = vld [vmem:[%s7] sm:$0xf]
        %v840 = vld [vmem:[%s8] sm:$0xf]
        %842 = vset.pattern.permute.xlu0 0
        %843 = vperm.xlu0 %842, %v840
        %v844 = vpop.permute.xlu0 %843
        %v847 = vsel %vm620, %v839, 0
        %849 = vmatprep.subr.mxu0 0.0
        %850 = vmatpush1.msra.mxu0 %v750
        %851 = vmatprep.subr.mxu0 0.0
        %852 = vmatpush1.msra.mxu0 %v751
        %853 = vmatprep.subr.mxu0 0.0
        %854 = vmatpush1.msra.mxu0 %v752
        %855 = vmatprep.subr.mxu0 0.0
        %856 = vmatpush1.msra.mxu0 %v753
        %857 = vmatprep.subr.mxu0 0.0
        %858 = vmatpush1.msra.mxu0 %v754
        %859 = vmatprep.subr.mxu0 0.0
        %860 = vmatpush1.msra.mxu0 %v755
        %861 = vmatprep.subr.mxu0 0.0
        %862 = vmatpush1.msra.mxu0 %v756
        %863 = vmatprep.subr.mxu0 0.0
        %864 = vmatpush1.msra.mxu0 %v757
        %865 = vmatprep.subr.mxu0 0.0
        %866 = vmatpush1.msra.mxu0 0.0
        %867 = vmatprep.subr.mxu0 0.0
        %868 = vmatpush1.msra.mxu0 0.0
        %869 = vmatprep.subr.mxu0 0.0
        %870 = vmatpush1.msra.mxu0 0.0
        %871 = vmatprep.subr.mxu0 0.0
        %872 = vmatpush1.msra.mxu0 0.0
        %873 = vmatprep.subr.mxu0 0.0
        %874 = vmatpush1.msra.mxu0 0.0
        %875 = vmatprep.subr.mxu0 0.0
        %876 = vmatpush1.msra.mxu0 0.0
        %877 = vmatprep.subr.mxu0 0.0
        %878 = vmatpush1.msra.mxu0 0.0
        %879 = vmatprep.subr.mxu0 0.0
        %880 = vmatpush1.msra.mxu0 0.0
        %881 = vmatprep.subr.mxu0 0.0
        %882 = vmatpush1.msra.mxu0 0.0
        %883 = vmatprep.subr.mxu0 0.0
        %884 = vmatpush1.msra.mxu0 0.0
        %885 = vmatprep.subr.mxu0 0.0
        %886 = vmatpush1.msra.mxu0 0.0
        %887 = vmatprep.subr.mxu0 0.0
        %888 = vmatpush1.msra.mxu0 0.0
        %889 = vmatprep.subr.mxu0 0.0
        %890 = vmatpush1.msra.mxu0 0.0
        %891 = vmatprep.subr.mxu0 0.0
        %892 = vmatpush1.msra.mxu0 0.0
        %893 = vmatprep.subr.mxu0 0.0
        %894 = vmatpush1.msra.mxu0 0.0
        %895 = vmatprep.subr.mxu0 0.0
        %896 = vmatpush1.msra.mxu0 0.0
        %897 = vmatprep.subr.mxu0 0.0
        %898 = vmatpush1.msra.mxu0 0.0
        %899 = vmatprep.subr.mxu0 0.0
        %900 = vmatpush1.msra.mxu0 0.0
        %901 = vmatprep.subr.mxu0 0.0
        %902 = vmatpush1.msra.mxu0 0.0
        %903 = vmatprep.subr.mxu0 0.0
        %904 = vmatpush1.msra.mxu0 0.0
        %905 = vmatprep.subr.mxu0 0.0
        %906 = vmatpush1.msra.mxu0 0.0
        %907 = vmatprep.subr.mxu0 0.0
        %908 = vmatpush1.msra.mxu0 0.0
        %909 = vmatprep.subr.mxu0 0.0
        %910 = vmatpush1.msra.mxu0 0.0
        %911 = vmatprep.subr.mxu0 0.0
        %912 = vmatpush1.msra.mxu0 0.0
        %913 = vmatprep.mubr.f32.mxu0 0.0
        %914 = vmatmul.mubr.f32.gmra.mrb[0].mxu0 %v847
        %v915 = vpop.f32.mrb[0].mxu0
        %v916 = vadd.f32 %v844, %v915
        %v917 = vpop.f32.mrb[0].mxu0
        %918 = vdwg.mxu0
        %v919 = vmul.f32 %v838, 1.442695
        %v920 = vpow.pop %v919
        %v922 = vrot.slane %v920, 4
        %v924 = vmul.f32 %v365, %v922
        %v926 = vrot.slane %v916, 4
        %v928 = vadd.f32 %v924, %v926
        %v929 = vadd.f32 %v838, 0.0
        %s930 = scalar_lea.vmem %s1, 64
        %v931 = vld [vmem:[%s930] sm:$0xff]
        %v932 = vld [vmem:[%s930 + $0x8] sm:$0xff]
        %v933 = vld [vmem:[%s930 + $0x10] sm:$0xff]
        %v934 = vld [vmem:[%s930 + $0x18] sm:$0xff]
        %v935 = vld [vmem:[%s930 + $0x20] sm:$0xff]
        %v936 = vld [vmem:[%s930 + $0x28] sm:$0xff]
        %v937 = vld [vmem:[%s930 + $0x30] sm:$0xff]
        %v938 = vld [vmem:[%s930 + $0x38] sm:$0xff]
        %s939 = scalar_lea.vmem %s2, 64
        %v940 = vld [vmem:[%s939] sm:$0xff]
        %v941 = vld [vmem:[%s939 + $0x8] sm:$0xff]
        %v942 = vld [vmem:[%s939 + $0x10] sm:$0xff]
        %v943 = vld [vmem:[%s939 + $0x18] sm:$0xff]
        %v944 = vld [vmem:[%s939 + $0x20] sm:$0xff]
        %v945 = vld [vmem:[%s939 + $0x28] sm:$0xff]
        %v946 = vld [vmem:[%s939 + $0x30] sm:$0xff]
        %v947 = vld [vmem:[%s939 + $0x38] sm:$0xff]
        %949 = vset.pattern.permute.xlu0 0
        %950 = vperm.xlu0 %949, %v940
        %v951 = vpop.permute.xlu0 %950
        %954 = vset.pattern.permute.xlu0 0
        %955 = vperm.xlu0 %954, %v941
        %v956 = vpop.permute.xlu0 %955
        %959 = vset.pattern.permute.xlu0 0
        %960 = vperm.xlu0 %959, %v942
        %v961 = vpop.permute.xlu0 %960
        %964 = vset.pattern.permute.xlu0 0
        %965 = vperm.xlu0 %964, %v943
        %v966 = vpop.permute.xlu0 %965
        %969 = vset.pattern.permute.xlu0 0
        %970 = vperm.xlu0 %969, %v944
        %v971 = vpop.permute.xlu0 %970
        %974 = vset.pattern.permute.xlu0 0
        %975 = vperm.xlu0 %974, %v945
        %v976 = vpop.permute.xlu0 %975
        %979 = vset.pattern.permute.xlu0 0
        %980 = vperm.xlu0 %979, %v946
        %v981 = vpop.permute.xlu0 %980
        %984 = vset.pattern.permute.xlu0 0
        %985 = vperm.xlu0 %984, %v947
        %v986 = vpop.permute.xlu0 %985
        %v989 = vrot.slane %v928, 4
        %v991 = vsel %vm422, %v931, 0
        %v994 = vsel %vm422, %v932, 0
        %v997 = vsel %vm422, %v933, 0
        %v1000 = vsel %vm422, %v934, 0
        %v1003 = vsel %vm422, %v935, 0
        %v1006 = vsel %vm422, %v936, 0
        %v1009 = vsel %vm422, %v937, 0
        %v1012 = vsel %vm422, %v938, 0
        %v1014 = vsel %vm447, %v989, 0
        %1016 = vmatprep.subr.mxu0 0.0
        %1017 = vmatpush1.msra.mxu0 %v1014
        %1018 = vmatprep.subr.mxu0 0.0
        %1019 = vmatpush1.msra.mxu0 0.0
        %1020 = vmatprep.subr.mxu0 0.0
        %1021 = vmatpush1.msra.mxu0 0.0
        %1022 = vmatprep.subr.mxu0 0.0
        %1023 = vmatpush1.msra.mxu0 0.0
        %1024 = vmatprep.subr.mxu0 0.0
        %1025 = vmatpush1.msra.mxu0 0.0
        %1026 = vmatprep.subr.mxu0 0.0
        %1027 = vmatpush1.msra.mxu0 0.0
        %1028 = vmatprep.subr.mxu0 0.0
        %1029 = vmatpush1.msra.mxu0 0.0
        %1030 = vmatprep.subr.mxu0 0.0
        %1031 = vmatpush1.msra.mxu0 0.0
        %1032 = vmatprep.subr.mxu0 0.0
        %1033 = vmatpush1.msra.mxu0 0.0
        %1034 = vmatprep.subr.mxu0 0.0
        %1035 = vmatpush1.msra.mxu0 0.0
        %1036 = vmatprep.subr.mxu0 0.0
        %1037 = vmatpush1.msra.mxu0 0.0
        %1038 = vmatprep.subr.mxu0 0.0
        %1039 = vmatpush1.msra.mxu0 0.0
        %1040 = vmatprep.subr.mxu0 0.0
        %1041 = vmatpush1.msra.mxu0 0.0
        %1042 = vmatprep.subr.mxu0 0.0
        %1043 = vmatpush1.msra.mxu0 0.0
        %1044 = vmatprep.subr.mxu0 0.0
        %1045 = vmatpush1.msra.mxu0 0.0
        %1046 = vmatprep.subr.mxu0 0.0
        %1047 = vmatpush1.msra.mxu0 0.0
        %1048 = vmatprep.subr.mxu0 0.0
        %1049 = vmatpush1.msra.mxu0 0.0
        %1050 = vmatprep.subr.mxu0 0.0
        %1051 = vmatpush1.msra.mxu0 0.0
        %1052 = vmatprep.subr.mxu0 0.0
        %1053 = vmatpush1.msra.mxu0 0.0
        %1054 = vmatprep.subr.mxu0 0.0
        %1055 = vmatpush1.msra.mxu0 0.0
        %1056 = vmatprep.subr.mxu0 0.0
        %1057 = vmatpush1.msra.mxu0 0.0
        %1058 = vmatprep.subr.mxu0 0.0
        %1059 = vmatpush1.msra.mxu0 0.0
        %1060 = vmatprep.subr.mxu0 0.0
        %1061 = vmatpush1.msra.mxu0 0.0
        %1062 = vmatprep.subr.mxu0 0.0
        %1063 = vmatpush1.msra.mxu0 0.0
        %1064 = vmatprep.subr.mxu0 0.0
        %1065 = vmatpush1.msra.mxu0 0.0
        %1066 = vmatprep.subr.mxu0 0.0
        %1067 = vmatpush1.msra.mxu0 0.0
        %1068 = vmatprep.subr.mxu0 0.0
        %1069 = vmatpush1.msra.mxu0 0.0
        %1070 = vmatprep.subr.mxu0 0.0
        %1071 = vmatpush1.msra.mxu0 0.0
        %1072 = vmatprep.subr.mxu0 0.0
        %1073 = vmatpush1.msra.mxu0 0.0
        %1074 = vmatprep.subr.mxu0 0.0
        %1075 = vmatpush1.msra.mxu0 0.0
        %1076 = vmatprep.subr.mxu0 0.0
        %1077 = vmatpush1.msra.mxu0 0.0
        %1078 = vmatprep.subr.mxu0 0.0
        %1079 = vmatpush1.msra.mxu0 0.0
        %1080 = vmatprep.mubr.f32.mxu0 0.0
        %1081 = vmatmul.mubr.f32.gmra.mrb[0].mxu0 %v991
        %v1082 = vpop.f32.mrb[0].mxu0
        %v1083 = vadd.f32 %v951, %v1082
        %v1084 = vpop.f32.mrb[0].mxu0
        %1085 = vmatprep.mubr.f32.mxu0 0.0
        %1086 = vmatmul.mubr.f32.gmra.mrb[0].mxu0 %v994
        %v1087 = vpop.f32.mrb[0].mxu0
        %v1088 = vadd.f32 %v956, %v1087
        %v1089 = vpop.f32.mrb[0].mxu0
        %1090 = vmatprep.mubr.f32.mxu0 0.0
        %1091 = vmatmul.mubr.f32.gmra.mrb[0].mxu0 %v997
        %v1092 = vpop.f32.mrb[0].mxu0
        %v1093 = vadd.f32 %v961, %v1092
        %v1094 = vpop.f32.mrb[0].mxu0
        %1095 = vmatprep.mubr.f32.mxu0 0.0
        %1096 = vmatmul.mubr.f32.gmra.mrb[0].mxu0 %v1000
        %v1097 = vpop.f32.mrb[0].mxu0
        %v1098 = vadd.f32 %v966, %v1097
        %v1099 = vpop.f32.mrb[0].mxu0
        %1100 = vmatprep.mubr.f32.mxu0 0.0
        %1101 = vmatmul.mubr.f32.gmra.mrb[0].mxu0 %v1003
        %v1102 = vpop.f32.mrb[0].mxu0
        %v1103 = vadd.f32 %v971, %v1102
        %v1104 = vpop.f32.mrb[0].mxu0
        %1105 = vmatprep.mubr.f32.mxu0 0.0
        %1106 = vmatmul.mubr.f32.gmra.mrb[0].mxu0 %v1006
        %v1107 = vpop.f32.mrb[0].mxu0
        %v1108 = vadd.f32 %v976, %v1107
        %v1109 = vpop.f32.mrb[0].mxu0
        %1110 = vmatprep.mubr.f32.mxu0 0.0
        %1111 = vmatmul.mubr.f32.gmra.mrb[0].mxu0 %v1009
        %v1112 = vpop.f32.mrb[0].mxu0
        %v1113 = vadd.f32 %v981, %v1112
        %v1114 = vpop.f32.mrb[0].mxu0
        %1115 = vmatprep.mubr.f32.mxu0 0.0
        %1116 = vmatmul.mubr.f32.gmra.mrb[0].mxu0 %v1012
        %v1117 = vpop.f32.mrb[0].mxu0
        %v1118 = vadd.f32 %v986, %v1117
        %v1119 = vpop.f32.mrb[0].mxu0
        %1120 = vdwg.mxu0
        %v1121 = vmax.f32 %v1083, 0.0
        %v1122 = vmax.f32 %v1088, 0.0
        %v1123 = vmax.f32 %v1093, 0.0
        %v1124 = vmax.f32 %v1098, 0.0
        %v1125 = vmax.f32 %v1103, 0.0
        %v1126 = vmax.f32 %v1108, 0.0
        %v1127 = vmax.f32 %v1113, 0.0
        %v1128 = vmax.f32 %v1118, 0.0
        %s1129 = scalar_lea.vmem %s3, 64
        %v1130 = vld [vmem:[%s1129] sm:$0xff]
        %v1131 = vld [vmem:[%s1129 + $0x8] sm:$0xff]
        %v1132 = vld [vmem:[%s1129 + $0x10] sm:$0xff]
        %v1133 = vld [vmem:[%s1129 + $0x18] sm:$0xff]
        %v1134 = vld [vmem:[%s1129 + $0x20] sm:$0xff]
        %v1135 = vld [vmem:[%s1129 + $0x28] sm:$0xff]
        %v1136 = vld [vmem:[%s1129 + $0x30] sm:$0xff]
        %v1137 = vld [vmem:[%s1129 + $0x38] sm:$0xff]
        %s1138 = scalar_lea.vmem %s4, 64
        %v1139 = vld [vmem:[%s1138] sm:$0xff]
        %v1140 = vld [vmem:[%s1138 + $0x8] sm:$0xff]
        %v1141 = vld [vmem:[%s1138 + $0x10] sm:$0xff]
        %v1142 = vld [vmem:[%s1138 + $0x18] sm:$0xff]
        %v1143 = vld [vmem:[%s1138 + $0x20] sm:$0xff]
        %v1144 = vld [vmem:[%s1138 + $0x28] sm:$0xff]
        %v1145 = vld [vmem:[%s1138 + $0x30] sm:$0xff]
        %v1146 = vld [vmem:[%s1138 + $0x38] sm:$0xff]
        %1148 = vset.pattern.permute.xlu0 0
        %1149 = vperm.xlu0 %1148, %v1139
        %v1150 = vpop.permute.xlu0 %1149
        %1153 = vset.pattern.permute.xlu0 0
        %1154 = vperm.xlu0 %1153, %v1140
        %v1155 = vpop.permute.xlu0 %1154
        %1158 = vset.pattern.permute.xlu0 0
        %1159 = vperm.xlu0 %1158, %v1141
        %v1160 = vpop.permute.xlu0 %1159
        %1163 = vset.pattern.permute.xlu0 0
        %1164 = vperm.xlu0 %1163, %v1142
        %v1165 = vpop.permute.xlu0 %1164
        %1168 = vset.pattern.permute.xlu0 0
        %1169 = vperm.xlu0 %1168, %v1143
        %v1170 = vpop.permute.xlu0 %1169
        %1173 = vset.pattern.permute.xlu0 0
        %1174 = vperm.xlu0 %1173, %v1144
        %v1175 = vpop.permute.xlu0 %1174
        %1178 = vset.pattern.permute.xlu0 0
        %1179 = vperm.xlu0 %1178, %v1145
        %v1180 = vpop.permute.xlu0 %1179
        %1183 = vset.pattern.permute.xlu0 0
        %1184 = vperm.xlu0 %1183, %v1146
        %v1185 = vpop.permute.xlu0 %1184
        %v1188 = vsel %vm620, %v1130, 0
        %v1191 = vsel %vm620, %v1131, 0
        %v1194 = vsel %vm620, %v1132, 0
        %v1197 = vsel %vm620, %v1133, 0
        %v1200 = vsel %vm620, %v1134, 0
        %v1203 = vsel %vm620, %v1135, 0
        %v1206 = vsel %vm620, %v1136, 0
        %v1209 = vsel %vm620, %v1137, 0
        %1211 = vmatprep.subr.mxu0 0.0
        %1212 = vmatpush1.msra.mxu0 %v1121
        %1213 = vmatprep.subr.mxu0 0.0
        %1214 = vmatpush1.msra.mxu0 %v1122
        %1215 = vmatprep.subr.mxu0 0.0
        %1216 = vmatpush1.msra.mxu0 %v1123
        %1217 = vmatprep.subr.mxu0 0.0
        %1218 = vmatpush1.msra.mxu0 %v1124
        %1219 = vmatprep.subr.mxu0 0.0
        %1220 = vmatpush1.msra.mxu0 %v1125
        %1221 = vmatprep.subr.mxu0 0.0
        %1222 = vmatpush1.msra.mxu0 %v1126
        %1223 = vmatprep.subr.mxu0 0.0
        %1224 = vmatpush1.msra.mxu0 %v1127
        %1225 = vmatprep.subr.mxu0 0.0
        %1226 = vmatpush1.msra.mxu0 %v1128
        %1227 = vmatprep.subr.mxu0 0.0
        %1228 = vmatpush1.msra.mxu0 0.0
        %1229 = vmatprep.subr.mxu0 0.0
        %1230 = vmatpush1.msra.mxu0 0.0
        %1231 = vmatprep.subr.mxu0 0.0
        %1232 = vmatpush1.msra.mxu0 0.0
        %1233 = vmatprep.subr.mxu0 0.0
        %1234 = vmatpush1.msra.mxu0 0.0
        %1235 = vmatprep.subr.mxu0 0.0
        %1236 = vmatpush1.msra.mxu0 0.0
        %1237 = vmatprep.subr.mxu0 0.0
        %1238 = vmatpush1.msra.mxu0 0.0
        %1239 = vmatprep.subr.mxu0 0.0
        %1240 = vmatpush1.msra.mxu0 0.0
        %1241 = vmatprep.subr.mxu0 0.0
        %1242 = vmatpush1.msra.mxu0 0.0
        %1243 = vmatprep.subr.mxu0 0.0
        %1244 = vmatpush1.msra.mxu0 0.0
        %1245 = vmatprep.subr.mxu0 0.0
        %1246 = vmatpush1.msra.mxu0 0.0
        %1247 = vmatprep.subr.mxu0 0.0
        %1248 = vmatpush1.msra.mxu0 0.0
        %1249 = vmatprep.subr.mxu0 0.0
        %1250 = vmatpush1.msra.mxu0 0.0
        %1251 = vmatprep.subr.mxu0 0.0
        %1252 = vmatpush1.msra.mxu0 0.0
        %1253 = vmatprep.subr.mxu0 0.0
        %1254 = vmatpush1.msra.mxu0 0.0
        %1255 = vmatprep.subr.mxu0 0.0
        %1256 = vmatpush1.msra.mxu0 0.0
        %1257 = vmatprep.subr.mxu0 0.0
        %1258 = vmatpush1.msra.mxu0 0.0
        %1259 = vmatprep.subr.mxu0 0.0
        %1260 = vmatpush1.msra.mxu0 0.0
        %1261 = vmatprep.subr.mxu0 0.0
        %1262 = vmatpush1.msra.mxu0 0.0
        %1263 = vmatprep.subr.mxu0 0.0
        %1264 = vmatpush1.msra.mxu0 0.0
        %1265 = vmatprep.subr.mxu0 0.0
        %1266 = vmatpush1.msra.mxu0 0.0
        %1267 = vmatprep.subr.mxu0 0.0
        %1268 = vmatpush1.msra.mxu0 0.0
        %1269 = vmatprep.subr.mxu0 0.0
        %1270 = vmatpush1.msra.mxu0 0.0
        %1271 = vmatprep.subr.mxu0 0.0
        %1272 = vmatpush1.msra.mxu0 0.0
        %1273 = vmatprep.subr.mxu0 0.0
        %1274 = vmatpush1.msra.mxu0 0.0
        %1275 = vmatprep.mubr.f32.mxu0 0.0
        %1276 = vmatmul.mubr.f32.gmra.mrb[0].mxu0 %v1188
        %v1277 = vpop.f32.mrb[0].mxu0
        %v1278 = vadd.f32 %v1150, %v1277
        %v1279 = vpop.f32.mrb[0].mxu0
        %1280 = vmatprep.mubr.f32.mxu0 0.0
        %1281 = vmatmul.mubr.f32.gmra.mrb[0].mxu0 %v1191
        %v1282 = vpop.f32.mrb[0].mxu0
        %v1283 = vadd.f32 %v1155, %v1282
        %v1284 = vpop.f32.mrb[0].mxu0
        %1285 = vmatprep.mubr.f32.mxu0 0.0
        %1286 = vmatmul.mubr.f32.gmra.mrb[0].mxu0 %v1194
        %v1287 = vpop.f32.mrb[0].mxu0
        %v1288 = vadd.f32 %v1160, %v1287
        %v1289 = vpop.f32.mrb[0].mxu0
        %1290 = vmatprep.mubr.f32.mxu0 0.0
        %1291 = vmatmul.mubr.f32.gmra.mrb[0].mxu0 %v1197
        %v1292 = vpop.f32.mrb[0].mxu0
        %v1293 = vadd.f32 %v1165, %v1292
        %v1294 = vpop.f32.mrb[0].mxu0
        %1295 = vmatprep.mubr.f32.mxu0 0.0
        %1296 = vmatmul.mubr.f32.gmra.mrb[0].mxu0 %v1200
        %v1297 = vpop.f32.mrb[0].mxu0
        %v1298 = vadd.f32 %v1170, %v1297
        %v1299 = vpop.f32.mrb[0].mxu0
        %1300 = vmatprep.mubr.f32.mxu0 0.0
        %1301 = vmatmul.mubr.f32.gmra.mrb[0].mxu0 %v1203
        %v1302 = vpop.f32.mrb[0].mxu0
        %v1303 = vadd.f32 %v1175, %v1302
        %v1304 = vpop.f32.mrb[0].mxu0
        %1305 = vmatprep.mubr.f32.mxu0 0.0
        %1306 = vmatmul.mubr.f32.gmra.mrb[0].mxu0 %v1206
        %v1307 = vpop.f32.mrb[0].mxu0
        %v1308 = vadd.f32 %v1180, %v1307
        %v1309 = vpop.f32.mrb[0].mxu0
        %1310 = vmatprep.mubr.f32.mxu0 0.0
        %1311 = vmatmul.mubr.f32.gmra.mrb[0].mxu0 %v1209
        %v1312 = vpop.f32.mrb[0].mxu0
        %v1313 = vadd.f32 %v1185, %v1312
        %v1314 = vpop.f32.mrb[0].mxu0
        %1315 = vdwg.mxu0
        %v1316 = vmax.f32 %v1278, 0.0
        %v1317 = vmax.f32 %v1283, 0.0
        %v1318 = vmax.f32 %v1288, 0.0
        %v1319 = vmax.f32 %v1293, 0.0
        %v1320 = vmax.f32 %v1298, 0.0
        %v1321 = vmax.f32 %v1303, 0.0
        %v1322 = vmax.f32 %v1308, 0.0
        %v1323 = vmax.f32 %v1313, 0.0
        %s1324 = scalar_lea.vmem %s5, 4
        %v1325 = vld [vmem:[%s1324] sm:$0xf]
        %s1326 = scalar_lea.vmem %s6, 4
        %v1327 = vld [vmem:[%s1326] sm:$0xf]
        %1329 = vset.pattern.permute.xlu0 0
        %1330 = vperm.xlu0 %1329, %v1327
        %v1331 = vpop.permute.xlu0 %1330
        %v1334 = vsel %vm620, %v1325, 0
        %1336 = vmatprep.subr.mxu0 0.0
        %1337 = vmatpush1.msra.mxu0 %v1316
        %1338 = vmatprep.subr.mxu0 0.0
        %1339 = vmatpush1.msra.mxu0 %v1317
        %1340 = vmatprep.subr.mxu0 0.0
        %1341 = vmatpush1.msra.mxu0 %v1318
        %1342 = vmatprep.subr.mxu0 0.0
        %1343 = vmatpush1.msra.mxu0 %v1319
        %1344 = vmatprep.subr.mxu0 0.0
        %1345 = vmatpush1.msra.mxu0 %v1320
        %1346 = vmatprep.subr.mxu0 0.0
        %1347 = vmatpush1.msra.mxu0 %v1321
        %1348 = vmatprep.subr.mxu0 0.0
        %1349 = vmatpush1.msra.mxu0 %v1322
        %1350 = vmatprep.subr.mxu0 0.0
        %1351 = vmatpush1.msra.mxu0 %v1323
        %1352 = vmatprep.subr.mxu0 0.0
        %1353 = vmatpush1.msra.mxu0 0.0
        %1354 = vmatprep.subr.mxu0 0.0
        %1355 = vmatpush1.msra.mxu0 0.0
        %1356 = vmatprep.subr.mxu0 0.0
        %1357 = vmatpush1.msra.mxu0 0.0
        %1358 = vmatprep.subr.mxu0 0.0
        %1359 = vmatpush1.msra.mxu0 0.0
        %1360 = vmatprep.subr.mxu0 0.0
        %1361 = vmatpush1.msra.mxu0 0.0
        %1362 = vmatprep.subr.mxu0 0.0
        %1363 = vmatpush1.msra.mxu0 0.0
        %1364 = vmatprep.subr.mxu0 0.0
        %1365 = vmatpush1.msra.mxu0 0.0
        %1366 = vmatprep.subr.mxu0 0.0
        %1367 = vmatpush1.msra.mxu0 0.0
        %1368 = vmatprep.subr.mxu0 0.0
        %1369 = vmatpush1.msra.mxu0 0.0
        %1370 = vmatprep.subr.mxu0 0.0
        %1371 = vmatpush1.msra.mxu0 0.0
        %1372 = vmatprep.subr.mxu0 0.0
        %1373 = vmatpush1.msra.mxu0 0.0
        %1374 = vmatprep.subr.mxu0 0.0
        %1375 = vmatpush1.msra.mxu0 0.0
        %1376 = vmatprep.subr.mxu0 0.0
        %1377 = vmatpush1.msra.mxu0 0.0
        %1378 = vmatprep.subr.mxu0 0.0
        %1379 = vmatpush1.msra.mxu0 0.0
        %1380 = vmatprep.subr.mxu0 0.0
        %1381 = vmatpush1.msra.mxu0 0.0
        %1382 = vmatprep.subr.mxu0 0.0
        %1383 = vmatpush1.msra.mxu0 0.0
        %1384 = vmatprep.subr.mxu0 0.0
        %1385 = vmatpush1.msra.mxu0 0.0
        %1386 = vmatprep.subr.mxu0 0.0
        %1387 = vmatpush1.msra.mxu0 0.0
        %1388 = vmatprep.subr.mxu0 0.0
        %1389 = vmatpush1.msra.mxu0 0.0
        %1390 = vmatprep.subr.mxu0 0.0
        %1391 = vmatpush1.msra.mxu0 0.0
        %1392 = vmatprep.subr.mxu0 0.0
        %1393 = vmatpush1.msra.mxu0 0.0
        %1394 = vmatprep.subr.mxu0 0.0
        %1395 = vmatpush1.msra.mxu0 0.0
        %1396 = vmatprep.subr.mxu0 0.0
        %1397 = vmatpush1.msra.mxu0 0.0
        %1398 = vmatprep.subr.mxu0 0.0
        %1399 = vmatpush1.msra.mxu0 0.0
        %1400 = vmatprep.mubr.f32.mxu0 0.0
        %1401 = vmatmul.mubr.f32.gmra.mrb[0].mxu0 %v1334
        %v1402 = vpop.f32.mrb[0].mxu0
        %v1403 = vadd.f32 %v1331, %v1402
        %v1404 = vpop.f32.mrb[0].mxu0
        %1405 = vdwg.mxu0
        %v1406 = vtanh.pop %v1403
        %s1407 = scalar_lea.vmem %s7, 4
        %v1408 = vld [vmem:[%s1407] sm:$0xf]
        %s1409 = scalar_lea.vmem %s8, 4
        %v1410 = vld [vmem:[%s1409] sm:$0xf]
        %1412 = vset.pattern.permute.xlu0 0
        %1413 = vperm.xlu0 %1412, %v1410
        %v1414 = vpop.permute.xlu0 %1413
        %v1417 = vsel %vm620, %v1408, 0
        %1419 = vmatprep.subr.mxu0 0.0
        %1420 = vmatpush1.msra.mxu0 %v1316
        %1421 = vmatprep.subr.mxu0 0.0
        %1422 = vmatpush1.msra.mxu0 %v1317
        %1423 = vmatprep.subr.mxu0 0.0
        %1424 = vmatpush1.msra.mxu0 %v1318
        %1425 = vmatprep.subr.mxu0 0.0
        %1426 = vmatpush1.msra.mxu0 %v1319
        %1427 = vmatprep.subr.mxu0 0.0
        %1428 = vmatpush1.msra.mxu0 %v1320
        %1429 = vmatprep.subr.mxu0 0.0
        %1430 = vmatpush1.msra.mxu0 %v1321
        %1431 = vmatprep.subr.mxu0 0.0
        %1432 = vmatpush1.msra.mxu0 %v1322
        %1433 = vmatprep.subr.mxu0 0.0
        %1434 = vmatpush1.msra.mxu0 %v1323
        %1435 = vmatprep.subr.mxu0 0.0
        %1436 = vmatpush1.msra.mxu0 0.0
        %1437 = vmatprep.subr.mxu0 0.0
        %1438 = vmatpush1.msra.mxu0 0.0
        %1439 = vmatprep.subr.mxu0 0.0
        %1440 = vmatpush1.msra.mxu0 0.0
        %1441 = vmatprep.subr.mxu0 0.0
        %1442 = vmatpush1.msra.mxu0 0.0
        %1443 = vmatprep.subr.mxu0 0.0
        %1444 = vmatpush1.msra.mxu0 0.0
        %1445 = vmatprep.subr.mxu0 0.0
        %1446 = vmatpush1.msra.mxu0 0.0
        %1447 = vmatprep.subr.mxu0 0.0
        %1448 = vmatpush1.msra.mxu0 0.0
        %1449 = vmatprep.subr.mxu0 0.0
        %1450 = vmatpush1.msra.mxu0 0.0
        %1451 = vmatprep.subr.mxu0 0.0
        %1452 = vmatpush1.msra.mxu0 0.0
        %1453 = vmatprep.subr.mxu0 0.0
        %1454 = vmatpush1.msra.mxu0 0.0
        %1455 = vmatprep.subr.mxu0 0.0
        %1456 = vmatpush1.msra.mxu0 0.0
        %1457 = vmatprep.subr.mxu0 0.0
        %1458 = vmatpush1.msra.mxu0 0.0
        %1459 = vmatprep.subr.mxu0 0.0
        %1460 = vmatpush1.msra.mxu0 0.0
        %1461 = vmatprep.subr.mxu0 0.0
        %1462 = vmatpush1.msra.mxu0 0.0
        %1463 = vmatprep.subr.mxu0 0.0
        %1464 = vmatpush1.msra.mxu0 0.0
        %1465 = vmatprep.subr.mxu0 0.0
        %1466 = vmatpush1.msra.mxu0 0.0
        %1467 = vmatprep.subr.mxu0 0.0
        %1468 = vmatpush1.msra.mxu0 0.0
        %1469 = vmatprep.subr.mxu0 0.0
        %1470 = vmatpush1.msra.mxu0 0.0
        %1471 = vmatprep.subr.mxu0 0.0
        %1472 = vmatpush1.msra.mxu0 0.0
        %1473 = vmatprep.subr.mxu0 0.0
        %1474 = vmatpush1.msra.mxu0 0.0
        %1475 = vmatprep.subr.mxu0 0.0
        %1476 = vmatpush1.msra.mxu0 0.0
        %1477 = vmatprep.subr.mxu0 0.0
        %1478 = vmatpush1.msra.mxu0 0.0
        %1479 = vmatprep.subr.mxu0 0.0
        %1480 = vmatpush1.msra.mxu0 0.0
        %1481 = vmatprep.subr.mxu0 0.0
        %1482 = vmatpush1.msra.mxu0 0.0
        %1483 = vmatprep.mubr.f32.mxu0 0.0
        %1484 = vmatmul.mubr.f32.gmra.mrb[0].mxu0 %v1417
        %v1485 = vpop.f32.mrb[0].mxu0
        %v1486 = vadd.f32 %v1414, %v1485
        %v1487 = vpop.f32.mrb[0].mxu0
        %1488 = vdwg.mxu0
        %v1489 = vmul.f32 %v1406, 1.442695
        %v1490 = vpow.pop %v1489
        %v1491 = vmul.f32 %v365, %v1490
        %v1492 = vadd.f32 %v1491, %v1486
        %v1493 = vadd.f32 %v929, %v1406
        %s1494 = scalar_lea.vmem %s1, 128
        %v1495 = vld [vmem:[%s1494] sm:$0xff]
        %v1496 = vld [vmem:[%s1494 + $0x8] sm:$0xff]
        %v1497 = vld [vmem:[%s1494 + $0x10] sm:$0xff]
        %v1498 = vld [vmem:[%s1494 + $0x18] sm:$0xff]
        %v1499 = vld [vmem:[%s1494 + $0x20] sm:$0xff]
        %v1500 = vld [vmem:[%s1494 + $0x28] sm:$0xff]
        %v1501 = vld [vmem:[%s1494 + $0x30] sm:$0xff]
        %v1502 = vld [vmem:[%s1494 + $0x38] sm:$0xff]
        %s1503 = scalar_lea.vmem %s2, 128
        %v1504 = vld [vmem:[%s1503] sm:$0xff]
        %v1505 = vld [vmem:[%s1503 + $0x8] sm:$0xff]
        %v1506 = vld [vmem:[%s1503 + $0x10] sm:$0xff]
        %v1507 = vld [vmem:[%s1503 + $0x18] sm:$0xff]
        %v1508 = vld [vmem:[%s1503 + $0x20] sm:$0xff]
        %v1509 = vld [vmem:[%s1503 + $0x28] sm:$0xff]
        %v1510 = vld [vmem:[%s1503 + $0x30] sm:$0xff]
        %v1511 = vld [vmem:[%s1503 + $0x38] sm:$0xff]
        %1513 = vset.pattern.permute.xlu0 0
        %1514 = vperm.xlu0 %1513, %v1504
        %v1515 = vpop.permute.xlu0 %1514
        %1518 = vset.pattern.permute.xlu0 0
        %1519 = vperm.xlu0 %1518, %v1505
        %v1520 = vpop.permute.xlu0 %1519
        %1523 = vset.pattern.permute.xlu0 0
        %1524 = vperm.xlu0 %1523, %v1506
        %v1525 = vpop.permute.xlu0 %1524
        %1528 = vset.pattern.permute.xlu0 0
        %1529 = vperm.xlu0 %1528, %v1507
        %v1530 = vpop.permute.xlu0 %1529
        %1533 = vset.pattern.permute.xlu0 0
        %1534 = vperm.xlu0 %1533, %v1508
        %v1535 = vpop.permute.xlu0 %1534
        %1538 = vset.pattern.permute.xlu0 0
        %1539 = vperm.xlu0 %1538, %v1509
        %v1540 = vpop.permute.xlu0 %1539
        %1543 = vset.pattern.permute.xlu0 0
        %1544 = vperm.xlu0 %1543, %v1510
        %v1545 = vpop.permute.xlu0 %1544
        %1548 = vset.pattern.permute.xlu0 0
        %1549 = vperm.xlu0 %1548, %v1511
        %v1550 = vpop.permute.xlu0 %1549
        %v1553 = vsel %vm422, %v1495, 0
        %v1556 = vsel %vm422, %v1496, 0
        %v1559 = vsel %vm422, %v1497, 0
        %v1562 = vsel %vm422, %v1498, 0
        %v1565 = vsel %vm422, %v1499, 0
        %v1568 = vsel %vm422, %v1500, 0
        %v1571 = vsel %vm422, %v1501, 0
        %v1574 = vsel %vm422, %v1502, 0
        %v1577 = vsel %vm447, %v1492, 0
        %1579 = vmatprep.subr.mxu0 0.0
        %1580 = vmatpush1.msra.mxu0 %v1577
        %1581 = vmatprep.subr.mxu0 0.0
        %1582 = vmatpush1.msra.mxu0 0.0
        %1583 = vmatprep.subr.mxu0 0.0
        %1584 = vmatpush1.msra.mxu0 0.0
        %1585 = vmatprep.subr.mxu0 0.0
        %1586 = vmatpush1.msra.mxu0 0.0
        %1587 = vmatprep.subr.mxu0 0.0
        %1588 = vmatpush1.msra.mxu0 0.0
        %1589 = vmatprep.subr.mxu0 0.0
        %1590 = vmatpush1.msra.mxu0 0.0
        %1591 = vmatprep.subr.mxu0 0.0
        %1592 = vmatpush1.msra.mxu0 0.0
        %1593 = vmatprep.subr.mxu0 0.0
        %1594 = vmatpush1.msra.mxu0 0.0
        %1595 = vmatprep.subr.mxu0 0.0
        %1596 = vmatpush1.msra.mxu0 0.0
        %1597 = vmatprep.subr.mxu0 0.0
        %1598 = vmatpush1.msra.mxu0 0.0
        %1599 = vmatprep.subr.mxu0 0.0
        %1600 = vmatpush1.msra.mxu0 0.0
        %1601 = vmatprep.subr.mxu0 0.0
        %1602 = vmatpush1.msra.mxu0 0.0
        %1603 = vmatprep.subr.mxu0 0.0
        %1604 = vmatpush1.msra.mxu0 0.0
        %1605 = vmatprep.subr.mxu0 0.0
        %1606 = vmatpush1.msra.mxu0 0.0
        %1607 = vmatprep.subr.mxu0 0.0
        %1608 = vmatpush1.msra.mxu0 0.0
        %1609 = vmatprep.subr.mxu0 0.0
        %1610 = vmatpush1.msra.mxu0 0.0
        %1611 = vmatprep.subr.mxu0 0.0
        %1612 = vmatpush1.msra.mxu0 0.0
        %1613 = vmatprep.subr.mxu0 0.0
        %1614 = vmatpush1.msra.mxu0 0.0
        %1615 = vmatprep.subr.mxu0 0.0
        %1616 = vmatpush1.msra.mxu0 0.0
        %1617 = vmatprep.subr.mxu0 0.0
        %1618 = vmatpush1.msra.mxu0 0.0
        %1619 = vmatprep.subr.mxu0 0.0
        %1620 = vmatpush1.msra.mxu0 0.0
        %1621 = vmatprep.subr.mxu0 0.0
        %1622 = vmatpush1.msra.mxu0 0.0
        %1623 = vmatprep.subr.mxu0 0.0
        %1624 = vmatpush1.msra.mxu0 0.0
        %1625 = vmatprep.subr.mxu0 0.0
        %1626 = vmatpush1.msra.mxu0 0.0
        %1627 = vmatprep.subr.mxu0 0.0
        %1628 = vmatpush1.msra.mxu0 0.0
        %1629 = vmatprep.subr.mxu0 0.0
        %1630 = vmatpush1.msra.mxu0 0.0
        %1631 = vmatprep.subr.mxu0 0.0
        %1632 = vmatpush1.msra.mxu0 0.0
        %1633 = vmatprep.subr.mxu0 0.0
        %1634 = vmatpush1.msra.mxu0 0.0
        %1635 = vmatprep.subr.mxu0 0.0
        %1636 = vmatpush1.msra.mxu0 0.0
        %1637 = vmatprep.subr.mxu0 0.0
        %1638 = vmatpush1.msra.mxu0 0.0
        %1639 = vmatprep.subr.mxu0 0.0
        %1640 = vmatpush1.msra.mxu0 0.0
        %1641 = vmatprep.subr.mxu0 0.0
        %1642 = vmatpush1.msra.mxu0 0.0
        %1643 = vmatprep.mubr.f32.mxu0 0.0
        %1644 = vmatmul.mubr.f32.gmra.mrb[0].mxu0 %v1553
        %v1645 = vpop.f32.mrb[0].mxu0
        %v1646 = vadd.f32 %v1515, %v1645
        %v1647 = vpop.f32.mrb[0].mxu0
        %1648 = vmatprep.mubr.f32.mxu0 0.0
        %1649 = vmatmul.mubr.f32.gmra.mrb[0].mxu0 %v1556
        %v1650 = vpop.f32.mrb[0].mxu0
        %v1651 = vadd.f32 %v1520, %v1650
        %v1652 = vpop.f32.mrb[0].mxu0
        %1653 = vmatprep.mubr.f32.mxu0 0.0
        %1654 = vmatmul.mubr.f32.gmra.mrb[0].mxu0 %v1559
        %v1655 = vpop.f32.mrb[0].mxu0
        %v1656 = vadd.f32 %v1525, %v1655
        %v1657 = vpop.f32.mrb[0].mxu0
        %1658 = vmatprep.mubr.f32.mxu0 0.0
        %1659 = vmatmul.mubr.f32.gmra.mrb[0].mxu0 %v1562
        %v1660 = vpop.f32.mrb[0].mxu0
        %v1661 = vadd.f32 %v1530, %v1660
        %v1662 = vpop.f32.mrb[0].mxu0
        %1663 = vmatprep.mubr.f32.mxu0 0.0
        %1664 = vmatmul.mubr.f32.gmra.mrb[0].mxu0 %v1565
        %v1665 = vpop.f32.mrb[0].mxu0
        %v1666 = vadd.f32 %v1535, %v1665
        %v1667 = vpop.f32.mrb[0].mxu0
        %1668 = vmatprep.mubr.f32.mxu0 0.0
        %1669 = vmatmul.mubr.f32.gmra.mrb[0].mxu0 %v1568
        %v1670 = vpop.f32.mrb[0].mxu0
        %v1671 = vadd.f32 %v1540, %v1670
        %v1672 = vpop.f32.mrb[0].mxu0
        %1673 = vmatprep.mubr.f32.mxu0 0.0
        %1674 = vmatmul.mubr.f32.gmra.mrb[0].mxu0 %v1571
        %v1675 = vpop.f32.mrb[0].mxu0
        %v1676 = vadd.f32 %v1545, %v1675
        %v1677 = vpop.f32.mrb[0].mxu0
        %1678 = vmatprep.mubr.f32.mxu0 0.0
        %1679 = vmatmul.mubr.f32.gmra.mrb[0].mxu0 %v1574
        %v1680 = vpop.f32.mrb[0].mxu0
        %v1681 = vadd.f32 %v1550, %v1680
        %v1682 = vpop.f32.mrb[0].mxu0
        %1683 = vdwg.mxu0
        %v1684 = vmax.f32 %v1646, 0.0
        %v1685 = vmax.f32 %v1651, 0.0
        %v1686 = vmax.f32 %v1656, 0.0
        %v1687 = vmax.f32 %v1661, 0.0
        %v1688 = vmax.f32 %v1666, 0.0
        %v1689 = vmax.f32 %v1671, 0.0
        %v1690 = vmax.f32 %v1676, 0.0
        %v1691 = vmax.f32 %v1681, 0.0
        %s1692 = scalar_lea.vmem %s3, 128
        %v1693 = vld [vmem:[%s1692] sm:$0xff]
        %v1694 = vld [vmem:[%s1692 + $0x8] sm:$0xff]
        %v1695 = vld [vmem:[%s1692 + $0x10] sm:$0xff]
        %v1696 = vld [vmem:[%s1692 + $0x18] sm:$0xff]
        %v1697 = vld [vmem:[%s1692 + $0x20] sm:$0xff]
        %v1698 = vld [vmem:[%s1692 + $0x28] sm:$0xff]
        %v1699 = vld [vmem:[%s1692 + $0x30] sm:$0xff]
        %v1700 = vld [vmem:[%s1692 + $0x38] sm:$0xff]
        %s1701 = scalar_lea.vmem %s4, 128
        %v1702 = vld [vmem:[%s1701] sm:$0xff]
        %v1703 = vld [vmem:[%s1701 + $0x8] sm:$0xff]
        %v1704 = vld [vmem:[%s1701 + $0x10] sm:$0xff]
        %v1705 = vld [vmem:[%s1701 + $0x18] sm:$0xff]
        %v1706 = vld [vmem:[%s1701 + $0x20] sm:$0xff]
        %v1707 = vld [vmem:[%s1701 + $0x28] sm:$0xff]
        %v1708 = vld [vmem:[%s1701 + $0x30] sm:$0xff]
        %v1709 = vld [vmem:[%s1701 + $0x38] sm:$0xff]
        %1711 = vset.pattern.permute.xlu0 0
        %1712 = vperm.xlu0 %1711, %v1702
        %v1713 = vpop.permute.xlu0 %1712
        %1716 = vset.pattern.permute.xlu0 0
        %1717 = vperm.xlu0 %1716, %v1703
        %v1718 = vpop.permute.xlu0 %1717
        %1721 = vset.pattern.permute.xlu0 0
        %1722 = vperm.xlu0 %1721, %v1704
        %v1723 = vpop.permute.xlu0 %1722
        %1726 = vset.pattern.permute.xlu0 0
        %1727 = vperm.xlu0 %1726, %v1705
        %v1728 = vpop.permute.xlu0 %1727
        %1731 = vset.pattern.permute.xlu0 0
        %1732 = vperm.xlu0 %1731, %v1706
        %v1733 = vpop.permute.xlu0 %1732
        %1736 = vset.pattern.permute.xlu0 0
        %1737 = vperm.xlu0 %1736, %v1707
        %v1738 = vpop.permute.xlu0 %1737
        %1741 = vset.pattern.permute.xlu0 0
        %1742 = vperm.xlu0 %1741, %v1708
        %v1743 = vpop.permute.xlu0 %1742
        %1746 = vset.pattern.permute.xlu0 0
        %1747 = vperm.xlu0 %1746, %v1709
        %v1748 = vpop.permute.xlu0 %1747
        %v1751 = vsel %vm620, %v1693, 0
        %v1754 = vsel %vm620, %v1694, 0
        %v1757 = vsel %vm620, %v1695, 0
        %v1760 = vsel %vm620, %v1696, 0
        %v1763 = vsel %vm620, %v1697, 0
        %v1766 = vsel %vm620, %v1698, 0
        %v1769 = vsel %vm620, %v1699, 0
        %v1772 = vsel %vm620, %v1700, 0
        %1774 = vmatprep.subr.mxu0 0.0
        %1775 = vmatpush1.msra.mxu0 %v1684
        %1776 = vmatprep.subr.mxu0 0.0
        %1777 = vmatpush1.msra.mxu0 %v1685
        %1778 = vmatprep.subr.mxu0 0.0
        %1779 = vmatpush1.msra.mxu0 %v1686
        %1780 = vmatprep.subr.mxu0 0.0
        %1781 = vmatpush1.msra.mxu0 %v1687
        %1782 = vmatprep.subr.mxu0 0.0
        %1783 = vmatpush1.msra.mxu0 %v1688
        %1784 = vmatprep.subr.mxu0 0.0
        %1785 = vmatpush1.msra.mxu0 %v1689
        %1786 = vmatprep.subr.mxu0 0.0
        %1787 = vmatpush1.msra.mxu0 %v1690
        %1788 = vmatprep.subr.mxu0 0.0
        %1789 = vmatpush1.msra.mxu0 %v1691
        %1790 = vmatprep.subr.mxu0 0.0
        %1791 = vmatpush1.msra.mxu0 0.0
        %1792 = vmatprep.subr.mxu0 0.0
        %1793 = vmatpush1.msra.mxu0 0.0
        %1794 = vmatprep.subr.mxu0 0.0
        %1795 = vmatpush1.msra.mxu0 0.0
        %1796 = vmatprep.subr.mxu0 0.0
        %1797 = vmatpush1.msra.mxu0 0.0
        %1798 = vmatprep.subr.mxu0 0.0
        %1799 = vmatpush1.msra.mxu0 0.0
        %1800 = vmatprep.subr.mxu0 0.0
        %1801 = vmatpush1.msra.mxu0 0.0
        %1802 = vmatprep.subr.mxu0 0.0
        %1803 = vmatpush1.msra.mxu0 0.0
        %1804 = vmatprep.subr.mxu0 0.0
        %1805 = vmatpush1.msra.mxu0 0.0
        %1806 = vmatprep.subr.mxu0 0.0
        %1807 = vmatpush1.msra.mxu0 0.0
        %1808 = vmatprep.subr.mxu0 0.0
        %1809 = vmatpush1.msra.mxu0 0.0
        %1810 = vmatprep.subr.mxu0 0.0
        %1811 = vmatpush1.msra.mxu0 0.0
        %1812 = vmatprep.subr.mxu0 0.0
        %1813 = vmatpush1.msra.mxu0 0.0
        %1814 = vmatprep.subr.mxu0 0.0
        %1815 = vmatpush1.msra.mxu0 0.0
        %1816 = vmatprep.subr.mxu0 0.0
        %1817 = vmatpush1.msra.mxu0 0.0
        %1818 = vmatprep.subr.mxu0 0.0
        %1819 = vmatpush1.msra.mxu0 0.0
        %1820 = vmatprep.subr.mxu0 0.0
        %1821 = vmatpush1.msra.mxu0 0.0
        %1822 = vmatprep.subr.mxu0 0.0
        %1823 = vmatpush1.msra.mxu0 0.0
        %1824 = vmatprep.subr.mxu0 0.0
        %1825 = vmatpush1.msra.mxu0 0.0
        %1826 = vmatprep.subr.mxu0 0.0
        %1827 = vmatpush1.msra.mxu0 0.0
        %1828 = vmatprep.subr.mxu0 0.0
        %1829 = vmatpush1.msra.mxu0 0.0
        %1830 = vmatprep.subr.mxu0 0.0
        %1831 = vmatpush1.msra.mxu0 0.0
        %1832 = vmatprep.subr.mxu0 0.0
        %1833 = vmatpush1.msra.mxu0 0.0
        %1834 = vmatprep.subr.mxu0 0.0
        %1835 = vmatpush1.msra.mxu0 0.0
        %1836 = vmatprep.subr.mxu0 0.0
        %1837 = vmatpush1.msra.mxu0 0.0
        %1838 = vmatprep.mubr.f32.mxu0 0.0
        %1839 = vmatmul.mubr.f32.gmra.mrb[0].mxu0 %v1751
        %v1840 = vpop.f32.mrb[0].mxu0
        %v1841 = vadd.f32 %v1713, %v1840
        %v1842 = vpop.f32.mrb[0].mxu0
        %1843 = vmatprep.mubr.f32.mxu0 0.0
        %1844 = vmatmul.mubr.f32.gmra.mrb[0].mxu0 %v1754
        %v1845 = vpop.f32.mrb[0].mxu0
        %v1846 = vadd.f32 %v1718, %v1845
        %v1847 = vpop.f32.mrb[0].mxu0
        %1848 = vmatprep.mubr.f32.mxu0 0.0
        %1849 = vmatmul.mubr.f32.gmra.mrb[0].mxu0 %v1757
        %v1850 = vpop.f32.mrb[0].mxu0
        %v1851 = vadd.f32 %v1723, %v1850
        %v1852 = vpop.f32.mrb[0].mxu0
        %1853 = vmatprep.mubr.f32.mxu0 0.0
        %1854 = vmatmul.mubr.f32.gmra.mrb[0].mxu0 %v1760
        %v1855 = vpop.f32.mrb[0].mxu0
        %v1856 = vadd.f32 %v1728, %v1855
        %v1857 = vpop.f32.mrb[0].mxu0
        %1858 = vmatprep.mubr.f32.mxu0 0.0
        %1859 = vmatmul.mubr.f32.gmra.mrb[0].mxu0 %v1763
        %v1860 = vpop.f32.mrb[0].mxu0
        %v1861 = vadd.f32 %v1733, %v1860
        %v1862 = vpop.f32.mrb[0].mxu0
        %1863 = vmatprep.mubr.f32.mxu0 0.0
        %1864 = vmatmul.mubr.f32.gmra.mrb[0].mxu0 %v1766
        %v1865 = vpop.f32.mrb[0].mxu0
        %v1866 = vadd.f32 %v1738, %v1865
        %v1867 = vpop.f32.mrb[0].mxu0
        %1868 = vmatprep.mubr.f32.mxu0 0.0
        %1869 = vmatmul.mubr.f32.gmra.mrb[0].mxu0 %v1769
        %v1870 = vpop.f32.mrb[0].mxu0
        %v1871 = vadd.f32 %v1743, %v1870
        %v1872 = vpop.f32.mrb[0].mxu0
        %1873 = vmatprep.mubr.f32.mxu0 0.0
        %1874 = vmatmul.mubr.f32.gmra.mrb[0].mxu0 %v1772
        %v1875 = vpop.f32.mrb[0].mxu0
        %v1876 = vadd.f32 %v1748, %v1875
        %v1877 = vpop.f32.mrb[0].mxu0
        %1878 = vdwg.mxu0
        %v1879 = vmax.f32 %v1841, 0.0
        %v1880 = vmax.f32 %v1846, 0.0
        %v1881 = vmax.f32 %v1851, 0.0
        %v1882 = vmax.f32 %v1856, 0.0
        %v1883 = vmax.f32 %v1861, 0.0
        %v1884 = vmax.f32 %v1866, 0.0
        %v1885 = vmax.f32 %v1871, 0.0
        %v1886 = vmax.f32 %v1876, 0.0
        %s1887 = scalar_lea.vmem %s5, 8
        %v1888 = vld [vmem:[%s1887] sm:$0xf]
        %s1889 = scalar_lea.vmem %s6, 8
        %v1890 = vld [vmem:[%s1889] sm:$0xf]
        %1892 = vset.pattern.permute.xlu0 0
        %1893 = vperm.xlu0 %1892, %v1890
        %v1894 = vpop.permute.xlu0 %1893
        %v1897 = vsel %vm620, %v1888, 0
        %1899 = vmatprep.subr.mxu0 0.0
        %1900 = vmatpush1.msra.mxu0 %v1879
        %1901 = vmatprep.subr.mxu0 0.0
        %1902 = vmatpush1.msra.mxu0 %v1880
        %1903 = vmatprep.subr.mxu0 0.0
        %1904 = vmatpush1.msra.mxu0 %v1881
        %1905 = vmatprep.subr.mxu0 0.0
        %1906 = vmatpush1.msra.mxu0 %v1882
        %1907 = vmatprep.subr.mxu0 0.0
        %1908 = vmatpush1.msra.mxu0 %v1883
        %1909 = vmatprep.subr.mxu0 0.0
        %1910 = vmatpush1.msra.mxu0 %v1884
        %1911 = vmatprep.subr.mxu0 0.0
        %1912 = vmatpush1.msra.mxu0 %v1885
        %1913 = vmatprep.subr.mxu0 0.0
        %1914 = vmatpush1.msra.mxu0 %v1886
        %1915 = vmatprep.subr.mxu0 0.0
        %1916 = vmatpush1.msra.mxu0 0.0
        %1917 = vmatprep.subr.mxu0 0.0
        %1918 = vmatpush1.msra.mxu0 0.0
        %1919 = vmatprep.subr.mxu0 0.0
        %1920 = vmatpush1.msra.mxu0 0.0
        %1921 = vmatprep.subr.mxu0 0.0
        %1922 = vmatpush1.msra.mxu0 0.0
        %1923 = vmatprep.subr.mxu0 0.0
        %1924 = vmatpush1.msra.mxu0 0.0
        %1925 = vmatprep.subr.mxu0 0.0
        %1926 = vmatpush1.msra.mxu0 0.0
        %1927 = vmatprep.subr.mxu0 0.0
        %1928 = vmatpush1.msra.mxu0 0.0
        %1929 = vmatprep.subr.mxu0 0.0
        %1930 = vmatpush1.msra.mxu0 0.0
        %1931 = vmatprep.subr.mxu0 0.0
        %1932 = vmatpush1.msra.mxu0 0.0
        %1933 = vmatprep.subr.mxu0 0.0
        %1934 = vmatpush1.msra.mxu0 0.0
        %1935 = vmatprep.subr.mxu0 0.0
        %1936 = vmatpush1.msra.mxu0 0.0
        %1937 = vmatprep.subr.mxu0 0.0
        %1938 = vmatpush1.msra.mxu0 0.0
        %1939 = vmatprep.subr.mxu0 0.0
        %1940 = vmatpush1.msra.mxu0 0.0
        %1941 = vmatprep.subr.mxu0 0.0
        %1942 = vmatpush1.msra.mxu0 0.0
        %1943 = vmatprep.subr.mxu0 0.0
        %1944 = vmatpush1.msra.mxu0 0.0
        %1945 = vmatprep.subr.mxu0 0.0
        %1946 = vmatpush1.msra.mxu0 0.0
        %1947 = vmatprep.subr.mxu0 0.0
        %1948 = vmatpush1.msra.mxu0 0.0
        %1949 = vmatprep.subr.mxu0 0.0
        %1950 = vmatpush1.msra.mxu0 0.0
        %1951 = vmatprep.subr.mxu0 0.0
        %1952 = vmatpush1.msra.mxu0 0.0
        %1953 = vmatprep.subr.mxu0 0.0
        %1954 = vmatpush1.msra.mxu0 0.0
        %1955 = vmatprep.subr.mxu0 0.0
        %1956 = vmatpush1.msra.mxu0 0.0
        %1957 = vmatprep.subr.mxu0 0.0
        %1958 = vmatpush1.msra.mxu0 0.0
        %1959 = vmatprep.subr.mxu0 0.0
        %1960 = vmatpush1.msra.mxu0 0.0
        %1961 = vmatprep.subr.mxu0 0.0
        %1962 = vmatpush1.msra.mxu0 0.0
        %1963 = vmatprep.mubr.f32.mxu0 0.0
        %1964 = vmatmul.mubr.f32.gmra.mrb[0].mxu0 %v1897
        %v1965 = vpop.f32.mrb[0].mxu0
        %v1966 = vadd.f32 %v1894, %v1965
        %v1967 = vpop.f32.mrb[0].mxu0
        %1968 = vdwg.mxu0
        %v1969 = vtanh.pop %v1966
        %s1970 = scalar_lea.vmem %s7, 8
        %v1971 = vld [vmem:[%s1970] sm:$0xf]
        %s1972 = scalar_lea.vmem %s8, 8
        %v1973 = vld [vmem:[%s1972] sm:$0xf]
        %1975 = vset.pattern.permute.xlu0 0
        %1976 = vperm.xlu0 %1975, %v1973
        %v1977 = vpop.permute.xlu0 %1976
        %v1980 = vsel %vm620, %v1971, 0
        %1982 = vmatprep.subr.mxu0 0.0
        %1983 = vmatpush1.msra.mxu0 %v1879
        %1984 = vmatprep.subr.mxu0 0.0
        %1985 = vmatpush1.msra.mxu0 %v1880
        %1986 = vmatprep.subr.mxu0 0.0
        %1987 = vmatpush1.msra.mxu0 %v1881
        %1988 = vmatprep.subr.mxu0 0.0
        %1989 = vmatpush1.msra.mxu0 %v1882
        %1990 = vmatprep.subr.mxu0 0.0
        %1991 = vmatpush1.msra.mxu0 %v1883
        %1992 = vmatprep.subr.mxu0 0.0
        %1993 = vmatpush1.msra.mxu0 %v1884
        %1994 = vmatprep.subr.mxu0 0.0
        %1995 = vmatpush1.msra.mxu0 %v1885
        %1996 = vmatprep.subr.mxu0 0.0
        %1997 = vmatpush1.msra.mxu0 %v1886
        %1998 = vmatprep.subr.mxu0 0.0
        %1999 = vmatpush1.msra.mxu0 0.0
        %2000 = vmatprep.subr.mxu0 0.0
        %2001 = vmatpush1.msra.mxu0 0.0
        %2002 = vmatprep.subr.mxu0 0.0
        %2003 = vmatpush1.msra.mxu0 0.0
        %2004 = vmatprep.subr.mxu0 0.0
        %2005 = vmatpush1.msra.mxu0 0.0
        %2006 = vmatprep.subr.mxu0 0.0
        %2007 = vmatpush1.msra.mxu0 0.0
        %2008 = vmatprep.subr.mxu0 0.0
        %2009 = vmatpush1.msra.mxu0 0.0
        %2010 = vmatprep.subr.mxu0 0.0
        %2011 = vmatpush1.msra.mxu0 0.0
        %2012 = vmatprep.subr.mxu0 0.0
        %2013 = vmatpush1.msra.mxu0 0.0
        %2014 = vmatprep.subr.mxu0 0.0
        %2015 = vmatpush1.msra.mxu0 0.0
        %2016 = vmatprep.subr.mxu0 0.0
        %2017 = vmatpush1.msra.mxu0 0.0
        %2018 = vmatprep.subr.mxu0 0.0
        %2019 = vmatpush1.msra.mxu0 0.0
        %2020 = vmatprep.subr.mxu0 0.0
        %2021 = vmatpush1.msra.mxu0 0.0
        %2022 = vmatprep.subr.mxu0 0.0
        %2023 = vmatpush1.msra.mxu0 0.0
        %2024 = vmatprep.subr.mxu0 0.0
        %2025 = vmatpush1.msra.mxu0 0.0
        %2026 = vmatprep.subr.mxu0 0.0
        %2027 = vmatpush1.msra.mxu0 0.0
        %2028 = vmatprep.subr.mxu0 0.0
        %2029 = vmatpush1.msra.mxu0 0.0
        %2030 = vmatprep.subr.mxu0 0.0
        %2031 = vmatpush1.msra.mxu0 0.0
        %2032 = vmatprep.subr.mxu0 0.0
        %2033 = vmatpush1.msra.mxu0 0.0
        %2034 = vmatprep.subr.mxu0 0.0
        %2035 = vmatpush1.msra.mxu0 0.0
        %2036 = vmatprep.subr.mxu0 0.0
        %2037 = vmatpush1.msra.mxu0 0.0
        %2038 = vmatprep.subr.mxu0 0.0
        %2039 = vmatpush1.msra.mxu0 0.0
        %2040 = vmatprep.subr.mxu0 0.0
        %2041 = vmatpush1.msra.mxu0 0.0
        %2042 = vmatprep.subr.mxu0 0.0
        %2043 = vmatpush1.msra.mxu0 0.0
        %2044 = vmatprep.subr.mxu0 0.0
        %2045 = vmatpush1.msra.mxu0 0.0
        %2046 = vmatprep.mubr.f32.mxu0 0.0
        %2047 = vmatmul.mubr.f32.gmra.mrb[0].mxu0 %v1980
        %v2048 = vpop.f32.mrb[0].mxu0
        %v2049 = vadd.f32 %v1977, %v2048
        %v2050 = vpop.f32.mrb[0].mxu0
        %2051 = vdwg.mxu0
        %v2052 = vmul.f32 %v1969, 1.442695
        %v2053 = vpow.pop %v2052
        %v2055 = vrot.slane %v2053, 4
        %v2057 = vmul.f32 %v928, %v2055
        %v2059 = vrot.slane %v2049, 4
        %v2061 = vadd.f32 %v2057, %v2059
        %v2062 = vadd.f32 %v1493, %v1969
        %s2063 = scalar_lea.vmem %s1, 192
        %v2064 = vld [vmem:[%s2063] sm:$0xff]
        %v2065 = vld [vmem:[%s2063 + $0x8] sm:$0xff]
        %v2066 = vld [vmem:[%s2063 + $0x10] sm:$0xff]
        %v2067 = vld [vmem:[%s2063 + $0x18] sm:$0xff]
        %v2068 = vld [vmem:[%s2063 + $0x20] sm:$0xff]
        %v2069 = vld [vmem:[%s2063 + $0x28] sm:$0xff]
        %v2070 = vld [vmem:[%s2063 + $0x30] sm:$0xff]
        %v2071 = vld [vmem:[%s2063 + $0x38] sm:$0xff]
        %s2072 = scalar_lea.vmem %s2, 192
        %v2073 = vld [vmem:[%s2072] sm:$0xff]
        %v2074 = vld [vmem:[%s2072 + $0x8] sm:$0xff]
        %v2075 = vld [vmem:[%s2072 + $0x10] sm:$0xff]
        %v2076 = vld [vmem:[%s2072 + $0x18] sm:$0xff]
        %v2077 = vld [vmem:[%s2072 + $0x20] sm:$0xff]
        %v2078 = vld [vmem:[%s2072 + $0x28] sm:$0xff]
        %v2079 = vld [vmem:[%s2072 + $0x30] sm:$0xff]
        %v2080 = vld [vmem:[%s2072 + $0x38] sm:$0xff]
        %2082 = vset.pattern.permute.xlu0 0
        %2083 = vperm.xlu0 %2082, %v2073
        %v2084 = vpop.permute.xlu0 %2083
        %2087 = vset.pattern.permute.xlu0 0
        %2088 = vperm.xlu0 %2087, %v2074
        %v2089 = vpop.permute.xlu0 %2088
        %2092 = vset.pattern.permute.xlu0 0
        %2093 = vperm.xlu0 %2092, %v2075
        %v2094 = vpop.permute.xlu0 %2093
        %2097 = vset.pattern.permute.xlu0 0
        %2098 = vperm.xlu0 %2097, %v2076
        %v2099 = vpop.permute.xlu0 %2098
        %2102 = vset.pattern.permute.xlu0 0
        %2103 = vperm.xlu0 %2102, %v2077
        %v2104 = vpop.permute.xlu0 %2103
        %2107 = vset.pattern.permute.xlu0 0
        %2108 = vperm.xlu0 %2107, %v2078
        %v2109 = vpop.permute.xlu0 %2108
        %2112 = vset.pattern.permute.xlu0 0
        %2113 = vperm.xlu0 %2112, %v2079
        %v2114 = vpop.permute.xlu0 %2113
        %2117 = vset.pattern.permute.xlu0 0
        %2118 = vperm.xlu0 %2117, %v2080
        %v2119 = vpop.permute.xlu0 %2118
        %v2122 = vrot.slane %v2061, 4
        %v2124 = vsel %vm422, %v2064, 0
        %v2127 = vsel %vm422, %v2065, 0
        %v2130 = vsel %vm422, %v2066, 0
        %v2133 = vsel %vm422, %v2067, 0
        %v2136 = vsel %vm422, %v2068, 0
        %v2139 = vsel %vm422, %v2069, 0
        %v2142 = vsel %vm422, %v2070, 0
        %v2145 = vsel %vm422, %v2071, 0
        %v2147 = vsel %vm447, %v2122, 0
        %2149 = vmatprep.subr.mxu0 0.0
        %2150 = vmatpush1.msra.mxu0 %v2147
        %2151 = vmatprep.subr.mxu0 0.0
        %2152 = vmatpush1.msra.mxu0 0.0
        %2153 = vmatprep.subr.mxu0 0.0
        %2154 = vmatpush1.msra.mxu0 0.0
        %2155 = vmatprep.subr.mxu0 0.0
        %2156 = vmatpush1.msra.mxu0 0.0
        %2157 = vmatprep.subr.mxu0 0.0
        %2158 = vmatpush1.msra.mxu0 0.0
        %2159 = vmatprep.subr.mxu0 0.0
        %2160 = vmatpush1.msra.mxu0 0.0
        %2161 = vmatprep.subr.mxu0 0.0
        %2162 = vmatpush1.msra.mxu0 0.0
        %2163 = vmatprep.subr.mxu0 0.0
        %2164 = vmatpush1.msra.mxu0 0.0
        %2165 = vmatprep.subr.mxu0 0.0
        %2166 = vmatpush1.msra.mxu0 0.0
        %2167 = vmatprep.subr.mxu0 0.0
        %2168 = vmatpush1.msra.mxu0 0.0
        %2169 = vmatprep.subr.mxu0 0.0
        %2170 = vmatpush1.msra.mxu0 0.0
        %2171 = vmatprep.subr.mxu0 0.0
        %2172 = vmatpush1.msra.mxu0 0.0
        %2173 = vmatprep.subr.mxu0 0.0
        %2174 = vmatpush1.msra.mxu0 0.0
        %2175 = vmatprep.subr.mxu0 0.0
        %2176 = vmatpush1.msra.mxu0 0.0
        %2177 = vmatprep.subr.mxu0 0.0
        %2178 = vmatpush1.msra.mxu0 0.0
        %2179 = vmatprep.subr.mxu0 0.0
        %2180 = vmatpush1.msra.mxu0 0.0
        %2181 = vmatprep.subr.mxu0 0.0
        %2182 = vmatpush1.msra.mxu0 0.0
        %2183 = vmatprep.subr.mxu0 0.0
        %2184 = vmatpush1.msra.mxu0 0.0
        %2185 = vmatprep.subr.mxu0 0.0
        %2186 = vmatpush1.msra.mxu0 0.0
        %2187 = vmatprep.subr.mxu0 0.0
        %2188 = vmatpush1.msra.mxu0 0.0
        %2189 = vmatprep.subr.mxu0 0.0
        %2190 = vmatpush1.msra.mxu0 0.0
        %2191 = vmatprep.subr.mxu0 0.0
        %2192 = vmatpush1.msra.mxu0 0.0
        %2193 = vmatprep.subr.mxu0 0.0
        %2194 = vmatpush1.msra.mxu0 0.0
        %2195 = vmatprep.subr.mxu0 0.0
        %2196 = vmatpush1.msra.mxu0 0.0
        %2197 = vmatprep.subr.mxu0 0.0
        %2198 = vmatpush1.msra.mxu0 0.0
        %2199 = vmatprep.subr.mxu0 0.0
        %2200 = vmatpush1.msra.mxu0 0.0
        %2201 = vmatprep.subr.mxu0 0.0
        %2202 = vmatpush1.msra.mxu0 0.0
        %2203 = vmatprep.subr.mxu0 0.0
        %2204 = vmatpush1.msra.mxu0 0.0
        %2205 = vmatprep.subr.mxu0 0.0
        %2206 = vmatpush1.msra.mxu0 0.0
        %2207 = vmatprep.subr.mxu0 0.0
        %2208 = vmatpush1.msra.mxu0 0.0
        %2209 = vmatprep.subr.mxu0 0.0
        %2210 = vmatpush1.msra.mxu0 0.0
        %2211 = vmatprep.subr.mxu0 0.0
        %2212 = vmatpush1.msra.mxu0 0.0
        %2213 = vmatprep.mubr.f32.mxu0 0.0
        %2214 = vmatmul.mubr.f32.gmra.mrb[0].mxu0 %v2124
        %v2215 = vpop.f32.mrb[0].mxu0
        %v2216 = vadd.f32 %v2084, %v2215
        %v2217 = vpop.f32.mrb[0].mxu0
        %2218 = vmatprep.mubr.f32.mxu0 0.0
        %2219 = vmatmul.mubr.f32.gmra.mrb[0].mxu0 %v2127
        %v2220 = vpop.f32.mrb[0].mxu0
        %v2221 = vadd.f32 %v2089, %v2220
        %v2222 = vpop.f32.mrb[0].mxu0
        %2223 = vmatprep.mubr.f32.mxu0 0.0
        %2224 = vmatmul.mubr.f32.gmra.mrb[0].mxu0 %v2130
        %v2225 = vpop.f32.mrb[0].mxu0
        %v2226 = vadd.f32 %v2094, %v2225
        %v2227 = vpop.f32.mrb[0].mxu0
        %2228 = vmatprep.mubr.f32.mxu0 0.0
        %2229 = vmatmul.mubr.f32.gmra.mrb[0].mxu0 %v2133
        %v2230 = vpop.f32.mrb[0].mxu0
        %v2231 = vadd.f32 %v2099, %v2230
        %v2232 = vpop.f32.mrb[0].mxu0
        %2233 = vmatprep.mubr.f32.mxu0 0.0
        %2234 = vmatmul.mubr.f32.gmra.mrb[0].mxu0 %v2136
        %v2235 = vpop.f32.mrb[0].mxu0
        %v2236 = vadd.f32 %v2104, %v2235
        %v2237 = vpop.f32.mrb[0].mxu0
        %2238 = vmatprep.mubr.f32.mxu0 0.0
        %2239 = vmatmul.mubr.f32.gmra.mrb[0].mxu0 %v2139
        %v2240 = vpop.f32.mrb[0].mxu0
        %v2241 = vadd.f32 %v2109, %v2240
        %v2242 = vpop.f32.mrb[0].mxu0
        %2243 = vmatprep.mubr.f32.mxu0 0.0
        %2244 = vmatmul.mubr.f32.gmra.mrb[0].mxu0 %v2142
        %v2245 = vpop.f32.mrb[0].mxu0
        %v2246 = vadd.f32 %v2114, %v2245
        %v2247 = vpop.f32.mrb[0].mxu0
        %2248 = vmatprep.mubr.f32.mxu0 0.0
        %2249 = vmatmul.mubr.f32.gmra.mrb[0].mxu0 %v2145
        %v2250 = vpop.f32.mrb[0].mxu0
        %v2251 = vadd.f32 %v2119, %v2250
        %v2252 = vpop.f32.mrb[0].mxu0
        %2253 = vdwg.mxu0
        %v2254 = vmax.f32 %v2216, 0.0
        %v2255 = vmax.f32 %v2221, 0.0
        %v2256 = vmax.f32 %v2226, 0.0
        %v2257 = vmax.f32 %v2231, 0.0
        %v2258 = vmax.f32 %v2236, 0.0
        %v2259 = vmax.f32 %v2241, 0.0
        %v2260 = vmax.f32 %v2246, 0.0
        %v2261 = vmax.f32 %v2251, 0.0
        %s2262 = scalar_lea.vmem %s3, 192
        %v2263 = vld [vmem:[%s2262] sm:$0xff]
        %v2264 = vld [vmem:[%s2262 + $0x8] sm:$0xff]
        %v2265 = vld [vmem:[%s2262 + $0x10] sm:$0xff]
        %v2266 = vld [vmem:[%s2262 + $0x18] sm:$0xff]
        %v2267 = vld [vmem:[%s2262 + $0x20] sm:$0xff]
        %v2268 = vld [vmem:[%s2262 + $0x28] sm:$0xff]
        %v2269 = vld [vmem:[%s2262 + $0x30] sm:$0xff]
        %v2270 = vld [vmem:[%s2262 + $0x38] sm:$0xff]
        %s2271 = scalar_lea.vmem %s4, 192
        %v2272 = vld [vmem:[%s2271] sm:$0xff]
        %v2273 = vld [vmem:[%s2271 + $0x8] sm:$0xff]
        %v2274 = vld [vmem:[%s2271 + $0x10] sm:$0xff]
        %v2275 = vld [vmem:[%s2271 + $0x18] sm:$0xff]
        %v2276 = vld [vmem:[%s2271 + $0x20] sm:$0xff]
        %v2277 = vld [vmem:[%s2271 + $0x28] sm:$0xff]
        %v2278 = vld [vmem:[%s2271 + $0x30] sm:$0xff]
        %v2279 = vld [vmem:[%s2271 + $0x38] sm:$0xff]
        %2281 = vset.pattern.permute.xlu0 0
        %2282 = vperm.xlu0 %2281, %v2272
        %v2283 = vpop.permute.xlu0 %2282
        %2286 = vset.pattern.permute.xlu0 0
        %2287 = vperm.xlu0 %2286, %v2273
        %v2288 = vpop.permute.xlu0 %2287
        %2291 = vset.pattern.permute.xlu0 0
        %2292 = vperm.xlu0 %2291, %v2274
        %v2293 = vpop.permute.xlu0 %2292
        %2296 = vset.pattern.permute.xlu0 0
        %2297 = vperm.xlu0 %2296, %v2275
        %v2298 = vpop.permute.xlu0 %2297
        %2301 = vset.pattern.permute.xlu0 0
        %2302 = vperm.xlu0 %2301, %v2276
        %v2303 = vpop.permute.xlu0 %2302
        %2306 = vset.pattern.permute.xlu0 0
        %2307 = vperm.xlu0 %2306, %v2277
        %v2308 = vpop.permute.xlu0 %2307
        %2311 = vset.pattern.permute.xlu0 0
        %2312 = vperm.xlu0 %2311, %v2278
        %v2313 = vpop.permute.xlu0 %2312
        %2316 = vset.pattern.permute.xlu0 0
        %2317 = vperm.xlu0 %2316, %v2279
        %v2318 = vpop.permute.xlu0 %2317
        %v2321 = vsel %vm620, %v2263, 0
        %v2324 = vsel %vm620, %v2264, 0
        %v2327 = vsel %vm620, %v2265, 0
        %v2330 = vsel %vm620, %v2266, 0
        %v2333 = vsel %vm620, %v2267, 0
        %v2336 = vsel %vm620, %v2268, 0
        %v2339 = vsel %vm620, %v2269, 0
        %v2342 = vsel %vm620, %v2270, 0
        %2344 = vmatprep.subr.mxu0 0.0
        %2345 = vmatpush1.msra.mxu0 %v2254
        %2346 = vmatprep.subr.mxu0 0.0
        %2347 = vmatpush1.msra.mxu0 %v2255
        %2348 = vmatprep.subr.mxu0 0.0
        %2349 = vmatpush1.msra.mxu0 %v2256
        %2350 = vmatprep.subr.mxu0 0.0
        %2351 = vmatpush1.msra.mxu0 %v2257
        %2352 = vmatprep.subr.mxu0 0.0
        %2353 = vmatpush1.msra.mxu0 %v2258
        %2354 = vmatprep.subr.mxu0 0.0
        %2355 = vmatpush1.msra.mxu0 %v2259
        %2356 = vmatprep.subr.mxu0 0.0
        %2357 = vmatpush1.msra.mxu0 %v2260
        %2358 = vmatprep.subr.mxu0 0.0
        %2359 = vmatpush1.msra.mxu0 %v2261
        %2360 = vmatprep.subr.mxu0 0.0
        %2361 = vmatpush1.msra.mxu0 0.0
        %2362 = vmatprep.subr.mxu0 0.0
        %2363 = vmatpush1.msra.mxu0 0.0
        %2364 = vmatprep.subr.mxu0 0.0
        %2365 = vmatpush1.msra.mxu0 0.0
        %2366 = vmatprep.subr.mxu0 0.0
        %2367 = vmatpush1.msra.mxu0 0.0
        %2368 = vmatprep.subr.mxu0 0.0
        %2369 = vmatpush1.msra.mxu0 0.0
        %2370 = vmatprep.subr.mxu0 0.0
        %2371 = vmatpush1.msra.mxu0 0.0
        %2372 = vmatprep.subr.mxu0 0.0
        %2373 = vmatpush1.msra.mxu0 0.0
        %2374 = vmatprep.subr.mxu0 0.0
        %2375 = vmatpush1.msra.mxu0 0.0
        %2376 = vmatprep.subr.mxu0 0.0
        %2377 = vmatpush1.msra.mxu0 0.0
        %2378 = vmatprep.subr.mxu0 0.0
        %2379 = vmatpush1.msra.mxu0 0.0
        %2380 = vmatprep.subr.mxu0 0.0
        %2381 = vmatpush1.msra.mxu0 0.0
        %2382 = vmatprep.subr.mxu0 0.0
        %2383 = vmatpush1.msra.mxu0 0.0
        %2384 = vmatprep.subr.mxu0 0.0
        %2385 = vmatpush1.msra.mxu0 0.0
        %2386 = vmatprep.subr.mxu0 0.0
        %2387 = vmatpush1.msra.mxu0 0.0
        %2388 = vmatprep.subr.mxu0 0.0
        %2389 = vmatpush1.msra.mxu0 0.0
        %2390 = vmatprep.subr.mxu0 0.0
        %2391 = vmatpush1.msra.mxu0 0.0
        %2392 = vmatprep.subr.mxu0 0.0
        %2393 = vmatpush1.msra.mxu0 0.0
        %2394 = vmatprep.subr.mxu0 0.0
        %2395 = vmatpush1.msra.mxu0 0.0
        %2396 = vmatprep.subr.mxu0 0.0
        %2397 = vmatpush1.msra.mxu0 0.0
        %2398 = vmatprep.subr.mxu0 0.0
        %2399 = vmatpush1.msra.mxu0 0.0
        %2400 = vmatprep.subr.mxu0 0.0
        %2401 = vmatpush1.msra.mxu0 0.0
        %2402 = vmatprep.subr.mxu0 0.0
        %2403 = vmatpush1.msra.mxu0 0.0
        %2404 = vmatprep.subr.mxu0 0.0
        %2405 = vmatpush1.msra.mxu0 0.0
        %2406 = vmatprep.subr.mxu0 0.0
        %2407 = vmatpush1.msra.mxu0 0.0
        %2408 = vmatprep.mubr.f32.mxu0 0.0
        %2409 = vmatmul.mubr.f32.gmra.mrb[0].mxu0 %v2321
        %v2410 = vpop.f32.mrb[0].mxu0
        %v2411 = vadd.f32 %v2283, %v2410
        %v2412 = vpop.f32.mrb[0].mxu0
        %2413 = vmatprep.mubr.f32.mxu0 0.0
        %2414 = vmatmul.mubr.f32.gmra.mrb[0].mxu0 %v2324
        %v2415 = vpop.f32.mrb[0].mxu0
        %v2416 = vadd.f32 %v2288, %v2415
        %v2417 = vpop.f32.mrb[0].mxu0
        %2418 = vmatprep.mubr.f32.mxu0 0.0
        %2419 = vmatmul.mubr.f32.gmra.mrb[0].mxu0 %v2327
        %v2420 = vpop.f32.mrb[0].mxu0
        %v2421 = vadd.f32 %v2293, %v2420
        %v2422 = vpop.f32.mrb[0].mxu0
        %2423 = vmatprep.mubr.f32.mxu0 0.0
        %2424 = vmatmul.mubr.f32.gmra.mrb[0].mxu0 %v2330
        %v2425 = vpop.f32.mrb[0].mxu0
        %v2426 = vadd.f32 %v2298, %v2425
        %v2427 = vpop.f32.mrb[0].mxu0
        %2428 = vmatprep.mubr.f32.mxu0 0.0
        %2429 = vmatmul.mubr.f32.gmra.mrb[0].mxu0 %v2333
        %v2430 = vpop.f32.mrb[0].mxu0
        %v2431 = vadd.f32 %v2303, %v2430
        %v2432 = vpop.f32.mrb[0].mxu0
        %2433 = vmatprep.mubr.f32.mxu0 0.0
        %2434 = vmatmul.mubr.f32.gmra.mrb[0].mxu0 %v2336
        %v2435 = vpop.f32.mrb[0].mxu0
        %v2436 = vadd.f32 %v2308, %v2435
        %v2437 = vpop.f32.mrb[0].mxu0
        %2438 = vmatprep.mubr.f32.mxu0 0.0
        %2439 = vmatmul.mubr.f32.gmra.mrb[0].mxu0 %v2339
        %v2440 = vpop.f32.mrb[0].mxu0
        %v2441 = vadd.f32 %v2313, %v2440
        %v2442 = vpop.f32.mrb[0].mxu0
        %2443 = vmatprep.mubr.f32.mxu0 0.0
        %2444 = vmatmul.mubr.f32.gmra.mrb[0].mxu0 %v2342
        %v2445 = vpop.f32.mrb[0].mxu0
        %v2446 = vadd.f32 %v2318, %v2445
        %v2447 = vpop.f32.mrb[0].mxu0
        %2448 = vdwg.mxu0
        %v2449 = vmax.f32 %v2411, 0.0
        %v2450 = vmax.f32 %v2416, 0.0
        %v2451 = vmax.f32 %v2421, 0.0
        %v2452 = vmax.f32 %v2426, 0.0
        %v2453 = vmax.f32 %v2431, 0.0
        %v2454 = vmax.f32 %v2436, 0.0
        %v2455 = vmax.f32 %v2441, 0.0
        %v2456 = vmax.f32 %v2446, 0.0
        %s2457 = scalar_lea.vmem %s5, 12
        %v2458 = vld [vmem:[%s2457] sm:$0xf]
        %s2459 = scalar_lea.vmem %s6, 12
        %v2460 = vld [vmem:[%s2459] sm:$0xf]
        %2462 = vset.pattern.permute.xlu0 0
        %2463 = vperm.xlu0 %2462, %v2460
        %v2464 = vpop.permute.xlu0 %2463
        %v2467 = vsel %vm620, %v2458, 0
        %2469 = vmatprep.subr.mxu0 0.0
        %2470 = vmatpush1.msra.mxu0 %v2449
        %2471 = vmatprep.subr.mxu0 0.0
        %2472 = vmatpush1.msra.mxu0 %v2450
        %2473 = vmatprep.subr.mxu0 0.0
        %2474 = vmatpush1.msra.mxu0 %v2451
        %2475 = vmatprep.subr.mxu0 0.0
        %2476 = vmatpush1.msra.mxu0 %v2452
        %2477 = vmatprep.subr.mxu0 0.0
        %2478 = vmatpush1.msra.mxu0 %v2453
        %2479 = vmatprep.subr.mxu0 0.0
        %2480 = vmatpush1.msra.mxu0 %v2454
        %2481 = vmatprep.subr.mxu0 0.0
        %2482 = vmatpush1.msra.mxu0 %v2455
        %2483 = vmatprep.subr.mxu0 0.0
        %2484 = vmatpush1.msra.mxu0 %v2456
        %2485 = vmatprep.subr.mxu0 0.0
        %2486 = vmatpush1.msra.mxu0 0.0
        %2487 = vmatprep.subr.mxu0 0.0
        %2488 = vmatpush1.msra.mxu0 0.0
        %2489 = vmatprep.subr.mxu0 0.0
        %2490 = vmatpush1.msra.mxu0 0.0
        %2491 = vmatprep.subr.mxu0 0.0
        %2492 = vmatpush1.msra.mxu0 0.0
        %2493 = vmatprep.subr.mxu0 0.0
        %2494 = vmatpush1.msra.mxu0 0.0
        %2495 = vmatprep.subr.mxu0 0.0
        %2496 = vmatpush1.msra.mxu0 0.0
        %2497 = vmatprep.subr.mxu0 0.0
        %2498 = vmatpush1.msra.mxu0 0.0
        %2499 = vmatprep.subr.mxu0 0.0
        %2500 = vmatpush1.msra.mxu0 0.0
        %2501 = vmatprep.subr.mxu0 0.0
        %2502 = vmatpush1.msra.mxu0 0.0
        %2503 = vmatprep.subr.mxu0 0.0
        %2504 = vmatpush1.msra.mxu0 0.0
        %2505 = vmatprep.subr.mxu0 0.0
        %2506 = vmatpush1.msra.mxu0 0.0
        %2507 = vmatprep.subr.mxu0 0.0
        %2508 = vmatpush1.msra.mxu0 0.0
        %2509 = vmatprep.subr.mxu0 0.0
        %2510 = vmatpush1.msra.mxu0 0.0
        %2511 = vmatprep.subr.mxu0 0.0
        %2512 = vmatpush1.msra.mxu0 0.0
        %2513 = vmatprep.subr.mxu0 0.0
        %2514 = vmatpush1.msra.mxu0 0.0
        %2515 = vmatprep.subr.mxu0 0.0
        %2516 = vmatpush1.msra.mxu0 0.0
        %2517 = vmatprep.subr.mxu0 0.0
        %2518 = vmatpush1.msra.mxu0 0.0
        %2519 = vmatprep.subr.mxu0 0.0
        %2520 = vmatpush1.msra.mxu0 0.0
        %2521 = vmatprep.subr.mxu0 0.0
        %2522 = vmatpush1.msra.mxu0 0.0
        %2523 = vmatprep.subr.mxu0 0.0
        %2524 = vmatpush1.msra.mxu0 0.0
        %2525 = vmatprep.subr.mxu0 0.0
        %2526 = vmatpush1.msra.mxu0 0.0
        %2527 = vmatprep.subr.mxu0 0.0
        %2528 = vmatpush1.msra.mxu0 0.0
        %2529 = vmatprep.subr.mxu0 0.0
        %2530 = vmatpush1.msra.mxu0 0.0
        %2531 = vmatprep.subr.mxu0 0.0
        %2532 = vmatpush1.msra.mxu0 0.0
        %2533 = vmatprep.mubr.f32.mxu0 0.0
        %2534 = vmatmul.mubr.f32.gmra.mrb[0].mxu0 %v2467
        %v2535 = vpop.f32.mrb[0].mxu0
        %v2536 = vadd.f32 %v2464, %v2535
        %v2537 = vpop.f32.mrb[0].mxu0
        %2538 = vdwg.mxu0
        %v2539 = vtanh.pop %v2536
        %s2540 = scalar_lea.vmem %s7, 12
        %v2541 = vld [vmem:[%s2540] sm:$0xf]
        %s2542 = scalar_lea.vmem %s8, 12
        %v2543 = vld [vmem:[%s2542] sm:$0xf]
        %2545 = vset.pattern.permute.xlu0 0
        %2546 = vperm.xlu0 %2545, %v2543
        %v2547 = vpop.permute.xlu0 %2546
        %v2550 = vsel %vm620, %v2541, 0
        %2552 = vmatprep.subr.mxu0 0.0
        %2553 = vmatpush1.msra.mxu0 %v2449
        %2554 = vmatprep.subr.mxu0 0.0
        %2555 = vmatpush1.msra.mxu0 %v2450
        %2556 = vmatprep.subr.mxu0 0.0
        %2557 = vmatpush1.msra.mxu0 %v2451
        %2558 = vmatprep.subr.mxu0 0.0
        %2559 = vmatpush1.msra.mxu0 %v2452
        %2560 = vmatprep.subr.mxu0 0.0
        %2561 = vmatpush1.msra.mxu0 %v2453
        %2562 = vmatprep.subr.mxu0 0.0
        %2563 = vmatpush1.msra.mxu0 %v2454
        %2564 = vmatprep.subr.mxu0 0.0
        %2565 = vmatpush1.msra.mxu0 %v2455
        %2566 = vmatprep.subr.mxu0 0.0
        %2567 = vmatpush1.msra.mxu0 %v2456
        %2568 = vmatprep.subr.mxu0 0.0
        %2569 = vmatpush1.msra.mxu0 0.0
        %2570 = vmatprep.subr.mxu0 0.0
        %2571 = vmatpush1.msra.mxu0 0.0
        %2572 = vmatprep.subr.mxu0 0.0
        %2573 = vmatpush1.msra.mxu0 0.0
        %2574 = vmatprep.subr.mxu0 0.0
        %2575 = vmatpush1.msra.mxu0 0.0
        %2576 = vmatprep.subr.mxu0 0.0
        %2577 = vmatpush1.msra.mxu0 0.0
        %2578 = vmatprep.subr.mxu0 0.0
        %2579 = vmatpush1.msra.mxu0 0.0
        %2580 = vmatprep.subr.mxu0 0.0
        %2581 = vmatpush1.msra.mxu0 0.0
        %2582 = vmatprep.subr.mxu0 0.0
        %2583 = vmatpush1.msra.mxu0 0.0
        %2584 = vmatprep.subr.mxu0 0.0
        %2585 = vmatpush1.msra.mxu0 0.0
        %2586 = vmatprep.subr.mxu0 0.0
        %2587 = vmatpush1.msra.mxu0 0.0
        %2588 = vmatprep.subr.mxu0 0.0
        %2589 = vmatpush1.msra.mxu0 0.0
        %2590 = vmatprep.subr.mxu0 0.0
        %2591 = vmatpush1.msra.mxu0 0.0
        %2592 = vmatprep.subr.mxu0 0.0
        %2593 = vmatpush1.msra.mxu0 0.0
        %2594 = vmatprep.subr.mxu0 0.0
        %2595 = vmatpush1.msra.mxu0 0.0
        %2596 = vmatprep.subr.mxu0 0.0
        %2597 = vmatpush1.msra.mxu0 0.0
        %2598 = vmatprep.subr.mxu0 0.0
        %2599 = vmatpush1.msra.mxu0 0.0
        %2600 = vmatprep.subr.mxu0 0.0
        %2601 = vmatpush1.msra.mxu0 0.0
        %2602 = vmatprep.subr.mxu0 0.0
        %2603 = vmatpush1.msra.mxu0 0.0
        %2604 = vmatprep.subr.mxu0 0.0
        %2605 = vmatpush1.msra.mxu0 0.0
        %2606 = vmatprep.subr.mxu0 0.0
        %2607 = vmatpush1.msra.mxu0 0.0
        %2608 = vmatprep.subr.mxu0 0.0
        %2609 = vmatpush1.msra.mxu0 0.0
        %2610 = vmatprep.subr.mxu0 0.0
        %2611 = vmatpush1.msra.mxu0 0.0
        %2612 = vmatprep.subr.mxu0 0.0
        %2613 = vmatpush1.msra.mxu0 0.0
        %2614 = vmatprep.subr.mxu0 0.0
        %2615 = vmatpush1.msra.mxu0 0.0
        %2616 = vmatprep.mubr.f32.mxu0 0.0
        %2617 = vmatmul.mubr.f32.gmra.mrb[0].mxu0 %v2550
        %v2618 = vpop.f32.mrb[0].mxu0
        %v2619 = vadd.f32 %v2547, %v2618
        %v2620 = vpop.f32.mrb[0].mxu0
        %2621 = vdwg.mxu0
        %v2622 = vmul.f32 %v2539, 1.442695
        %v2623 = vpow.pop %v2622
        %v2624 = vmul.f32 %v1492, %v2623
        %v2625 = vadd.f32 %v2624, %v2619
        %v2626 = vadd.f32 %v2062, %v2539
        %s2627 = scalar_lea.vmem %s1, 256
        %v2628 = vld [vmem:[%s2627] sm:$0xff]
        %v2629 = vld [vmem:[%s2627 + $0x8] sm:$0xff]
        %v2630 = vld [vmem:[%s2627 + $0x10] sm:$0xff]
        %v2631 = vld [vmem:[%s2627 + $0x18] sm:$0xff]
        %v2632 = vld [vmem:[%s2627 + $0x20] sm:$0xff]
        %v2633 = vld [vmem:[%s2627 + $0x28] sm:$0xff]
        %v2634 = vld [vmem:[%s2627 + $0x30] sm:$0xff]
        %v2635 = vld [vmem:[%s2627 + $0x38] sm:$0xff]
        %s2636 = scalar_lea.vmem %s2, 256
        %v2637 = vld [vmem:[%s2636] sm:$0xff]
        %v2638 = vld [vmem:[%s2636 + $0x8] sm:$0xff]
        %v2639 = vld [vmem:[%s2636 + $0x10] sm:$0xff]
        %v2640 = vld [vmem:[%s2636 + $0x18] sm:$0xff]
        %v2641 = vld [vmem:[%s2636 + $0x20] sm:$0xff]
        %v2642 = vld [vmem:[%s2636 + $0x28] sm:$0xff]
        %v2643 = vld [vmem:[%s2636 + $0x30] sm:$0xff]
        %v2644 = vld [vmem:[%s2636 + $0x38] sm:$0xff]
        %2646 = vset.pattern.permute.xlu0 0
        %2647 = vperm.xlu0 %2646, %v2637
        %v2648 = vpop.permute.xlu0 %2647
        %2651 = vset.pattern.permute.xlu0 0
        %2652 = vperm.xlu0 %2651, %v2638
        %v2653 = vpop.permute.xlu0 %2652
        %2656 = vset.pattern.permute.xlu0 0
        %2657 = vperm.xlu0 %2656, %v2639
        %v2658 = vpop.permute.xlu0 %2657
        %2661 = vset.pattern.permute.xlu0 0
        %2662 = vperm.xlu0 %2661, %v2640
        %v2663 = vpop.permute.xlu0 %2662
        %2666 = vset.pattern.permute.xlu0 0
        %2667 = vperm.xlu0 %2666, %v2641
        %v2668 = vpop.permute.xlu0 %2667
        %2671 = vset.pattern.permute.xlu0 0
        %2672 = vperm.xlu0 %2671, %v2642
        %v2673 = vpop.permute.xlu0 %2672
        %2676 = vset.pattern.permute.xlu0 0
        %2677 = vperm.xlu0 %2676, %v2643
        %v2678 = vpop.permute.xlu0 %2677
        %2681 = vset.pattern.permute.xlu0 0
        %2682 = vperm.xlu0 %2681, %v2644
        %v2683 = vpop.permute.xlu0 %2682
        %v2686 = vsel %vm422, %v2628, 0
        %v2689 = vsel %vm422, %v2629, 0
        %v2692 = vsel %vm422, %v2630, 0
        %v2695 = vsel %vm422, %v2631, 0
        %v2698 = vsel %vm422, %v2632, 0
        %v2701 = vsel %vm422, %v2633, 0
        %v2704 = vsel %vm422, %v2634, 0
        %v2707 = vsel %vm422, %v2635, 0
        %v2710 = vsel %vm447, %v2625, 0
        %2712 = vmatprep.subr.mxu0 0.0
        %2713 = vmatpush1.msra.mxu0 %v2710
        %2714 = vmatprep.subr.mxu0 0.0
        %2715 = vmatpush1.msra.mxu0 0.0
        %2716 = vmatprep.subr.mxu0 0.0
        %2717 = vmatpush1.msra.mxu0 0.0
        %2718 = vmatprep.subr.mxu0 0.0
        %2719 = vmatpush1.msra.mxu0 0.0
        %2720 = vmatprep.subr.mxu0 0.0
        %2721 = vmatpush1.msra.mxu0 0.0
        %2722 = vmatprep.subr.mxu0 0.0
        %2723 = vmatpush1.msra.mxu0 0.0
        %2724 = vmatprep.subr.mxu0 0.0
        %2725 = vmatpush1.msra.mxu0 0.0
        %2726 = vmatprep.subr.mxu0 0.0
        %2727 = vmatpush1.msra.mxu0 0.0
        %2728 = vmatprep.subr.mxu0 0.0
        %2729 = vmatpush1.msra.mxu0 0.0
        %2730 = vmatprep.subr.mxu0 0.0
        %2731 = vmatpush1.msra.mxu0 0.0
        %2732 = vmatprep.subr.mxu0 0.0
        %2733 = vmatpush1.msra.mxu0 0.0
        %2734 = vmatprep.subr.mxu0 0.0
        %2735 = vmatpush1.msra.mxu0 0.0
        %2736 = vmatprep.subr.mxu0 0.0
        %2737 = vmatpush1.msra.mxu0 0.0
        %2738 = vmatprep.subr.mxu0 0.0
        %2739 = vmatpush1.msra.mxu0 0.0
        %2740 = vmatprep.subr.mxu0 0.0
        %2741 = vmatpush1.msra.mxu0 0.0
        %2742 = vmatprep.subr.mxu0 0.0
        %2743 = vmatpush1.msra.mxu0 0.0
        %2744 = vmatprep.subr.mxu0 0.0
        %2745 = vmatpush1.msra.mxu0 0.0
        %2746 = vmatprep.subr.mxu0 0.0
        %2747 = vmatpush1.msra.mxu0 0.0
        %2748 = vmatprep.subr.mxu0 0.0
        %2749 = vmatpush1.msra.mxu0 0.0
        %2750 = vmatprep.subr.mxu0 0.0
        %2751 = vmatpush1.msra.mxu0 0.0
        %2752 = vmatprep.subr.mxu0 0.0
        %2753 = vmatpush1.msra.mxu0 0.0
        %2754 = vmatprep.subr.mxu0 0.0
        %2755 = vmatpush1.msra.mxu0 0.0
        %2756 = vmatprep.subr.mxu0 0.0
        %2757 = vmatpush1.msra.mxu0 0.0
        %2758 = vmatprep.subr.mxu0 0.0
        %2759 = vmatpush1.msra.mxu0 0.0
        %2760 = vmatprep.subr.mxu0 0.0
        %2761 = vmatpush1.msra.mxu0 0.0
        %2762 = vmatprep.subr.mxu0 0.0
        %2763 = vmatpush1.msra.mxu0 0.0
        %2764 = vmatprep.subr.mxu0 0.0
        %2765 = vmatpush1.msra.mxu0 0.0
        %2766 = vmatprep.subr.mxu0 0.0
        %2767 = vmatpush1.msra.mxu0 0.0
        %2768 = vmatprep.subr.mxu0 0.0
        %2769 = vmatpush1.msra.mxu0 0.0
        %2770 = vmatprep.subr.mxu0 0.0
        %2771 = vmatpush1.msra.mxu0 0.0
        %2772 = vmatprep.subr.mxu0 0.0
        %2773 = vmatpush1.msra.mxu0 0.0
        %2774 = vmatprep.subr.mxu0 0.0
        %2775 = vmatpush1.msra.mxu0 0.0
        %2776 = vmatprep.mubr.f32.mxu0 0.0
        %2777 = vmatmul.mubr.f32.gmra.mrb[0].mxu0 %v2686
        %v2778 = vpop.f32.mrb[0].mxu0
        %v2779 = vadd.f32 %v2648, %v2778
        %v2780 = vpop.f32.mrb[0].mxu0
        %2781 = vmatprep.mubr.f32.mxu0 0.0
        %2782 = vmatmul.mubr.f32.gmra.mrb[0].mxu0 %v2689
        %v2783 = vpop.f32.mrb[0].mxu0
        %v2784 = vadd.f32 %v2653, %v2783
        %v2785 = vpop.f32.mrb[0].mxu0
        %2786 = vmatprep.mubr.f32.mxu0 0.0
        %2787 = vmatmul.mubr.f32.gmra.mrb[0].mxu0 %v2692
        %v2788 = vpop.f32.mrb[0].mxu0
        %v2789 = vadd.f32 %v2658, %v2788
        %v2790 = vpop.f32.mrb[0].mxu0
        %2791 = vmatprep.mubr.f32.mxu0 0.0
        %2792 = vmatmul.mubr.f32.gmra.mrb[0].mxu0 %v2695
        %v2793 = vpop.f32.mrb[0].mxu0
        %v2794 = vadd.f32 %v2663, %v2793
        %v2795 = vpop.f32.mrb[0].mxu0
        %2796 = vmatprep.mubr.f32.mxu0 0.0
        %2797 = vmatmul.mubr.f32.gmra.mrb[0].mxu0 %v2698
        %v2798 = vpop.f32.mrb[0].mxu0
        %v2799 = vadd.f32 %v2668, %v2798
        %v2800 = vpop.f32.mrb[0].mxu0
        %2801 = vmatprep.mubr.f32.mxu0 0.0
        %2802 = vmatmul.mubr.f32.gmra.mrb[0].mxu0 %v2701
        %v2803 = vpop.f32.mrb[0].mxu0
        %v2804 = vadd.f32 %v2673, %v2803
        %v2805 = vpop.f32.mrb[0].mxu0
        %2806 = vmatprep.mubr.f32.mxu0 0.0
        %2807 = vmatmul.mubr.f32.gmra.mrb[0].mxu0 %v2704
        %v2808 = vpop.f32.mrb[0].mxu0
        %v2809 = vadd.f32 %v2678, %v2808
        %v2810 = vpop.f32.mrb[0].mxu0
        %2811 = vmatprep.mubr.f32.mxu0 0.0
        %2812 = vmatmul.mubr.f32.gmra.mrb[0].mxu0 %v2707
        %v2813 = vpop.f32.mrb[0].mxu0
        %v2814 = vadd.f32 %v2683, %v2813
        %v2815 = vpop.f32.mrb[0].mxu0
        %2816 = vdwg.mxu0
        %v2817 = vmax.f32 %v2779, 0.0
        %v2818 = vmax.f32 %v2784, 0.0
        %v2819 = vmax.f32 %v2789, 0.0
        %v2820 = vmax.f32 %v2794, 0.0
        %v2821 = vmax.f32 %v2799, 0.0
        %v2822 = vmax.f32 %v2804, 0.0
        %v2823 = vmax.f32 %v2809, 0.0
        %v2824 = vmax.f32 %v2814, 0.0
        %s2825 = scalar_lea.vmem %s3, 256
        %v2826 = vld [vmem:[%s2825] sm:$0xff]
        %v2827 = vld [vmem:[%s2825 + $0x8] sm:$0xff]
        %v2828 = vld [vmem:[%s2825 + $0x10] sm:$0xff]
        %v2829 = vld [vmem:[%s2825 + $0x18] sm:$0xff]
        %v2830 = vld [vmem:[%s2825 + $0x20] sm:$0xff]
        %v2831 = vld [vmem:[%s2825 + $0x28] sm:$0xff]
        %v2832 = vld [vmem:[%s2825 + $0x30] sm:$0xff]
        %v2833 = vld [vmem:[%s2825 + $0x38] sm:$0xff]
        %s2834 = scalar_lea.vmem %s4, 256
        %v2835 = vld [vmem:[%s2834] sm:$0xff]
        %v2836 = vld [vmem:[%s2834 + $0x8] sm:$0xff]
        %v2837 = vld [vmem:[%s2834 + $0x10] sm:$0xff]
        %v2838 = vld [vmem:[%s2834 + $0x18] sm:$0xff]
        %v2839 = vld [vmem:[%s2834 + $0x20] sm:$0xff]
        %v2840 = vld [vmem:[%s2834 + $0x28] sm:$0xff]
        %v2841 = vld [vmem:[%s2834 + $0x30] sm:$0xff]
        %v2842 = vld [vmem:[%s2834 + $0x38] sm:$0xff]
        %2844 = vset.pattern.permute.xlu0 0
        %2845 = vperm.xlu0 %2844, %v2835
        %v2846 = vpop.permute.xlu0 %2845
        %2849 = vset.pattern.permute.xlu0 0
        %2850 = vperm.xlu0 %2849, %v2836
        %v2851 = vpop.permute.xlu0 %2850
        %2854 = vset.pattern.permute.xlu0 0
        %2855 = vperm.xlu0 %2854, %v2837
        %v2856 = vpop.permute.xlu0 %2855
        %2859 = vset.pattern.permute.xlu0 0
        %2860 = vperm.xlu0 %2859, %v2838
        %v2861 = vpop.permute.xlu0 %2860
        %2864 = vset.pattern.permute.xlu0 0
        %2865 = vperm.xlu0 %2864, %v2839
        %v2866 = vpop.permute.xlu0 %2865
        %2869 = vset.pattern.permute.xlu0 0
        %2870 = vperm.xlu0 %2869, %v2840
        %v2871 = vpop.permute.xlu0 %2870
        %2874 = vset.pattern.permute.xlu0 0
        %2875 = vperm.xlu0 %2874, %v2841
        %v2876 = vpop.permute.xlu0 %2875
        %2879 = vset.pattern.permute.xlu0 0
        %2880 = vperm.xlu0 %2879, %v2842
        %v2881 = vpop.permute.xlu0 %2880
        %v2884 = vsel %vm620, %v2826, 0
        %v2887 = vsel %vm620, %v2827, 0
        %v2890 = vsel %vm620, %v2828, 0
        %v2893 = vsel %vm620, %v2829, 0
        %v2896 = vsel %vm620, %v2830, 0
        %v2899 = vsel %vm620, %v2831, 0
        %v2902 = vsel %vm620, %v2832, 0
        %v2905 = vsel %vm620, %v2833, 0
        %2907 = vmatprep.subr.mxu0 0.0
        %2908 = vmatpush1.msra.mxu0 %v2817
        %2909 = vmatprep.subr.mxu0 0.0
        %2910 = vmatpush1.msra.mxu0 %v2818
        %2911 = vmatprep.subr.mxu0 0.0
        %2912 = vmatpush1.msra.mxu0 %v2819
        %2913 = vmatprep.subr.mxu0 0.0
        %2914 = vmatpush1.msra.mxu0 %v2820
        %2915 = vmatprep.subr.mxu0 0.0
        %2916 = vmatpush1.msra.mxu0 %v2821
        %2917 = vmatprep.subr.mxu0 0.0
        %2918 = vmatpush1.msra.mxu0 %v2822
        %2919 = vmatprep.subr.mxu0 0.0
        %2920 = vmatpush1.msra.mxu0 %v2823
        %2921 = vmatprep.subr.mxu0 0.0
        %2922 = vmatpush1.msra.mxu0 %v2824
        %2923 = vmatprep.subr.mxu0 0.0
        %2924 = vmatpush1.msra.mxu0 0.0
        %2925 = vmatprep.subr.mxu0 0.0
        %2926 = vmatpush1.msra.mxu0 0.0
        %2927 = vmatprep.subr.mxu0 0.0
        %2928 = vmatpush1.msra.mxu0 0.0
        %2929 = vmatprep.subr.mxu0 0.0
        %2930 = vmatpush1.msra.mxu0 0.0
        %2931 = vmatprep.subr.mxu0 0.0
        %2932 = vmatpush1.msra.mxu0 0.0
        %2933 = vmatprep.subr.mxu0 0.0
        %2934 = vmatpush1.msra.mxu0 0.0
        %2935 = vmatprep.subr.mxu0 0.0
        %2936 = vmatpush1.msra.mxu0 0.0
        %2937 = vmatprep.subr.mxu0 0.0
        %2938 = vmatpush1.msra.mxu0 0.0
        %2939 = vmatprep.subr.mxu0 0.0
        %2940 = vmatpush1.msra.mxu0 0.0
        %2941 = vmatprep.subr.mxu0 0.0
        %2942 = vmatpush1.msra.mxu0 0.0
        %2943 = vmatprep.subr.mxu0 0.0
        %2944 = vmatpush1.msra.mxu0 0.0
        %2945 = vmatprep.subr.mxu0 0.0
        %2946 = vmatpush1.msra.mxu0 0.0
        %2947 = vmatprep.subr.mxu0 0.0
        %2948 = vmatpush1.msra.mxu0 0.0
        %2949 = vmatprep.subr.mxu0 0.0
        %2950 = vmatpush1.msra.mxu0 0.0
        %2951 = vmatprep.subr.mxu0 0.0
        %2952 = vmatpush1.msra.mxu0 0.0
        %2953 = vmatprep.subr.mxu0 0.0
        %2954 = vmatpush1.msra.mxu0 0.0
        %2955 = vmatprep.subr.mxu0 0.0
        %2956 = vmatpush1.msra.mxu0 0.0
        %2957 = vmatprep.subr.mxu0 0.0
        %2958 = vmatpush1.msra.mxu0 0.0
        %2959 = vmatprep.subr.mxu0 0.0
        %2960 = vmatpush1.msra.mxu0 0.0
        %2961 = vmatprep.subr.mxu0 0.0
        %2962 = vmatpush1.msra.mxu0 0.0
        %2963 = vmatprep.subr.mxu0 0.0
        %2964 = vmatpush1.msra.mxu0 0.0
        %2965 = vmatprep.subr.mxu0 0.0
        %2966 = vmatpush1.msra.mxu0 0.0
        %2967 = vmatprep.subr.mxu0 0.0
        %2968 = vmatpush1.msra.mxu0 0.0
        %2969 = vmatprep.subr.mxu0 0.0
        %2970 = vmatpush1.msra.mxu0 0.0
        %2971 = vmatprep.mubr.f32.mxu0 0.0
        %2972 = vmatmul.mubr.f32.gmra.mrb[0].mxu0 %v2884
        %v2973 = vpop.f32.mrb[0].mxu0
        %v2974 = vadd.f32 %v2846, %v2973
        %v2975 = vpop.f32.mrb[0].mxu0
        %2976 = vmatprep.mubr.f32.mxu0 0.0
        %2977 = vmatmul.mubr.f32.gmra.mrb[0].mxu0 %v2887
        %v2978 = vpop.f32.mrb[0].mxu0
        %v2979 = vadd.f32 %v2851, %v2978
        %v2980 = vpop.f32.mrb[0].mxu0
        %2981 = vmatprep.mubr.f32.mxu0 0.0
        %2982 = vmatmul.mubr.f32.gmra.mrb[0].mxu0 %v2890
        %v2983 = vpop.f32.mrb[0].mxu0
        %v2984 = vadd.f32 %v2856, %v2983
        %v2985 = vpop.f32.mrb[0].mxu0
        %2986 = vmatprep.mubr.f32.mxu0 0.0
        %2987 = vmatmul.mubr.f32.gmra.mrb[0].mxu0 %v2893
        %v2988 = vpop.f32.mrb[0].mxu0
        %v2989 = vadd.f32 %v2861, %v2988
        %v2990 = vpop.f32.mrb[0].mxu0
        %2991 = vmatprep.mubr.f32.mxu0 0.0
        %2992 = vmatmul.mubr.f32.gmra.mrb[0].mxu0 %v2896
        %v2993 = vpop.f32.mrb[0].mxu0
        %v2994 = vadd.f32 %v2866, %v2993
        %v2995 = vpop.f32.mrb[0].mxu0
        %2996 = vmatprep.mubr.f32.mxu0 0.0
        %2997 = vmatmul.mubr.f32.gmra.mrb[0].mxu0 %v2899
        %v2998 = vpop.f32.mrb[0].mxu0
        %v2999 = vadd.f32 %v2871, %v2998
        %v3000 = vpop.f32.mrb[0].mxu0
        %3001 = vmatprep.mubr.f32.mxu0 0.0
        %3002 = vmatmul.mubr.f32.gmra.mrb[0].mxu0 %v2902
        %v3003 = vpop.f32.mrb[0].mxu0
        %v3004 = vadd.f32 %v2876, %v3003
        %v3005 = vpop.f32.mrb[0].mxu0
        %3006 = vmatprep.mubr.f32.mxu0 0.0
        %3007 = vmatmul.mubr.f32.gmra.mrb[0].mxu0 %v2905
        %v3008 = vpop.f32.mrb[0].mxu0
        %v3009 = vadd.f32 %v2881, %v3008
        %v3010 = vpop.f32.mrb[0].mxu0
        %3011 = vdwg.mxu0
        %v3012 = vmax.f32 %v2974, 0.0
        %v3013 = vmax.f32 %v2979, 0.0
        %v3014 = vmax.f32 %v2984, 0.0
        %v3015 = vmax.f32 %v2989, 0.0
        %v3016 = vmax.f32 %v2994, 0.0
        %v3017 = vmax.f32 %v2999, 0.0
        %v3018 = vmax.f32 %v3004, 0.0
        %v3019 = vmax.f32 %v3009, 0.0
        %s3020 = scalar_lea.vmem %s5, 16
        %v3021 = vld [vmem:[%s3020] sm:$0xf]
        %s3022 = scalar_lea.vmem %s6, 16
        %v3023 = vld [vmem:[%s3022] sm:$0xf]
        %3025 = vset.pattern.permute.xlu0 0
        %3026 = vperm.xlu0 %3025, %v3023
        %v3027 = vpop.permute.xlu0 %3026
        %v3030 = vsel %vm620, %v3021, 0
        %3032 = vmatprep.subr.mxu0 0.0
        %3033 = vmatpush1.msra.mxu0 %v3012
        %3034 = vmatprep.subr.mxu0 0.0
        %3035 = vmatpush1.msra.mxu0 %v3013
        %3036 = vmatprep.subr.mxu0 0.0
        %3037 = vmatpush1.msra.mxu0 %v3014
        %3038 = vmatprep.subr.mxu0 0.0
        %3039 = vmatpush1.msra.mxu0 %v3015
        %3040 = vmatprep.subr.mxu0 0.0
        %3041 = vmatpush1.msra.mxu0 %v3016
        %3042 = vmatprep.subr.mxu0 0.0
        %3043 = vmatpush1.msra.mxu0 %v3017
        %3044 = vmatprep.subr.mxu0 0.0
        %3045 = vmatpush1.msra.mxu0 %v3018
        %3046 = vmatprep.subr.mxu0 0.0
        %3047 = vmatpush1.msra.mxu0 %v3019
        %3048 = vmatprep.subr.mxu0 0.0
        %3049 = vmatpush1.msra.mxu0 0.0
        %3050 = vmatprep.subr.mxu0 0.0
        %3051 = vmatpush1.msra.mxu0 0.0
        %3052 = vmatprep.subr.mxu0 0.0
        %3053 = vmatpush1.msra.mxu0 0.0
        %3054 = vmatprep.subr.mxu0 0.0
        %3055 = vmatpush1.msra.mxu0 0.0
        %3056 = vmatprep.subr.mxu0 0.0
        %3057 = vmatpush1.msra.mxu0 0.0
        %3058 = vmatprep.subr.mxu0 0.0
        %3059 = vmatpush1.msra.mxu0 0.0
        %3060 = vmatprep.subr.mxu0 0.0
        %3061 = vmatpush1.msra.mxu0 0.0
        %3062 = vmatprep.subr.mxu0 0.0
        %3063 = vmatpush1.msra.mxu0 0.0
        %3064 = vmatprep.subr.mxu0 0.0
        %3065 = vmatpush1.msra.mxu0 0.0
        %3066 = vmatprep.subr.mxu0 0.0
        %3067 = vmatpush1.msra.mxu0 0.0
        %3068 = vmatprep.subr.mxu0 0.0
        %3069 = vmatpush1.msra.mxu0 0.0
        %3070 = vmatprep.subr.mxu0 0.0
        %3071 = vmatpush1.msra.mxu0 0.0
        %3072 = vmatprep.subr.mxu0 0.0
        %3073 = vmatpush1.msra.mxu0 0.0
        %3074 = vmatprep.subr.mxu0 0.0
        %3075 = vmatpush1.msra.mxu0 0.0
        %3076 = vmatprep.subr.mxu0 0.0
        %3077 = vmatpush1.msra.mxu0 0.0
        %3078 = vmatprep.subr.mxu0 0.0
        %3079 = vmatpush1.msra.mxu0 0.0
        %3080 = vmatprep.subr.mxu0 0.0
        %3081 = vmatpush1.msra.mxu0 0.0
        %3082 = vmatprep.subr.mxu0 0.0
        %3083 = vmatpush1.msra.mxu0 0.0
        %3084 = vmatprep.subr.mxu0 0.0
        %3085 = vmatpush1.msra.mxu0 0.0
        %3086 = vmatprep.subr.mxu0 0.0
        %3087 = vmatpush1.msra.mxu0 0.0
        %3088 = vmatprep.subr.mxu0 0.0
        %3089 = vmatpush1.msra.mxu0 0.0
        %3090 = vmatprep.subr.mxu0 0.0
        %3091 = vmatpush1.msra.mxu0 0.0
        %3092 = vmatprep.subr.mxu0 0.0
        %3093 = vmatpush1.msra.mxu0 0.0
        %3094 = vmatprep.subr.mxu0 0.0
        %3095 = vmatpush1.msra.mxu0 0.0
        %3096 = vmatprep.mubr.f32.mxu0 0.0
        %3097 = vmatmul.mubr.f32.gmra.mrb[0].mxu0 %v3030
        %v3098 = vpop.f32.mrb[0].mxu0
        %v3099 = vadd.f32 %v3027, %v3098
        %v3100 = vpop.f32.mrb[0].mxu0
        %3101 = vdwg.mxu0
        %v3102 = vtanh.pop %v3099
        %s3103 = scalar_lea.vmem %s7, 16
        %v3104 = vld [vmem:[%s3103] sm:$0xf]
        %s3105 = scalar_lea.vmem %s8, 16
        %v3106 = vld [vmem:[%s3105] sm:$0xf]
        %3108 = vset.pattern.permute.xlu0 0
        %3109 = vperm.xlu0 %3108, %v3106
        %v3110 = vpop.permute.xlu0 %3109
        %v3113 = vsel %vm620, %v3104, 0
        %3115 = vmatprep.subr.mxu0 0.0
        %3116 = vmatpush1.msra.mxu0 %v3012
        %3117 = vmatprep.subr.mxu0 0.0
        %3118 = vmatpush1.msra.mxu0 %v3013
        %3119 = vmatprep.subr.mxu0 0.0
        %3120 = vmatpush1.msra.mxu0 %v3014
        %3121 = vmatprep.subr.mxu0 0.0
        %3122 = vmatpush1.msra.mxu0 %v3015
        %3123 = vmatprep.subr.mxu0 0.0
        %3124 = vmatpush1.msra.mxu0 %v3016
        %3125 = vmatprep.subr.mxu0 0.0
        %3126 = vmatpush1.msra.mxu0 %v3017
        %3127 = vmatprep.subr.mxu0 0.0
        %3128 = vmatpush1.msra.mxu0 %v3018
        %3129 = vmatprep.subr.mxu0 0.0
        %3130 = vmatpush1.msra.mxu0 %v3019
        %3131 = vmatprep.subr.mxu0 0.0
        %3132 = vmatpush1.msra.mxu0 0.0
        %3133 = vmatprep.subr.mxu0 0.0
        %3134 = vmatpush1.msra.mxu0 0.0
        %3135 = vmatprep.subr.mxu0 0.0
        %3136 = vmatpush1.msra.mxu0 0.0
        %3137 = vmatprep.subr.mxu0 0.0
        %3138 = vmatpush1.msra.mxu0 0.0
        %3139 = vmatprep.subr.mxu0 0.0
        %3140 = vmatpush1.msra.mxu0 0.0
        %3141 = vmatprep.subr.mxu0 0.0
        %3142 = vmatpush1.msra.mxu0 0.0
        %3143 = vmatprep.subr.mxu0 0.0
        %3144 = vmatpush1.msra.mxu0 0.0
        %3145 = vmatprep.subr.mxu0 0.0
        %3146 = vmatpush1.msra.mxu0 0.0
        %3147 = vmatprep.subr.mxu0 0.0
        %3148 = vmatpush1.msra.mxu0 0.0
        %3149 = vmatprep.subr.mxu0 0.0
        %3150 = vmatpush1.msra.mxu0 0.0
        %3151 = vmatprep.subr.mxu0 0.0
        %3152 = vmatpush1.msra.mxu0 0.0
        %3153 = vmatprep.subr.mxu0 0.0
        %3154 = vmatpush1.msra.mxu0 0.0
        %3155 = vmatprep.subr.mxu0 0.0
        %3156 = vmatpush1.msra.mxu0 0.0
        %3157 = vmatprep.subr.mxu0 0.0
        %3158 = vmatpush1.msra.mxu0 0.0
        %3159 = vmatprep.subr.mxu0 0.0
        %3160 = vmatpush1.msra.mxu0 0.0
        %3161 = vmatprep.subr.mxu0 0.0
        %3162 = vmatpush1.msra.mxu0 0.0
        %3163 = vmatprep.subr.mxu0 0.0
        %3164 = vmatpush1.msra.mxu0 0.0
        %3165 = vmatprep.subr.mxu0 0.0
        %3166 = vmatpush1.msra.mxu0 0.0
        %3167 = vmatprep.subr.mxu0 0.0
        %3168 = vmatpush1.msra.mxu0 0.0
        %3169 = vmatprep.subr.mxu0 0.0
        %3170 = vmatpush1.msra.mxu0 0.0
        %3171 = vmatprep.subr.mxu0 0.0
        %3172 = vmatpush1.msra.mxu0 0.0
        %3173 = vmatprep.subr.mxu0 0.0
        %3174 = vmatpush1.msra.mxu0 0.0
        %3175 = vmatprep.subr.mxu0 0.0
        %3176 = vmatpush1.msra.mxu0 0.0
        %3177 = vmatprep.subr.mxu0 0.0
        %3178 = vmatpush1.msra.mxu0 0.0
        %3179 = vmatprep.mubr.f32.mxu0 0.0
        %3180 = vmatmul.mubr.f32.gmra.mrb[0].mxu0 %v3113
        %v3181 = vpop.f32.mrb[0].mxu0
        %v3182 = vadd.f32 %v3110, %v3181
        %v3183 = vpop.f32.mrb[0].mxu0
        %3184 = vdwg.mxu0
        %v3185 = vmul.f32 %v3102, 1.442695
        %v3186 = vpow.pop %v3185
        %v3188 = vrot.slane %v3186, 4
        %v3190 = vmul.f32 %v2061, %v3188
        %v3192 = vrot.slane %v3182, 4
        %v3194 = vadd.f32 %v3190, %v3192
        %v3195 = vadd.f32 %v2626, %v3102
        %s3196 = scalar_lea.vmem %s1, 320
        %v3197 = vld [vmem:[%s3196] sm:$0xff]
        %v3198 = vld [vmem:[%s3196 + $0x8] sm:$0xff]
        %v3199 = vld [vmem:[%s3196 + $0x10] sm:$0xff]
        %v3200 = vld [vmem:[%s3196 + $0x18] sm:$0xff]
        %v3201 = vld [vmem:[%s3196 + $0x20] sm:$0xff]
        %v3202 = vld [vmem:[%s3196 + $0x28] sm:$0xff]
        %v3203 = vld [vmem:[%s3196 + $0x30] sm:$0xff]
        %v3204 = vld [vmem:[%s3196 + $0x38] sm:$0xff]
        %s3205 = scalar_lea.vmem %s2, 320
        %v3206 = vld [vmem:[%s3205] sm:$0xff]
        %v3207 = vld [vmem:[%s3205 + $0x8] sm:$0xff]
        %v3208 = vld [vmem:[%s3205 + $0x10] sm:$0xff]
        %v3209 = vld [vmem:[%s3205 + $0x18] sm:$0xff]
        %v3210 = vld [vmem:[%s3205 + $0x20] sm:$0xff]
        %v3211 = vld [vmem:[%s3205 + $0x28] sm:$0xff]
        %v3212 = vld [vmem:[%s3205 + $0x30] sm:$0xff]
        %v3213 = vld [vmem:[%s3205 + $0x38] sm:$0xff]
        %3215 = vset.pattern.permute.xlu0 0
        %3216 = vperm.xlu0 %3215, %v3206
        %v3217 = vpop.permute.xlu0 %3216
        %3220 = vset.pattern.permute.xlu0 0
        %3221 = vperm.xlu0 %3220, %v3207
        %v3222 = vpop.permute.xlu0 %3221
        %3225 = vset.pattern.permute.xlu0 0
        %3226 = vperm.xlu0 %3225, %v3208
        %v3227 = vpop.permute.xlu0 %3226
        %3230 = vset.pattern.permute.xlu0 0
        %3231 = vperm.xlu0 %3230, %v3209
        %v3232 = vpop.permute.xlu0 %3231
        %3235 = vset.pattern.permute.xlu0 0
        %3236 = vperm.xlu0 %3235, %v3210
        %v3237 = vpop.permute.xlu0 %3236
        %3240 = vset.pattern.permute.xlu0 0
        %3241 = vperm.xlu0 %3240, %v3211
        %v3242 = vpop.permute.xlu0 %3241
        %3245 = vset.pattern.permute.xlu0 0
        %3246 = vperm.xlu0 %3245, %v3212
        %v3247 = vpop.permute.xlu0 %3246
        %3250 = vset.pattern.permute.xlu0 0
        %3251 = vperm.xlu0 %3250, %v3213
        %v3252 = vpop.permute.xlu0 %3251
        %v3255 = vrot.slane %v3194, 4
        %v3257 = vsel %vm422, %v3197, 0
        %v3260 = vsel %vm422, %v3198, 0
        %v3263 = vsel %vm422, %v3199, 0
        %v3266 = vsel %vm422, %v3200, 0
        %v3269 = vsel %vm422, %v3201, 0
        %v3272 = vsel %vm422, %v3202, 0
        %v3275 = vsel %vm422, %v3203, 0
        %v3278 = vsel %vm422, %v3204, 0
        %v3280 = vsel %vm447, %v3255, 0
        %3282 = vmatprep.subr.mxu0 0.0
        %3283 = vmatpush1.msra.mxu0 %v3280
        %3284 = vmatprep.subr.mxu0 0.0
        %3285 = vmatpush1.msra.mxu0 0.0
        %3286 = vmatprep.subr.mxu0 0.0
        %3287 = vmatpush1.msra.mxu0 0.0
        %3288 = vmatprep.subr.mxu0 0.0
        %3289 = vmatpush1.msra.mxu0 0.0
        %3290 = vmatprep.subr.mxu0 0.0
        %3291 = vmatpush1.msra.mxu0 0.0
        %3292 = vmatprep.subr.mxu0 0.0
        %3293 = vmatpush1.msra.mxu0 0.0
        %3294 = vmatprep.subr.mxu0 0.0
        %3295 = vmatpush1.msra.mxu0 0.0
        %3296 = vmatprep.subr.mxu0 0.0
        %3297 = vmatpush1.msra.mxu0 0.0
        %3298 = vmatprep.subr.mxu0 0.0
        %3299 = vmatpush1.msra.mxu0 0.0
        %3300 = vmatprep.subr.mxu0 0.0
        %3301 = vmatpush1.msra.mxu0 0.0
        %3302 = vmatprep.subr.mxu0 0.0
        %3303 = vmatpush1.msra.mxu0 0.0
        %3304 = vmatprep.subr.mxu0 0.0
        %3305 = vmatpush1.msra.mxu0 0.0
        %3306 = vmatprep.subr.mxu0 0.0
        %3307 = vmatpush1.msra.mxu0 0.0
        %3308 = vmatprep.subr.mxu0 0.0
        %3309 = vmatpush1.msra.mxu0 0.0
        %3310 = vmatprep.subr.mxu0 0.0
        %3311 = vmatpush1.msra.mxu0 0.0
        %3312 = vmatprep.subr.mxu0 0.0
        %3313 = vmatpush1.msra.mxu0 0.0
        %3314 = vmatprep.subr.mxu0 0.0
        %3315 = vmatpush1.msra.mxu0 0.0
        %3316 = vmatprep.subr.mxu0 0.0
        %3317 = vmatpush1.msra.mxu0 0.0
        %3318 = vmatprep.subr.mxu0 0.0
        %3319 = vmatpush1.msra.mxu0 0.0
        %3320 = vmatprep.subr.mxu0 0.0
        %3321 = vmatpush1.msra.mxu0 0.0
        %3322 = vmatprep.subr.mxu0 0.0
        %3323 = vmatpush1.msra.mxu0 0.0
        %3324 = vmatprep.subr.mxu0 0.0
        %3325 = vmatpush1.msra.mxu0 0.0
        %3326 = vmatprep.subr.mxu0 0.0
        %3327 = vmatpush1.msra.mxu0 0.0
        %3328 = vmatprep.subr.mxu0 0.0
        %3329 = vmatpush1.msra.mxu0 0.0
        %3330 = vmatprep.subr.mxu0 0.0
        %3331 = vmatpush1.msra.mxu0 0.0
        %3332 = vmatprep.subr.mxu0 0.0
        %3333 = vmatpush1.msra.mxu0 0.0
        %3334 = vmatprep.subr.mxu0 0.0
        %3335 = vmatpush1.msra.mxu0 0.0
        %3336 = vmatprep.subr.mxu0 0.0
        %3337 = vmatpush1.msra.mxu0 0.0
        %3338 = vmatprep.subr.mxu0 0.0
        %3339 = vmatpush1.msra.mxu0 0.0
        %3340 = vmatprep.subr.mxu0 0.0
        %3341 = vmatpush1.msra.mxu0 0.0
        %3342 = vmatprep.subr.mxu0 0.0
        %3343 = vmatpush1.msra.mxu0 0.0
        %3344 = vmatprep.subr.mxu0 0.0
        %3345 = vmatpush1.msra.mxu0 0.0
        %3346 = vmatprep.mubr.f32.mxu0 0.0
        %3347 = vmatmul.mubr.f32.gmra.mrb[0].mxu0 %v3257
        %v3348 = vpop.f32.mrb[0].mxu0
        %v3349 = vadd.f32 %v3217, %v3348
        %v3350 = vpop.f32.mrb[0].mxu0
        %3351 = vmatprep.mubr.f32.mxu0 0.0
        %3352 = vmatmul.mubr.f32.gmra.mrb[0].mxu0 %v3260
        %v3353 = vpop.f32.mrb[0].mxu0
        %v3354 = vadd.f32 %v3222, %v3353
        %v3355 = vpop.f32.mrb[0].mxu0
        %3356 = vmatprep.mubr.f32.mxu0 0.0
        %3357 = vmatmul.mubr.f32.gmra.mrb[0].mxu0 %v3263
        %v3358 = vpop.f32.mrb[0].mxu0
        %v3359 = vadd.f32 %v3227, %v3358
        %v3360 = vpop.f32.mrb[0].mxu0
        %3361 = vmatprep.mubr.f32.mxu0 0.0
        %3362 = vmatmul.mubr.f32.gmra.mrb[0].mxu0 %v3266
        %v3363 = vpop.f32.mrb[0].mxu0
        %v3364 = vadd.f32 %v3232, %v3363
        %v3365 = vpop.f32.mrb[0].mxu0
        %3366 = vmatprep.mubr.f32.mxu0 0.0
        %3367 = vmatmul.mubr.f32.gmra.mrb[0].mxu0 %v3269
        %v3368 = vpop.f32.mrb[0].mxu0
        %v3369 = vadd.f32 %v3237, %v3368
        %v3370 = vpop.f32.mrb[0].mxu0
        %3371 = vmatprep.mubr.f32.mxu0 0.0
        %3372 = vmatmul.mubr.f32.gmra.mrb[0].mxu0 %v3272
        %v3373 = vpop.f32.mrb[0].mxu0
        %v3374 = vadd.f32 %v3242, %v3373
        %v3375 = vpop.f32.mrb[0].mxu0
        %3376 = vmatprep.mubr.f32.mxu0 0.0
        %3377 = vmatmul.mubr.f32.gmra.mrb[0].mxu0 %v3275
        %v3378 = vpop.f32.mrb[0].mxu0
        %v3379 = vadd.f32 %v3247, %v3378
        %v3380 = vpop.f32.mrb[0].mxu0
        %3381 = vmatprep.mubr.f32.mxu0 0.0
        %3382 = vmatmul.mubr.f32.gmra.mrb[0].mxu0 %v3278
        %v3383 = vpop.f32.mrb[0].mxu0
        %v3384 = vadd.f32 %v3252, %v3383
        %v3385 = vpop.f32.mrb[0].mxu0
        %3386 = vdwg.mxu0
        %v3387 = vmax.f32 %v3349, 0.0
        %v3388 = vmax.f32 %v3354, 0.0
        %v3389 = vmax.f32 %v3359, 0.0
        %v3390 = vmax.f32 %v3364, 0.0
        %v3391 = vmax.f32 %v3369, 0.0
        %v3392 = vmax.f32 %v3374, 0.0
        %v3393 = vmax.f32 %v3379, 0.0
        %v3394 = vmax.f32 %v3384, 0.0
        %s3395 = scalar_lea.vmem %s3, 320
        %v3396 = vld [vmem:[%s3395] sm:$0xff]
        %v3397 = vld [vmem:[%s3395 + $0x8] sm:$0xff]
        %v3398 = vld [vmem:[%s3395 + $0x10] sm:$0xff]
        %v3399 = vld [vmem:[%s3395 + $0x18] sm:$0xff]
        %v3400 = vld [vmem:[%s3395 + $0x20] sm:$0xff]
        %v3401 = vld [vmem:[%s3395 + $0x28] sm:$0xff]
        %v3402 = vld [vmem:[%s3395 + $0x30] sm:$0xff]
        %v3403 = vld [vmem:[%s3395 + $0x38] sm:$0xff]
        %s3404 = scalar_lea.vmem %s4, 320
        %v3405 = vld [vmem:[%s3404] sm:$0xff]
        %v3406 = vld [vmem:[%s3404 + $0x8] sm:$0xff]
        %v3407 = vld [vmem:[%s3404 + $0x10] sm:$0xff]
        %v3408 = vld [vmem:[%s3404 + $0x18] sm:$0xff]
        %v3409 = vld [vmem:[%s3404 + $0x20] sm:$0xff]
        %v3410 = vld [vmem:[%s3404 + $0x28] sm:$0xff]
        %v3411 = vld [vmem:[%s3404 + $0x30] sm:$0xff]
        %v3412 = vld [vmem:[%s3404 + $0x38] sm:$0xff]
        %3414 = vset.pattern.permute.xlu0 0
        %3415 = vperm.xlu0 %3414, %v3405
        %v3416 = vpop.permute.xlu0 %3415
        %3419 = vset.pattern.permute.xlu0 0
        %3420 = vperm.xlu0 %3419, %v3406
        %v3421 = vpop.permute.xlu0 %3420
        %3424 = vset.pattern.permute.xlu0 0
        %3425 = vperm.xlu0 %3424, %v3407
        %v3426 = vpop.permute.xlu0 %3425
        %3429 = vset.pattern.permute.xlu0 0
        %3430 = vperm.xlu0 %3429, %v3408
        %v3431 = vpop.permute.xlu0 %3430
        %3434 = vset.pattern.permute.xlu0 0
        %3435 = vperm.xlu0 %3434, %v3409
        %v3436 = vpop.permute.xlu0 %3435
        %3439 = vset.pattern.permute.xlu0 0
        %3440 = vperm.xlu0 %3439, %v3410
        %v3441 = vpop.permute.xlu0 %3440
        %3444 = vset.pattern.permute.xlu0 0
        %3445 = vperm.xlu0 %3444, %v3411
        %v3446 = vpop.permute.xlu0 %3445
        %3449 = vset.pattern.permute.xlu0 0
        %3450 = vperm.xlu0 %3449, %v3412
        %v3451 = vpop.permute.xlu0 %3450
        %v3454 = vsel %vm620, %v3396, 0
        %v3457 = vsel %vm620, %v3397, 0
        %v3460 = vsel %vm620, %v3398, 0
        %v3463 = vsel %vm620, %v3399, 0
        %v3466 = vsel %vm620, %v3400, 0
        %v3469 = vsel %vm620, %v3401, 0
        %v3472 = vsel %vm620, %v3402, 0
        %v3475 = vsel %vm620, %v3403, 0
        %3477 = vmatprep.subr.mxu0 0.0
        %3478 = vmatpush1.msra.mxu0 %v3387
        %3479 = vmatprep.subr.mxu0 0.0
        %3480 = vmatpush1.msra.mxu0 %v3388
        %3481 = vmatprep.subr.mxu0 0.0
        %3482 = vmatpush1.msra.mxu0 %v3389
        %3483 = vmatprep.subr.mxu0 0.0
        %3484 = vmatpush1.msra.mxu0 %v3390
        %3485 = vmatprep.subr.mxu0 0.0
        %3486 = vmatpush1.msra.mxu0 %v3391
        %3487 = vmatprep.subr.mxu0 0.0
        %3488 = vmatpush1.msra.mxu0 %v3392
        %3489 = vmatprep.subr.mxu0 0.0
        %3490 = vmatpush1.msra.mxu0 %v3393
        %3491 = vmatprep.subr.mxu0 0.0
        %3492 = vmatpush1.msra.mxu0 %v3394
        %3493 = vmatprep.subr.mxu0 0.0
        %3494 = vmatpush1.msra.mxu0 0.0
        %3495 = vmatprep.subr.mxu0 0.0
        %3496 = vmatpush1.msra.mxu0 0.0
        %3497 = vmatprep.subr.mxu0 0.0
        %3498 = vmatpush1.msra.mxu0 0.0
        %3499 = vmatprep.subr.mxu0 0.0
        %3500 = vmatpush1.msra.mxu0 0.0
        %3501 = vmatprep.subr.mxu0 0.0
        %3502 = vmatpush1.msra.mxu0 0.0
        %3503 = vmatprep.subr.mxu0 0.0
        %3504 = vmatpush1.msra.mxu0 0.0
        %3505 = vmatprep.subr.mxu0 0.0
        %3506 = vmatpush1.msra.mxu0 0.0
        %3507 = vmatprep.subr.mxu0 0.0
        %3508 = vmatpush1.msra.mxu0 0.0
        %3509 = vmatprep.subr.mxu0 0.0
        %3510 = vmatpush1.msra.mxu0 0.0
        %3511 = vmatprep.subr.mxu0 0.0
        %3512 = vmatpush1.msra.mxu0 0.0
        %3513 = vmatprep.subr.mxu0 0.0
        %3514 = vmatpush1.msra.mxu0 0.0
        %3515 = vmatprep.subr.mxu0 0.0
        %3516 = vmatpush1.msra.mxu0 0.0
        %3517 = vmatprep.subr.mxu0 0.0
        %3518 = vmatpush1.msra.mxu0 0.0
        %3519 = vmatprep.subr.mxu0 0.0
        %3520 = vmatpush1.msra.mxu0 0.0
        %3521 = vmatprep.subr.mxu0 0.0
        %3522 = vmatpush1.msra.mxu0 0.0
        %3523 = vmatprep.subr.mxu0 0.0
        %3524 = vmatpush1.msra.mxu0 0.0
        %3525 = vmatprep.subr.mxu0 0.0
        %3526 = vmatpush1.msra.mxu0 0.0
        %3527 = vmatprep.subr.mxu0 0.0
        %3528 = vmatpush1.msra.mxu0 0.0
        %3529 = vmatprep.subr.mxu0 0.0
        %3530 = vmatpush1.msra.mxu0 0.0
        %3531 = vmatprep.subr.mxu0 0.0
        %3532 = vmatpush1.msra.mxu0 0.0
        %3533 = vmatprep.subr.mxu0 0.0
        %3534 = vmatpush1.msra.mxu0 0.0
        %3535 = vmatprep.subr.mxu0 0.0
        %3536 = vmatpush1.msra.mxu0 0.0
        %3537 = vmatprep.subr.mxu0 0.0
        %3538 = vmatpush1.msra.mxu0 0.0
        %3539 = vmatprep.subr.mxu0 0.0
        %3540 = vmatpush1.msra.mxu0 0.0
        %3541 = vmatprep.mubr.f32.mxu0 0.0
        %3542 = vmatmul.mubr.f32.gmra.mrb[0].mxu0 %v3454
        %v3543 = vpop.f32.mrb[0].mxu0
        %v3544 = vadd.f32 %v3416, %v3543
        %v3545 = vpop.f32.mrb[0].mxu0
        %3546 = vmatprep.mubr.f32.mxu0 0.0
        %3547 = vmatmul.mubr.f32.gmra.mrb[0].mxu0 %v3457
        %v3548 = vpop.f32.mrb[0].mxu0
        %v3549 = vadd.f32 %v3421, %v3548
        %v3550 = vpop.f32.mrb[0].mxu0
        %3551 = vmatprep.mubr.f32.mxu0 0.0
        %3552 = vmatmul.mubr.f32.gmra.mrb[0].mxu0 %v3460
        %v3553 = vpop.f32.mrb[0].mxu0
        %v3554 = vadd.f32 %v3426, %v3553
        %v3555 = vpop.f32.mrb[0].mxu0
        %3556 = vmatprep.mubr.f32.mxu0 0.0
        %3557 = vmatmul.mubr.f32.gmra.mrb[0].mxu0 %v3463
        %v3558 = vpop.f32.mrb[0].mxu0
        %v3559 = vadd.f32 %v3431, %v3558
        %v3560 = vpop.f32.mrb[0].mxu0
        %3561 = vmatprep.mubr.f32.mxu0 0.0
        %3562 = vmatmul.mubr.f32.gmra.mrb[0].mxu0 %v3466
        %v3563 = vpop.f32.mrb[0].mxu0
        %v3564 = vadd.f32 %v3436, %v3563
        %v3565 = vpop.f32.mrb[0].mxu0
        %3566 = vmatprep.mubr.f32.mxu0 0.0
        %3567 = vmatmul.mubr.f32.gmra.mrb[0].mxu0 %v3469
        %v3568 = vpop.f32.mrb[0].mxu0
        %v3569 = vadd.f32 %v3441, %v3568
        %v3570 = vpop.f32.mrb[0].mxu0
        %3571 = vmatprep.mubr.f32.mxu0 0.0
        %3572 = vmatmul.mubr.f32.gmra.mrb[0].mxu0 %v3472
        %v3573 = vpop.f32.mrb[0].mxu0
        %v3574 = vadd.f32 %v3446, %v3573
        %v3575 = vpop.f32.mrb[0].mxu0
        %3576 = vmatprep.mubr.f32.mxu0 0.0
        %3577 = vmatmul.mubr.f32.gmra.mrb[0].mxu0 %v3475
        %v3578 = vpop.f32.mrb[0].mxu0
        %v3579 = vadd.f32 %v3451, %v3578
        %v3580 = vpop.f32.mrb[0].mxu0
        %3581 = vdwg.mxu0
        %v3582 = vmax.f32 %v3544, 0.0
        %v3583 = vmax.f32 %v3549, 0.0
        %v3584 = vmax.f32 %v3554, 0.0
        %v3585 = vmax.f32 %v3559, 0.0
        %v3586 = vmax.f32 %v3564, 0.0
        %v3587 = vmax.f32 %v3569, 0.0
        %v3588 = vmax.f32 %v3574, 0.0
        %v3589 = vmax.f32 %v3579, 0.0
        %s3590 = scalar_lea.vmem %s5, 20
        %v3591 = vld [vmem:[%s3590] sm:$0xf]
        %s3592 = scalar_lea.vmem %s6, 20
        %v3593 = vld [vmem:[%s3592] sm:$0xf]
        %3595 = vset.pattern.permute.xlu0 0
        %3596 = vperm.xlu0 %3595, %v3593
        %v3597 = vpop.permute.xlu0 %3596
        %v3600 = vsel %vm620, %v3591, 0
        %3602 = vmatprep.subr.mxu0 0.0
        %3603 = vmatpush1.msra.mxu0 %v3582
        %3604 = vmatprep.subr.mxu0 0.0
        %3605 = vmatpush1.msra.mxu0 %v3583
        %3606 = vmatprep.subr.mxu0 0.0
        %3607 = vmatpush1.msra.mxu0 %v3584
        %3608 = vmatprep.subr.mxu0 0.0
        %3609 = vmatpush1.msra.mxu0 %v3585
        %3610 = vmatprep.subr.mxu0 0.0
        %3611 = vmatpush1.msra.mxu0 %v3586
        %3612 = vmatprep.subr.mxu0 0.0
        %3613 = vmatpush1.msra.mxu0 %v3587
        %3614 = vmatprep.subr.mxu0 0.0
        %3615 = vmatpush1.msra.mxu0 %v3588
        %3616 = vmatprep.subr.mxu0 0.0
        %3617 = vmatpush1.msra.mxu0 %v3589
        %3618 = vmatprep.subr.mxu0 0.0
        %3619 = vmatpush1.msra.mxu0 0.0
        %3620 = vmatprep.subr.mxu0 0.0
        %3621 = vmatpush1.msra.mxu0 0.0
        %3622 = vmatprep.subr.mxu0 0.0
        %3623 = vmatpush1.msra.mxu0 0.0
        %3624 = vmatprep.subr.mxu0 0.0
        %3625 = vmatpush1.msra.mxu0 0.0
        %3626 = vmatprep.subr.mxu0 0.0
        %3627 = vmatpush1.msra.mxu0 0.0
        %3628 = vmatprep.subr.mxu0 0.0
        %3629 = vmatpush1.msra.mxu0 0.0
        %3630 = vmatprep.subr.mxu0 0.0
        %3631 = vmatpush1.msra.mxu0 0.0
        %3632 = vmatprep.subr.mxu0 0.0
        %3633 = vmatpush1.msra.mxu0 0.0
        %3634 = vmatprep.subr.mxu0 0.0
        %3635 = vmatpush1.msra.mxu0 0.0
        %3636 = vmatprep.subr.mxu0 0.0
        %3637 = vmatpush1.msra.mxu0 0.0
        %3638 = vmatprep.subr.mxu0 0.0
        %3639 = vmatpush1.msra.mxu0 0.0
        %3640 = vmatprep.subr.mxu0 0.0
        %3641 = vmatpush1.msra.mxu0 0.0
        %3642 = vmatprep.subr.mxu0 0.0
        %3643 = vmatpush1.msra.mxu0 0.0
        %3644 = vmatprep.subr.mxu0 0.0
        %3645 = vmatpush1.msra.mxu0 0.0
        %3646 = vmatprep.subr.mxu0 0.0
        %3647 = vmatpush1.msra.mxu0 0.0
        %3648 = vmatprep.subr.mxu0 0.0
        %3649 = vmatpush1.msra.mxu0 0.0
        %3650 = vmatprep.subr.mxu0 0.0
        %3651 = vmatpush1.msra.mxu0 0.0
        %3652 = vmatprep.subr.mxu0 0.0
        %3653 = vmatpush1.msra.mxu0 0.0
        %3654 = vmatprep.subr.mxu0 0.0
        %3655 = vmatpush1.msra.mxu0 0.0
        %3656 = vmatprep.subr.mxu0 0.0
        %3657 = vmatpush1.msra.mxu0 0.0
        %3658 = vmatprep.subr.mxu0 0.0
        %3659 = vmatpush1.msra.mxu0 0.0
        %3660 = vmatprep.subr.mxu0 0.0
        %3661 = vmatpush1.msra.mxu0 0.0
        %3662 = vmatprep.subr.mxu0 0.0
        %3663 = vmatpush1.msra.mxu0 0.0
        %3664 = vmatprep.subr.mxu0 0.0
        %3665 = vmatpush1.msra.mxu0 0.0
        %3666 = vmatprep.mubr.f32.mxu0 0.0
        %3667 = vmatmul.mubr.f32.gmra.mrb[0].mxu0 %v3600
        %v3668 = vpop.f32.mrb[0].mxu0
        %v3669 = vadd.f32 %v3597, %v3668
        %v3670 = vpop.f32.mrb[0].mxu0
        %3671 = vdwg.mxu0
        %v3672 = vtanh.pop %v3669
        %s3673 = scalar_lea.vmem %s7, 20
        %v3674 = vld [vmem:[%s3673] sm:$0xf]
        %s3675 = scalar_lea.vmem %s8, 20
        %v3676 = vld [vmem:[%s3675] sm:$0xf]
        %3678 = vset.pattern.permute.xlu0 0
        %3679 = vperm.xlu0 %3678, %v3676
        %v3680 = vpop.permute.xlu0 %3679
        %v3683 = vsel %vm620, %v3674, 0
        %3685 = vmatprep.subr.mxu0 0.0
        %3686 = vmatpush1.msra.mxu0 %v3582
        %3687 = vmatprep.subr.mxu0 0.0
        %3688 = vmatpush1.msra.mxu0 %v3583
        %3689 = vmatprep.subr.mxu0 0.0
        %3690 = vmatpush1.msra.mxu0 %v3584
        %3691 = vmatprep.subr.mxu0 0.0
        %3692 = vmatpush1.msra.mxu0 %v3585
        %3693 = vmatprep.subr.mxu0 0.0
        %3694 = vmatpush1.msra.mxu0 %v3586
        %3695 = vmatprep.subr.mxu0 0.0
        %3696 = vmatpush1.msra.mxu0 %v3587
        %3697 = vmatprep.subr.mxu0 0.0
        %3698 = vmatpush1.msra.mxu0 %v3588
        %3699 = vmatprep.subr.mxu0 0.0
        %3700 = vmatpush1.msra.mxu0 %v3589
        %3701 = vmatprep.subr.mxu0 0.0
        %3702 = vmatpush1.msra.mxu0 0.0
        %3703 = vmatprep.subr.mxu0 0.0
        %3704 = vmatpush1.msra.mxu0 0.0
        %3705 = vmatprep.subr.mxu0 0.0
        %3706 = vmatpush1.msra.mxu0 0.0
        %3707 = vmatprep.subr.mxu0 0.0
        %3708 = vmatpush1.msra.mxu0 0.0
        %3709 = vmatprep.subr.mxu0 0.0
        %3710 = vmatpush1.msra.mxu0 0.0
        %3711 = vmatprep.subr.mxu0 0.0
        %3712 = vmatpush1.msra.mxu0 0.0
        %3713 = vmatprep.subr.mxu0 0.0
        %3714 = vmatpush1.msra.mxu0 0.0
        %3715 = vmatprep.subr.mxu0 0.0
        %3716 = vmatpush1.msra.mxu0 0.0
        %3717 = vmatprep.subr.mxu0 0.0
        %3718 = vmatpush1.msra.mxu0 0.0
        %3719 = vmatprep.subr.mxu0 0.0
        %3720 = vmatpush1.msra.mxu0 0.0
        %3721 = vmatprep.subr.mxu0 0.0
        %3722 = vmatpush1.msra.mxu0 0.0
        %3723 = vmatprep.subr.mxu0 0.0
        %3724 = vmatpush1.msra.mxu0 0.0
        %3725 = vmatprep.subr.mxu0 0.0
        %3726 = vmatpush1.msra.mxu0 0.0
        %3727 = vmatprep.subr.mxu0 0.0
        %3728 = vmatpush1.msra.mxu0 0.0
        %3729 = vmatprep.subr.mxu0 0.0
        %3730 = vmatpush1.msra.mxu0 0.0
        %3731 = vmatprep.subr.mxu0 0.0
        %3732 = vmatpush1.msra.mxu0 0.0
        %3733 = vmatprep.subr.mxu0 0.0
        %3734 = vmatpush1.msra.mxu0 0.0
        %3735 = vmatprep.subr.mxu0 0.0
        %3736 = vmatpush1.msra.mxu0 0.0
        %3737 = vmatprep.subr.mxu0 0.0
        %3738 = vmatpush1.msra.mxu0 0.0
        %3739 = vmatprep.subr.mxu0 0.0
        %3740 = vmatpush1.msra.mxu0 0.0
        %3741 = vmatprep.subr.mxu0 0.0
        %3742 = vmatpush1.msra.mxu0 0.0
        %3743 = vmatprep.subr.mxu0 0.0
        %3744 = vmatpush1.msra.mxu0 0.0
        %3745 = vmatprep.subr.mxu0 0.0
        %3746 = vmatpush1.msra.mxu0 0.0
        %3747 = vmatprep.subr.mxu0 0.0
        %3748 = vmatpush1.msra.mxu0 0.0
        %3749 = vmatprep.mubr.f32.mxu0 0.0
        %3750 = vmatmul.mubr.f32.gmra.mrb[0].mxu0 %v3683
        %v3751 = vpop.f32.mrb[0].mxu0
        %v3752 = vadd.f32 %v3680, %v3751
        %v3753 = vpop.f32.mrb[0].mxu0
        %3754 = vdwg.mxu0
        %v3755 = vmul.f32 %v3672, 1.442695
        %v3756 = vpow.pop %v3755
        %v3757 = vmul.f32 %v2625, %v3756
        %v3758 = vadd.f32 %v3757, %v3752
        %v3759 = vadd.f32 %v3195, %v3672
        %v3760 = vsel %vm447, %v3758, %v3194
        %3761 = vst [vmem:[%s354] sm:$0xff] %v3760
        %v3762 = vsel %vm447, %v3759, 0.0
        %v3763 = vrot.slane %v3762, 4
        %v3764 = vadd.f32 %v3762, %v3763
        %v3765 = vrot.slane %v3764, 2
        %v3766 = vadd.f32 %v3764, %v3765
        %v3767 = vrot.slane %v3766, 1
        %v3768 = vadd.f32 %v3766, %v3767
        %3769 = vst [vmem:[%s360] sm:$0x1] %v3768
        %s3770 = sand.u32 %s230, 1
        %s3771 = scalar_lea.sflag [#allocation3], %s3770
        %s3772 = sand.u32 %s230, 1
        %s3773 = smul.addr %s3772, 8
        %s3774 = scalar_lea.vmem [#allocation2], %s3773
        %s3775 = sand.u32 %s256, 1
        %s3776 = scalar_lea.sflag [#allocation5], %s3775
        %s3777 = sand.u32 %s256, 1
        %s3778 = scalar_lea.vmem [#allocation4], %s3777
        // Predicated region
        $region57: #{tpu_custom_call.1} parent=55 // pred_check
          %p3779 = pneg %p240
        $region58: #{tpu_custom_call.1} parent=55 // pred_check_branch
          %3781 = sbr.rel (%p3779) target = $region60
        $region59: #{tpu_custom_call.1} parent=55 // pred_region
          %s3783 = ssub.s32 128, 128
          %3784 = vsyncadd %s3771, %s3783
          %s3785 = smul.addr %s28, 128
          %s3786 = scalar_lea.hbm %s9, %s3785
          %s3788 = sshll.u32 %s3774, 4
          %s3789 = int_to_ptr.vmem [resolvable:$true] %s3788
          %3791 = dma.vmem_to_hbm [thread:$0]  %s3789, 128, %s3786, %s3771
        $region60: #{tpu_custom_call.1} parent=55 // pred_fallthru
          _
        // Predicated region
        $region61: #{tpu_custom_call.1} parent=55 // pred_check
          %p3792 = pneg %p266
        $region62: #{tpu_custom_call.1} parent=55 // pred_check_branch
          %3794 = sbr.rel (%p3792) target = $region64
        $region63: #{tpu_custom_call.1} parent=55 // pred_region
          %s3796 = ssub.s32 16, 16
          %3797 = vsyncadd %s3776, %s3796
          %s3798 = smul.addr %s28, 16
          %s3799 = scalar_lea.hbm %s10, %s3798
          %s3801 = sshll.u32 %s3778, 4
          %s3802 = int_to_ptr.vmem [resolvable:$true] %s3801
          %3804 = dma.vmem_to_hbm [thread:$0]  %s3802, 16, %s3799, %s3776
        $region64: #{tpu_custom_call.1} parent=55 // pred_fallthru
          _
      $region56: #{tpu_custom_call.1} parent=5 // pred_fallthru
        _
      %p3805 = scmp.le.s32.totalorder 2, %s23
      // Predicated region
      $region65: #{tpu_custom_call.1} parent=5 // pred_check
        %p3806 = pneg %p3805
      $region66: #{tpu_custom_call.1} parent=5 // pred_check_branch
        %3808 = sbr.rel (%p3806) target = $region68
      $region67: #{tpu_custom_call.1} parent=5 // pred_region
        %s3809 = ssub.s32 %s23, 2
        // Predicated region
        $region69: #{tpu_custom_call.1} parent=67 // pred_check
          %p3810 = pneg %p246
        $region70: #{tpu_custom_call.1} parent=67 // pred_check_branch
          %3812 = sbr.rel (%p3810) target = $region72
        $region71: #{tpu_custom_call.1} parent=67 // pred_region
          %s3813 = sand.u32 %s231, 1
          %s3814 = scalar_lea.sflag [#allocation3], %s3813
          %s3815 = sand.u32 %s231, 1
          %s3816 = smul.addr %s3815, 8
          %s3817 = scalar_lea.vmem [#allocation2], %s3816
          %3818 = dma.done %s3814, 128
        $region72: #{tpu_custom_call.1} parent=67 // pred_fallthru
          _
        // Predicated region
        $region73: #{tpu_custom_call.1} parent=67 // pred_check
          %p3819 = pneg %p272
        $region74: #{tpu_custom_call.1} parent=67 // pred_check_branch
          %3821 = sbr.rel (%p3819) target = $region76
        $region75: #{tpu_custom_call.1} parent=67 // pred_region
          %s3822 = sand.u32 %s257, 1
          %s3823 = scalar_lea.sflag [#allocation5], %s3822
          %s3824 = sand.u32 %s257, 1
          %s3825 = scalar_lea.vmem [#allocation4], %s3824
          %3826 = dma.done %s3823, 16
        $region76: #{tpu_custom_call.1} parent=67 // pred_fallthru
          _
      $region68: #{tpu_custom_call.1} parent=5 // pred_fallthru
        _
    $region6: #{tpu_custom_call.1} parent=1 // loop_footer
      %s27 = sadd.s32 1, %s23
    $region7: #{tpu_custom_call.1} parent=1 // loop_footer_branch
      %22 = sbr.rel target = $region3
    $region8: #{tpu_custom_call.1} parent=1 // loop_exit
      _
    %3827 = vsyncpa [#allocation3], 1
    %s3828 = scalar_lea.sflag [#allocation3], 1
    %3829 = vsyncpa %s3828, 1
    %3830 = vsyncpa [#allocation5], 1
    %s3831 = scalar_lea.sflag [#allocation5], 1
    %3832 = vsyncpa %s3831, 1

</llo_original>
